<compile_context>
chip_gen: v5e
topology: v5e:2x2
jax: 0.10.0
libtpu: 0.0.40
codegen_flags: <defaults>
</compile_context>

<pallas_src>
import functools
import math

import jax
import jax.numpy as jnp
from jax.experimental import pallas as pl
from jax.experimental.pallas import tpu as pltpu


# ----------------------------------------------------------------------------
# In-kernel building blocks (plain traced functions, all data stays in VMEM)
# ----------------------------------------------------------------------------

def _layer_norm(z, gamma, beta, eps):
    mean = jnp.mean(z, axis=-1, keepdims=True)
    var = jnp.mean((z - mean) ** 2, axis=-1, keepdims=True)
    return (z - mean) * jax.lax.rsqrt(var + eps) * gamma + beta


def _mha_block(q, k, v, wo, bo, residual, gamma, beta, *,
               num_heads, head_dim, causal, eps):
    """Multi-head attention + output projection + residual + LayerNorm.

    q: [Sq, D] f32, k/v: [Sk, D] f32, wo: [D, D] bf16.  Heads are split with
    static lane slices, attended, then packed back onto the lane axis so the
    output projection is ONE full-depth [Sq,D]@[D,D] matmul (perf feedback).
    """
    Sq = q.shape[0]
    Sk = k.shape[0]
    scale = 1.0 / math.sqrt(head_dim)

    if causal:
        row = jax.lax.broadcasted_iota(jnp.int32, (Sq, Sk), 0)
        col = jax.lax.broadcasted_iota(jnp.int32, (Sq, Sk), 1)
        keep = col <= row

    # TODO(synk): at realistic head_dim/S, replace with a flash-style kernel
    # tiled over Sq/Sk and batch heads into one dot_general (MXU depth).
    head_outs = []
    for h in range(num_heads):
        lo = h * head_dim
        hi = lo + head_dim
        qh = q[:, lo:hi].astype(jnp.bfloat16)
        kh = k[:, lo:hi].astype(jnp.bfloat16)
        vh = v[:, lo:hi].astype(jnp.bfloat16)
        # scores = qh @ kh^T (contract last dims; no explicit transpose)
        s = jax.lax.dot_general(qh, kh, (((1,), (1,)), ((), ())),
                                preferred_element_type=jnp.float32) * scale
        if causal:
            s = jnp.where(keep, s, -1e30)            # finite, NaN-safe
        m = jnp.max(s, axis=-1, keepdims=True)
        e = jnp.exp(s - m)
        p = e / jnp.sum(e, axis=-1, keepdims=True)   # exact normalization (f32)
        head_outs.append(jnp.dot(p.astype(jnp.bfloat16), vh,
                                 preferred_element_type=jnp.float32))

    attn = jnp.concatenate(head_outs, axis=-1)       # [Sq, D], heads on lanes
    y = jnp.dot(attn.astype(jnp.bfloat16), wo,
                preferred_element_type=jnp.float32) + bo
    return _layer_norm(y + residual, gamma, beta, eps)


def _ffn_block(x, w1, b1, w2, b2, gamma, beta, *, eps):
    """LayerNorm(x + relu(x @ W1 + b1) @ W2 + b2)."""
    h = jnp.dot(x.astype(jnp.bfloat16), w1,
                preferred_element_type=jnp.float32) + b1
    h = jnp.maximum(h, 0.0)
    y = jnp.dot(h.astype(jnp.bfloat16), w2,
                preferred_element_type=jnp.float32) + b2
    return _layer_norm(y + x, gamma, beta, eps)


# ----------------------------------------------------------------------------
# Fused whole-model kernel: one grid step = one batch element
# ----------------------------------------------------------------------------

def _transformer_kernel(
        # per-batch activation blocks
        x_ref, y_ref,
        # encoder params
        e_wqkv, e_bqkv, e_wo, e_bo, e_g1, e_be1,
        e_w1, e_b1, e_w2, e_b2, e_g2, e_be2,
        # decoder self-attention params
        d_wqkv, d_bqkv, d_wo, d_bo, d_g1, d_be1,
        # decoder cross-attention params (+ its LayerNorm)
        c_wq, c_bq, c_wkv, c_bkv, c_wo, c_bo, d_g2, d_be2,
        # decoder FFN params
        d_w1, d_b1, d_w2, d_b2, d_g3, d_be3,
        # vocab head params
        v_w, v_b,
        # output
        o_ref,
        *, num_heads, head_dim, eps):
    D = num_heads * head_dim
    x = x_ref[0]                               # [S, D] f32 encoder input
    y = y_ref[0]                               # [S, D] f32 decoder input

    # ---------------- encoder layer ----------------
    qkv = jnp.dot(x.astype(jnp.bfloat16), e_wqkv[...],
                  preferred_element_type=jnp.float32) + e_bqkv[...]
    h = _mha_block(qkv[:, :D], qkv[:, D:2 * D], qkv[:, 2 * D:],
                   e_wo[...], e_bo[...], x, e_g1[...], e_be1[...],
                   num_heads=num_heads, head_dim=head_dim,
                   causal=False, eps=eps)
    enc_out = _ffn_block(h, e_w1[...], e_b1[...], e_w2[...], e_b2[...],
                         e_g2[...], e_be2[...], eps=eps)

    # ---------------- decoder layer ----------------
    qkv_d = jnp.dot(y.astype(jnp.bfloat16), d_wqkv[...],
                    preferred_element_type=jnp.float32) + d_bqkv[...]
    h1 = _mha_block(qkv_d[:, :D], qkv_d[:, D:2 * D], qkv_d[:, 2 * D:],
                    d_wo[...], d_bo[...], y, d_g1[...], d_be1[...],
                    num_heads=num_heads, head_dim=head_dim,
                    causal=True, eps=eps)

    # cross-attention: Q from decoder hidden, K/V from encoder output
    # (projections fused here — no extra pallas_call / HBM round trip)
    cq = jnp.dot(h1.astype(jnp.bfloat16), c_wq[...],
                 preferred_element_type=jnp.float32) + c_bq[...]
    ckv = jnp.dot(enc_out.astype(jnp.bfloat16), c_wkv[...],
                  preferred_element_type=jnp.float32) + c_bkv[...]
    h2 = _mha_block(cq, ckv[:, :D], ckv[:, D:],
                    c_wo[...], c_bo[...], h1, d_g2[...], d_be2[...],
                    num_heads=num_heads, head_dim=head_dim,
                    causal=False, eps=eps)
    dec_out = _ffn_block(h2, d_w1[...], d_b1[...], d_w2[...], d_b2[...],
                         d_g3[...], d_be3[...], eps=eps)

    # ---------------- Linear + ReLU + Softmax head ----------------
    # TODO(synk): for realistic vocab (10k+) tile V on an 'arbitrary' grid
    # axis with a two-pass / online softmax instead of one full [S, V] block.
    logits = jnp.dot(dec_out.astype(jnp.bfloat16), v_w[...],
                     preferred_element_type=jnp.float32) + v_b[...]
    logits = jnp.maximum(logits, 0.0)
    m = jnp.max(logits, axis=-1, keepdims=True)
    e = jnp.exp(logits - m)
    o_ref[0] = (e / jnp.sum(e, axis=-1, keepdims=True)).astype(o_ref.dtype)


def _ordered_params(p):
    """Flatten params in the exact order of the kernel signature."""
    e, d, c = p["enc"], p["dec"], p["cross"]
    return [
        e["Wqkv"], e["bqkv"], e["Wo"], e["bo"], e["ln1_g"], e["ln1_b"],
        e["W1"], e["b1"], e["W2"], e["b2"], e["ln2_g"], e["ln2_b"],
        d["Wqkv"], d["bqkv"], d["Wo"], d["bo"], d["ln1_g"], d["ln1_b"],
        c["Wq"], c["bq"], c["Wkv"], c["bkv"], c["Wo"], c["bo"],
        d["ln2_g"], d["ln2_b"],
        d["W1"], d["b1"], d["W2"], d["b2"], d["ln3_g"], d["ln3_b"],
        p["vocab_W"], p["vocab_b"],
    ]


def transformer_forward(inputs, outputs, params, num_heads):
    """inputs/outputs: [B, S, D] f32 -> probs [B, S, V] f32."""
    B, S, D = inputs.shape
    head_dim = D // num_heads
    V = params["vocab_W"].shape[1]

    weights = _ordered_params(params)

    def _rep_spec(a):
        nd = a.ndim
        # grid-invariant (weight) block: full array, same block every step.
        # TODO(synk): pipeline_mode=pl.Buffered(1) would drop the second
        # buffer of these weight blocks at realistic sizes.
        return pl.BlockSpec(a.shape, lambda b, _n=nd: (0,) * _n)

    in_specs = [
        pl.BlockSpec((1, S, D), lambda b: (b, 0, 0)),   # encoder input
        pl.BlockSpec((1, S, D), lambda b: (b, 0, 0)),   # decoder input
    ] + [_rep_spec(w) for w in weights]

    kernel = functools.partial(_transformer_kernel, num_heads=num_heads,
                               head_dim=head_dim, eps=1e-5)

    return pl.pallas_call(
        kernel,
        out_shape=jax.ShapeDtypeStruct((B, S, V), jnp.float32),
        grid=(B,),
        in_specs=in_specs,
        out_specs=pl.BlockSpec((1, S, V), lambda b: (b, 0, 0)),
        compiler_params=pltpu.CompilerParams(
            dimension_semantics=("parallel",),          # megacore over batch
            vmem_limit_bytes=48 * 1024 * 1024,
        ),
    )(inputs, outputs, *weights)


# ----------------------------------------------------------------------------
# Deterministic parameter init (nn.Linear-style uniform(+-1/sqrt(fan_in)))
# Weights stored in bf16 for the MXU; biases / LayerNorm params stay f32 and
# are pre-shaped (1, N) so no reshapes happen at call time.
# ----------------------------------------------------------------------------

def _init_linear(key, fan_in, fan_out):
    kw, kb = jax.random.split(key)
    bound = 1.0 / math.sqrt(fan_in)
    W = jax.random.uniform(kw, (fan_in, fan_out), jnp.float32, -bound, bound)
    b = jax.random.uniform(kb, (1, fan_out), jnp.float32, -bound, bound)
    return W.astype(jnp.bfloat16), b


def init_params(key, d_model, d_ff, vocab_size):
    D = d_model
    ks = jax.random.split(key, 8)

    def mha(k):
        kq, kk, kv, ko = jax.random.split(k, 4)
        Wq, bq = _init_linear(kq, D, D)
        Wk, bk = _init_linear(kk, D, D)
        Wv, bv = _init_linear(kv, D, D)
        Wo, bo = _init_linear(ko, D, D)
        return Wq, bq, Wk, bk, Wv, bv, Wo, bo

    def ln():
        return jnp.ones((1, D), jnp.float32), jnp.zeros((1, D), jnp.float32)

    # encoder layer
    Wq, bq, Wk, bk, Wv, bv, Wo, bo = mha(ks[0])
    enc = {"Wqkv": jnp.concatenate([Wq, Wk, Wv], axis=1),
           "bqkv": jnp.concatenate([bq, bk, bv], axis=1),
           "Wo": Wo, "bo": bo}
    enc["ln1_g"], enc["ln1_b"] = ln()
    enc["W1"], enc["b1"] = _init_linear(ks[1], D, d_ff)
    enc["W2"], enc["b2"] = _init_linear(ks[2], d_ff, D)
    enc["ln2_g"], enc["ln2_b"] = ln()

    # decoder layer: causal self-attn + FFN (+ three LayerNorms)
    Wq, bq, Wk, bk, Wv, bv, Wo, bo = mha(ks[3])
    dec = {"Wqkv": jnp.concatenate([Wq, Wk, Wv], axis=1),
           "bqkv": jnp.concatenate([bq, bk, bv], axis=1),
           "Wo": Wo, "bo": bo}
    dec["ln1_g"], dec["ln1_b"] = ln()
    dec["ln2_g"], dec["ln2_b"] = ln()
    dec["W1"], dec["b1"] = _init_linear(ks[4], D, d_ff)
    dec["W2"], dec["b2"] = _init_linear(ks[5], d_ff, D)
    dec["ln3_g"], dec["ln3_b"] = ln()

    # decoder cross-attention
    Wq, bq, Wk, bk, Wv, bv, Wo, bo = mha(ks[6])
    cross = {"Wq": Wq, "bq": bq,
             "Wkv": jnp.concatenate([Wk, Wv], axis=1),
             "bkv": jnp.concatenate([bk, bv], axis=1),
             "Wo": Wo, "bo": bo}

    vocab_W, vocab_b = _init_linear(ks[7], D, vocab_size)
    return {"enc": enc, "dec": dec, "cross": cross,
            "vocab_W": vocab_W, "vocab_b": vocab_b}


# ----------------------------------------------------------------------------
# Demo
# ----------------------------------------------------------------------------

if __name__ == "__main__":
    # Small config consistent with the module: head_dim * num_heads == d_model.
    B, S = 2, 8
    NUM_HEADS, HEAD_DIM = 4, 8
    D_MODEL = NUM_HEADS * HEAD_DIM          # 32
    D_FF = 4 * D_MODEL                      # 128
    VOCAB = 64

    key = jax.random.PRNGKey(0)
    k_in, k_out, k_p = jax.random.split(key, 3)
    inputs = jax.random.normal(k_in, (B, S, D_MODEL), jnp.float32)    # encoder in
    outputs = jax.random.normal(k_out, (B, S, D_MODEL), jnp.float32)  # decoder in
    params = init_params(k_p, D_MODEL, D_FF, VOCAB)

    fwd = jax.jit(functools.partial(transformer_forward, num_heads=NUM_HEADS))
    probs = jax.block_until_ready(fwd(inputs, outputs, params))

    assert probs.shape == (B, S, VOCAB)
    assert bool(jnp.all(jnp.isfinite(probs)))
    # final softmax rows sum to 1 (exact f32 normalization)
    assert bool(jnp.allclose(jnp.sum(probs, axis=-1), 1.0, atol=1e-4))
    print("KERNEL_OK")
</pallas_src>

<mosaic_0001>
module attributes {stable_mosaic.version = 11 : i64} {
  func.func @_transformer_kernel(%arg0: i32, %arg1: memref<1x8x32xf32, #tpu.memory_space<vmem>>, %arg2: memref<1x8x32xf32, #tpu.memory_space<vmem>>, %arg3: memref<32x96xbf16, #tpu.memory_space<vmem>>, %arg4: memref<1x96xf32, #tpu.memory_space<vmem>>, %arg5: memref<32x32xbf16, #tpu.memory_space<vmem>>, %arg6: memref<1x32xf32, #tpu.memory_space<vmem>>, %arg7: memref<1x32xf32, #tpu.memory_space<vmem>>, %arg8: memref<1x32xf32, #tpu.memory_space<vmem>>, %arg9: memref<32x128xbf16, #tpu.memory_space<vmem>>, %arg10: memref<1x128xf32, #tpu.memory_space<vmem>>, %arg11: memref<128x32xbf16, #tpu.memory_space<vmem>>, %arg12: memref<1x32xf32, #tpu.memory_space<vmem>>, %arg13: memref<1x32xf32, #tpu.memory_space<vmem>>, %arg14: memref<1x32xf32, #tpu.memory_space<vmem>>, %arg15: memref<32x96xbf16, #tpu.memory_space<vmem>>, %arg16: memref<1x96xf32, #tpu.memory_space<vmem>>, %arg17: memref<32x32xbf16, #tpu.memory_space<vmem>>, %arg18: memref<1x32xf32, #tpu.memory_space<vmem>>, %arg19: memref<1x32xf32, #tpu.memory_space<vmem>>, %arg20: memref<1x32xf32, #tpu.memory_space<vmem>>, %arg21: memref<32x32xbf16, #tpu.memory_space<vmem>>, %arg22: memref<1x32xf32, #tpu.memory_space<vmem>>, %arg23: memref<32x64xbf16, #tpu.memory_space<vmem>>, %arg24: memref<1x64xf32, #tpu.memory_space<vmem>>, %arg25: memref<32x32xbf16, #tpu.memory_space<vmem>>, %arg26: memref<1x32xf32, #tpu.memory_space<vmem>>, %arg27: memref<1x32xf32, #tpu.memory_space<vmem>>, %arg28: memref<1x32xf32, #tpu.memory_space<vmem>>, %arg29: memref<32x128xbf16, #tpu.memory_space<vmem>>, %arg30: memref<1x128xf32, #tpu.memory_space<vmem>>, %arg31: memref<128x32xbf16, #tpu.memory_space<vmem>>, %arg32: memref<1x32xf32, #tpu.memory_space<vmem>>, %arg33: memref<1x32xf32, #tpu.memory_space<vmem>>, %arg34: memref<1x32xf32, #tpu.memory_space<vmem>>, %arg35: memref<32x64xbf16, #tpu.memory_space<vmem>>, %arg36: memref<1x64xf32, #tpu.memory_space<vmem>>, %arg37: memref<1x8x64xf32, #tpu.memory_space<vmem>>) attributes {dimension_semantics = [#tpu.dimension_semantics<parallel>], iteration_bounds = array<i64: 2>, scalar_prefetch = 0 : i64, scratch_operands = 0 : i64, tpu.core_type = #tpu.core_type<tc>, window_params = [{transform_indices = @transform_0, window_bounds = array<i64: 1, 8, 32>}, {transform_indices = @transform_1, window_bounds = array<i64: 1, 8, 32>}, {pipeline_mode = #tpu.pipeline_mode<synchronous>, transform_indices = @transform_2, window_bounds = array<i64: 32, 96>}, {pipeline_mode = #tpu.pipeline_mode<synchronous>, transform_indices = @transform_3, window_bounds = array<i64: 1, 96>}, {pipeline_mode = #tpu.pipeline_mode<synchronous>, transform_indices = @transform_4, window_bounds = array<i64: 32, 32>}, {pipeline_mode = #tpu.pipeline_mode<synchronous>, transform_indices = @transform_5, window_bounds = array<i64: 1, 32>}, {pipeline_mode = #tpu.pipeline_mode<synchronous>, transform_indices = @transform_6, window_bounds = array<i64: 1, 32>}, {pipeline_mode = #tpu.pipeline_mode<synchronous>, transform_indices = @transform_7, window_bounds = array<i64: 1, 32>}, {pipeline_mode = #tpu.pipeline_mode<synchronous>, transform_indices = @transform_8, window_bounds = array<i64: 32, 128>}, {pipeline_mode = #tpu.pipeline_mode<synchronous>, transform_indices = @transform_9, window_bounds = array<i64: 1, 128>}, {pipeline_mode = #tpu.pipeline_mode<synchronous>, transform_indices = @transform_10, window_bounds = array<i64: 128, 32>}, {pipeline_mode = #tpu.pipeline_mode<synchronous>, transform_indices = @transform_11, window_bounds = array<i64: 1, 32>}, {pipeline_mode = #tpu.pipeline_mode<synchronous>, transform_indices = @transform_12, window_bounds = array<i64: 1, 32>}, {pipeline_mode = #tpu.pipeline_mode<synchronous>, transform_indices = @transform_13, window_bounds = array<i64: 1, 32>}, {pipeline_mode = #tpu.pipeline_mode<synchronous>, transform_indices = @transform_14, window_bounds = array<i64: 32, 96>}, {pipeline_mode = #tpu.pipeline_mode<synchronous>, transform_indices = @transform_15, window_bounds = array<i64: 1, 96>}, {pipeline_mode = #tpu.pipeline_mode<synchronous>, transform_indices = @transform_16, window_bounds = array<i64: 32, 32>}, {pipeline_mode = #tpu.pipeline_mode<synchronous>, transform_indices = @transform_17, window_bounds = array<i64: 1, 32>}, {pipeline_mode = #tpu.pipeline_mode<synchronous>, transform_indices = @transform_18, window_bounds = array<i64: 1, 32>}, {pipeline_mode = #tpu.pipeline_mode<synchronous>, transform_indices = @transform_19, window_bounds = array<i64: 1, 32>}, {pipeline_mode = #tpu.pipeline_mode<synchronous>, transform_indices = @transform_20, window_bounds = array<i64: 32, 32>}, {pipeline_mode = #tpu.pipeline_mode<synchronous>, transform_indices = @transform_21, window_bounds = array<i64: 1, 32>}, {pipeline_mode = #tpu.pipeline_mode<synchronous>, transform_indices = @transform_22, window_bounds = array<i64: 32, 64>}, {pipeline_mode = #tpu.pipeline_mode<synchronous>, transform_indices = @transform_23, window_bounds = array<i64: 1, 64>}, {pipeline_mode = #tpu.pipeline_mode<synchronous>, transform_indices = @transform_24, window_bounds = array<i64: 32, 32>}, {pipeline_mode = #tpu.pipeline_mode<synchronous>, transform_indices = @transform_25, window_bounds = array<i64: 1, 32>}, {pipeline_mode = #tpu.pipeline_mode<synchronous>, transform_indices = @transform_26, window_bounds = array<i64: 1, 32>}, {pipeline_mode = #tpu.pipeline_mode<synchronous>, transform_indices = @transform_27, window_bounds = array<i64: 1, 32>}, {pipeline_mode = #tpu.pipeline_mode<synchronous>, transform_indices = @transform_28, window_bounds = array<i64: 32, 128>}, {pipeline_mode = #tpu.pipeline_mode<synchronous>, transform_indices = @transform_29, window_bounds = array<i64: 1, 128>}, {pipeline_mode = #tpu.pipeline_mode<synchronous>, transform_indices = @transform_30, window_bounds = array<i64: 128, 32>}, {pipeline_mode = #tpu.pipeline_mode<synchronous>, transform_indices = @transform_31, window_bounds = array<i64: 1, 32>}, {pipeline_mode = #tpu.pipeline_mode<synchronous>, transform_indices = @transform_32, window_bounds = array<i64: 1, 32>}, {pipeline_mode = #tpu.pipeline_mode<synchronous>, transform_indices = @transform_33, window_bounds = array<i64: 1, 32>}, {pipeline_mode = #tpu.pipeline_mode<synchronous>, transform_indices = @transform_34, window_bounds = array<i64: 32, 64>}, {pipeline_mode = #tpu.pipeline_mode<synchronous>, transform_indices = @transform_35, window_bounds = array<i64: 1, 64>}, {transform_indices = @transform_36, window_bounds = array<i64: 1, 8, 64>}]} {
    %c0 = arith.constant 0 : index
    %c0_0 = arith.constant 0 : index
    %c0_1 = arith.constant 0 : index
    %0 = vector.load %arg1[%c0, %c0_0, %c0_1] : memref<1x8x32xf32, #tpu.memory_space<vmem>>, vector<1x8x32xf32>
    %1 = vector.shape_cast %0 : vector<1x8x32xf32> to vector<8x32xf32>
    %c0_2 = arith.constant 0 : index
    %c0_3 = arith.constant 0 : index
    %c0_4 = arith.constant 0 : index
    %2 = vector.load %arg2[%c0_2, %c0_3, %c0_4] : memref<1x8x32xf32, #tpu.memory_space<vmem>>, vector<1x8x32xf32>
    %3 = vector.shape_cast %2 : vector<1x8x32xf32> to vector<8x32xf32>
    %4 = arith.truncf %1 : vector<8x32xf32> to vector<8x32xbf16>
    %c0_5 = arith.constant 0 : index
    %c0_6 = arith.constant 0 : index
    %5 = vector.load %arg3[%c0_5, %c0_6] : memref<32x96xbf16, #tpu.memory_space<vmem>>, vector<32x96xbf16>
    %cst = arith.constant dense<0.000000e+00> : vector<8x96xf32>
    %6 = tpu.matmul %4, %5, %cst {dimension_numbers = #tpu.dot_dimension_numbers<[1], [0], [0], [1], [0, 0, 1, 1], [], []>} : vector<8x32xbf16>, vector<32x96xbf16>, vector<8x96xf32> -> vector<8x96xf32>
    %c0_7 = arith.constant 0 : index
    %c0_8 = arith.constant 0 : index
    %7 = vector.load %arg4[%c0_7, %c0_8] : memref<1x96xf32, #tpu.memory_space<vmem>>, vector<1x96xf32>
    %8 = vector.broadcast %7 : vector<1x96xf32> to vector<8x96xf32>
    %9 = arith.addf %6, %8 : vector<8x96xf32>
    %10 = vector.extract_strided_slice %9 {offsets = [0, 0], sizes = [8, 32], strides = [1, 1]} : vector<8x96xf32> to vector<8x32xf32>
    %11 = vector.extract_strided_slice %9 {offsets = [0, 32], sizes = [8, 32], strides = [1, 1]} : vector<8x96xf32> to vector<8x32xf32>
    %12 = vector.extract_strided_slice %9 {offsets = [0, 64], sizes = [8, 32], strides = [1, 1]} : vector<8x96xf32> to vector<8x32xf32>
    %c0_9 = arith.constant 0 : index
    %c0_10 = arith.constant 0 : index
    %13 = vector.load %arg5[%c0_9, %c0_10] : memref<32x32xbf16, #tpu.memory_space<vmem>>, vector<32x32xbf16>
    %c0_11 = arith.constant 0 : index
    %c0_12 = arith.constant 0 : index
    %14 = vector.load %arg6[%c0_11, %c0_12] : memref<1x32xf32, #tpu.memory_space<vmem>>, vector<1x32xf32>
    %c0_13 = arith.constant 0 : index
    %c0_14 = arith.constant 0 : index
    %15 = vector.load %arg7[%c0_13, %c0_14] : memref<1x32xf32, #tpu.memory_space<vmem>>, vector<1x32xf32>
    %c0_15 = arith.constant 0 : index
    %c0_16 = arith.constant 0 : index
    %16 = vector.load %arg8[%c0_15, %c0_16] : memref<1x32xf32, #tpu.memory_space<vmem>>, vector<1x32xf32>
    %17 = vector.extract_strided_slice %10 {offsets = [0, 0], sizes = [8, 8], strides = [1, 1]} : vector<8x32xf32> to vector<8x8xf32>
    %18 = arith.truncf %17 : vector<8x8xf32> to vector<8x8xbf16>
    %19 = vector.extract_strided_slice %11 {offsets = [0, 0], sizes = [8, 8], strides = [1, 1]} : vector<8x32xf32> to vector<8x8xf32>
    %20 = arith.truncf %19 : vector<8x8xf32> to vector<8x8xbf16>
    %21 = vector.extract_strided_slice %12 {offsets = [0, 0], sizes = [8, 8], strides = [1, 1]} : vector<8x32xf32> to vector<8x8xf32>
    %22 = arith.truncf %21 : vector<8x8xf32> to vector<8x8xbf16>
    %cst_17 = arith.constant dense<0.000000e+00> : vector<8x8xf32>
    %23 = tpu.matmul %18, %20, %cst_17 {dimension_numbers = #tpu.dot_dimension_numbers<[1], [1], [0], [0], [0, 0, 1, 0], [], []>} : vector<8x8xbf16>, vector<8x8xbf16>, vector<8x8xf32> -> vector<8x8xf32>
    %cst_18 = arith.constant 0.353553385 : f32
    %24 = vector.broadcast %cst_18 : f32 to vector<8x8xf32>
    %25 = arith.mulf %23, %24 : vector<8x8xf32>
    %cst_19 = arith.constant dense<0xFF800000> : vector<8xf32>
    %26 = vector.multi_reduction <maximumf>, %25, %cst_19 [1] : vector<8x8xf32> to vector<8xf32>
    %27 = vector.shape_cast %26 : vector<8xf32> to vector<8x1xf32>
    %28 = vector.broadcast %27 : vector<8x1xf32> to vector<8x8xf32>
    %29 = arith.subf %25, %28 : vector<8x8xf32>
    %30 = math.exp %29 : vector<8x8xf32>
    %cst_20 = arith.constant dense<0.000000e+00> : vector<8xf32>
    %31 = vector.multi_reduction <add>, %30, %cst_20 [1] : vector<8x8xf32> to vector<8xf32>
    %32 = vector.shape_cast %31 : vector<8xf32> to vector<8x1xf32>
    %33 = vector.broadcast %32 : vector<8x1xf32> to vector<8x8xf32>
    %34 = arith.divf %30, %33 : vector<8x8xf32>
    %35 = arith.truncf %34 : vector<8x8xf32> to vector<8x8xbf16>
    %cst_21 = arith.constant dense<0.000000e+00> : vector<8x8xf32>
    %36 = tpu.matmul %35, %22, %cst_21 {dimension_numbers = #tpu.dot_dimension_numbers<[1], [0], [0], [1], [0, 0, 1, 1], [], []>} : vector<8x8xbf16>, vector<8x8xbf16>, vector<8x8xf32> -> vector<8x8xf32>
    %37 = vector.extract_strided_slice %10 {offsets = [0, 8], sizes = [8, 8], strides = [1, 1]} : vector<8x32xf32> to vector<8x8xf32>
    %38 = arith.truncf %37 : vector<8x8xf32> to vector<8x8xbf16>
    %39 = vector.extract_strided_slice %11 {offsets = [0, 8], sizes = [8, 8], strides = [1, 1]} : vector<8x32xf32> to vector<8x8xf32>
    %40 = arith.truncf %39 : vector<8x8xf32> to vector<8x8xbf16>
    %41 = vector.extract_strided_slice %12 {offsets = [0, 8], sizes = [8, 8], strides = [1, 1]} : vector<8x32xf32> to vector<8x8xf32>
    %42 = arith.truncf %41 : vector<8x8xf32> to vector<8x8xbf16>
    %cst_22 = arith.constant dense<0.000000e+00> : vector<8x8xf32>
    %43 = tpu.matmul %38, %40, %cst_22 {dimension_numbers = #tpu.dot_dimension_numbers<[1], [1], [0], [0], [0, 0, 1, 0], [], []>} : vector<8x8xbf16>, vector<8x8xbf16>, vector<8x8xf32> -> vector<8x8xf32>
    %cst_23 = arith.constant 0.353553385 : f32
    %44 = vector.broadcast %cst_23 : f32 to vector<8x8xf32>
    %45 = arith.mulf %43, %44 : vector<8x8xf32>
    %cst_24 = arith.constant dense<0xFF800000> : vector<8xf32>
    %46 = vector.multi_reduction <maximumf>, %45, %cst_24 [1] : vector<8x8xf32> to vector<8xf32>
    %47 = vector.shape_cast %46 : vector<8xf32> to vector<8x1xf32>
    %48 = vector.broadcast %47 : vector<8x1xf32> to vector<8x8xf32>
    %49 = arith.subf %45, %48 : vector<8x8xf32>
    %50 = math.exp %49 : vector<8x8xf32>
    %cst_25 = arith.constant dense<0.000000e+00> : vector<8xf32>
    %51 = vector.multi_reduction <add>, %50, %cst_25 [1] : vector<8x8xf32> to vector<8xf32>
    %52 = vector.shape_cast %51 : vector<8xf32> to vector<8x1xf32>
    %53 = vector.broadcast %52 : vector<8x1xf32> to vector<8x8xf32>
    %54 = arith.divf %50, %53 : vector<8x8xf32>
    %55 = arith.truncf %54 : vector<8x8xf32> to vector<8x8xbf16>
    %cst_26 = arith.constant dense<0.000000e+00> : vector<8x8xf32>
    %56 = tpu.matmul %55, %42, %cst_26 {dimension_numbers = #tpu.dot_dimension_numbers<[1], [0], [0], [1], [0, 0, 1, 1], [], []>} : vector<8x8xbf16>, vector<8x8xbf16>, vector<8x8xf32> -> vector<8x8xf32>
    %57 = vector.extract_strided_slice %10 {offsets = [0, 16], sizes = [8, 8], strides = [1, 1]} : vector<8x32xf32> to vector<8x8xf32>
    %58 = arith.truncf %57 : vector<8x8xf32> to vector<8x8xbf16>
    %59 = vector.extract_strided_slice %11 {offsets = [0, 16], sizes = [8, 8], strides = [1, 1]} : vector<8x32xf32> to vector<8x8xf32>
    %60 = arith.truncf %59 : vector<8x8xf32> to vector<8x8xbf16>
    %61 = vector.extract_strided_slice %12 {offsets = [0, 16], sizes = [8, 8], strides = [1, 1]} : vector<8x32xf32> to vector<8x8xf32>
    %62 = arith.truncf %61 : vector<8x8xf32> to vector<8x8xbf16>
    %cst_27 = arith.constant dense<0.000000e+00> : vector<8x8xf32>
    %63 = tpu.matmul %58, %60, %cst_27 {dimension_numbers = #tpu.dot_dimension_numbers<[1], [1], [0], [0], [0, 0, 1, 0], [], []>} : vector<8x8xbf16>, vector<8x8xbf16>, vector<8x8xf32> -> vector<8x8xf32>
    %cst_28 = arith.constant 0.353553385 : f32
    %64 = vector.broadcast %cst_28 : f32 to vector<8x8xf32>
    %65 = arith.mulf %63, %64 : vector<8x8xf32>
    %cst_29 = arith.constant dense<0xFF800000> : vector<8xf32>
    %66 = vector.multi_reduction <maximumf>, %65, %cst_29 [1] : vector<8x8xf32> to vector<8xf32>
    %67 = vector.shape_cast %66 : vector<8xf32> to vector<8x1xf32>
    %68 = vector.broadcast %67 : vector<8x1xf32> to vector<8x8xf32>
    %69 = arith.subf %65, %68 : vector<8x8xf32>
    %70 = math.exp %69 : vector<8x8xf32>
    %cst_30 = arith.constant dense<0.000000e+00> : vector<8xf32>
    %71 = vector.multi_reduction <add>, %70, %cst_30 [1] : vector<8x8xf32> to vector<8xf32>
    %72 = vector.shape_cast %71 : vector<8xf32> to vector<8x1xf32>
    %73 = vector.broadcast %72 : vector<8x1xf32> to vector<8x8xf32>
    %74 = arith.divf %70, %73 : vector<8x8xf32>
    %75 = arith.truncf %74 : vector<8x8xf32> to vector<8x8xbf16>
    %cst_31 = arith.constant dense<0.000000e+00> : vector<8x8xf32>
    %76 = tpu.matmul %75, %62, %cst_31 {dimension_numbers = #tpu.dot_dimension_numbers<[1], [0], [0], [1], [0, 0, 1, 1], [], []>} : vector<8x8xbf16>, vector<8x8xbf16>, vector<8x8xf32> -> vector<8x8xf32>
    %77 = vector.extract_strided_slice %10 {offsets = [0, 24], sizes = [8, 8], strides = [1, 1]} : vector<8x32xf32> to vector<8x8xf32>
    %78 = arith.truncf %77 : vector<8x8xf32> to vector<8x8xbf16>
    %79 = vector.extract_strided_slice %11 {offsets = [0, 24], sizes = [8, 8], strides = [1, 1]} : vector<8x32xf32> to vector<8x8xf32>
    %80 = arith.truncf %79 : vector<8x8xf32> to vector<8x8xbf16>
    %81 = vector.extract_strided_slice %12 {offsets = [0, 24], sizes = [8, 8], strides = [1, 1]} : vector<8x32xf32> to vector<8x8xf32>
    %82 = arith.truncf %81 : vector<8x8xf32> to vector<8x8xbf16>
    %cst_32 = arith.constant dense<0.000000e+00> : vector<8x8xf32>
    %83 = tpu.matmul %78, %80, %cst_32 {dimension_numbers = #tpu.dot_dimension_numbers<[1], [1], [0], [0], [0, 0, 1, 0], [], []>} : vector<8x8xbf16>, vector<8x8xbf16>, vector<8x8xf32> -> vector<8x8xf32>
    %cst_33 = arith.constant 0.353553385 : f32
    %84 = vector.broadcast %cst_33 : f32 to vector<8x8xf32>
    %85 = arith.mulf %83, %84 : vector<8x8xf32>
    %cst_34 = arith.constant dense<0xFF800000> : vector<8xf32>
    %86 = vector.multi_reduction <maximumf>, %85, %cst_34 [1] : vector<8x8xf32> to vector<8xf32>
    %87 = vector.shape_cast %86 : vector<8xf32> to vector<8x1xf32>
    %88 = vector.broadcast %87 : vector<8x1xf32> to vector<8x8xf32>
    %89 = arith.subf %85, %88 : vector<8x8xf32>
    %90 = math.exp %89 : vector<8x8xf32>
    %cst_35 = arith.constant dense<0.000000e+00> : vector<8xf32>
    %91 = vector.multi_reduction <add>, %90, %cst_35 [1] : vector<8x8xf32> to vector<8xf32>
    %92 = vector.shape_cast %91 : vector<8xf32> to vector<8x1xf32>
    %93 = vector.broadcast %92 : vector<8x1xf32> to vector<8x8xf32>
    %94 = arith.divf %90, %93 : vector<8x8xf32>
    %95 = arith.truncf %94 : vector<8x8xf32> to vector<8x8xbf16>
    %cst_36 = arith.constant dense<0.000000e+00> : vector<8x8xf32>
    %96 = tpu.matmul %95, %82, %cst_36 {dimension_numbers = #tpu.dot_dimension_numbers<[1], [0], [0], [1], [0, 0, 1, 1], [], []>} : vector<8x8xbf16>, vector<8x8xbf16>, vector<8x8xf32> -> vector<8x8xf32>
    %97 = tpu.concatenate %36, %56, %76, %96 in 1 : vector<8x8xf32>, vector<8x8xf32>, vector<8x8xf32>, vector<8x8xf32> -> vector<8x32xf32>
    %98 = arith.truncf %97 : vector<8x32xf32> to vector<8x32xbf16>
    %cst_37 = arith.constant dense<0.000000e+00> : vector<8x32xf32>
    %99 = tpu.matmul %98, %13, %cst_37 {dimension_numbers = #tpu.dot_dimension_numbers<[1], [0], [0], [1], [0, 0, 1, 1], [], []>} : vector<8x32xbf16>, vector<32x32xbf16>, vector<8x32xf32> -> vector<8x32xf32>
    %100 = vector.broadcast %14 : vector<1x32xf32> to vector<8x32xf32>
    %101 = arith.addf %99, %100 : vector<8x32xf32>
    %102 = arith.addf %101, %1 : vector<8x32xf32>
    %cst_38 = arith.constant dense<0.000000e+00> : vector<8xf32>
    %103 = vector.multi_reduction <add>, %102, %cst_38 [1] : vector<8x32xf32> to vector<8xf32>
    %104 = vector.shape_cast %103 : vector<8xf32> to vector<8x1xf32>
    %cst_39 = arith.constant 3.200000e+01 : f32
    %105 = vector.broadcast %cst_39 : f32 to vector<8x1xf32>
    %106 = arith.divf %104, %105 : vector<8x1xf32>
    %107 = vector.broadcast %106 : vector<8x1xf32> to vector<8x32xf32>
    %108 = arith.subf %102, %107 : vector<8x32xf32>
    %109 = arith.mulf %108, %108 : vector<8x32xf32>
    %cst_40 = arith.constant dense<0.000000e+00> : vector<8xf32>
    %110 = vector.multi_reduction <add>, %109, %cst_40 [1] : vector<8x32xf32> to vector<8xf32>
    %111 = vector.shape_cast %110 : vector<8xf32> to vector<8x1xf32>
    %cst_41 = arith.constant 3.200000e+01 : f32
    %112 = vector.broadcast %cst_41 : f32 to vector<8x1xf32>
    %113 = arith.divf %111, %112 : vector<8x1xf32>
    %114 = vector.broadcast %106 : vector<8x1xf32> to vector<8x32xf32>
    %115 = arith.subf %102, %114 : vector<8x32xf32>
    %cst_42 = arith.constant 9.99999974E-6 : f32
    %116 = vector.broadcast %cst_42 : f32 to vector<8x1xf32>
    %117 = arith.addf %113, %116 : vector<8x1xf32>
    %118 = math.rsqrt %117 : vector<8x1xf32>
    %119 = vector.broadcast %118 : vector<8x1xf32> to vector<8x32xf32>
    %120 = arith.mulf %115, %119 : vector<8x32xf32>
    %121 = vector.broadcast %15 : vector<1x32xf32> to vector<8x32xf32>
    %122 = arith.mulf %120, %121 : vector<8x32xf32>
    %123 = vector.broadcast %16 : vector<1x32xf32> to vector<8x32xf32>
    %124 = arith.addf %122, %123 : vector<8x32xf32>
    %c0_43 = arith.constant 0 : index
    %c0_44 = arith.constant 0 : index
    %125 = vector.load %arg9[%c0_43, %c0_44] : memref<32x128xbf16, #tpu.memory_space<vmem>>, vector<32x128xbf16>
    %c0_45 = arith.constant 0 : index
    %c0_46 = arith.constant 0 : index
    %126 = vector.load %arg10[%c0_45, %c0_46] : memref<1x128xf32, #tpu.memory_space<vmem>>, vector<1x128xf32>
    %c0_47 = arith.constant 0 : index
    %c0_48 = arith.constant 0 : index
    %127 = vector.load %arg11[%c0_47, %c0_48] : memref<128x32xbf16, #tpu.memory_space<vmem>>, vector<128x32xbf16>
    %c0_49 = arith.constant 0 : index
    %c0_50 = arith.constant 0 : index
    %128 = vector.load %arg12[%c0_49, %c0_50] : memref<1x32xf32, #tpu.memory_space<vmem>>, vector<1x32xf32>
    %c0_51 = arith.constant 0 : index
    %c0_52 = arith.constant 0 : index
    %129 = vector.load %arg13[%c0_51, %c0_52] : memref<1x32xf32, #tpu.memory_space<vmem>>, vector<1x32xf32>
    %c0_53 = arith.constant 0 : index
    %c0_54 = arith.constant 0 : index
    %130 = vector.load %arg14[%c0_53, %c0_54] : memref<1x32xf32, #tpu.memory_space<vmem>>, vector<1x32xf32>
    %131 = arith.truncf %124 : vector<8x32xf32> to vector<8x32xbf16>
    %cst_55 = arith.constant dense<0.000000e+00> : vector<8x128xf32>
    %132 = tpu.matmul %131, %125, %cst_55 {dimension_numbers = #tpu.dot_dimension_numbers<[1], [0], [0], [1], [0, 0, 1, 1], [], []>} : vector<8x32xbf16>, vector<32x128xbf16>, vector<8x128xf32> -> vector<8x128xf32>
    %133 = vector.broadcast %126 : vector<1x128xf32> to vector<8x128xf32>
    %134 = arith.addf %132, %133 : vector<8x128xf32>
    %cst_56 = arith.constant 0.000000e+00 : f32
    %135 = vector.broadcast %cst_56 : f32 to vector<8x128xf32>
    %136 = arith.maximumf %134, %135 : vector<8x128xf32>
    %137 = arith.truncf %136 : vector<8x128xf32> to vector<8x128xbf16>
    %cst_57 = arith.constant dense<0.000000e+00> : vector<8x32xf32>
    %138 = tpu.matmul %137, %127, %cst_57 {dimension_numbers = #tpu.dot_dimension_numbers<[1], [0], [0], [1], [0, 0, 1, 1], [], []>} : vector<8x128xbf16>, vector<128x32xbf16>, vector<8x32xf32> -> vector<8x32xf32>
    %139 = vector.broadcast %128 : vector<1x32xf32> to vector<8x32xf32>
    %140 = arith.addf %138, %139 : vector<8x32xf32>
    %141 = arith.addf %140, %124 : vector<8x32xf32>
    %cst_58 = arith.constant dense<0.000000e+00> : vector<8xf32>
    %142 = vector.multi_reduction <add>, %141, %cst_58 [1] : vector<8x32xf32> to vector<8xf32>
    %143 = vector.shape_cast %142 : vector<8xf32> to vector<8x1xf32>
    %cst_59 = arith.constant 3.200000e+01 : f32
    %144 = vector.broadcast %cst_59 : f32 to vector<8x1xf32>
    %145 = arith.divf %143, %144 : vector<8x1xf32>
    %146 = vector.broadcast %145 : vector<8x1xf32> to vector<8x32xf32>
    %147 = arith.subf %141, %146 : vector<8x32xf32>
    %148 = arith.mulf %147, %147 : vector<8x32xf32>
    %cst_60 = arith.constant dense<0.000000e+00> : vector<8xf32>
    %149 = vector.multi_reduction <add>, %148, %cst_60 [1] : vector<8x32xf32> to vector<8xf32>
    %150 = vector.shape_cast %149 : vector<8xf32> to vector<8x1xf32>
    %cst_61 = arith.constant 3.200000e+01 : f32
    %151 = vector.broadcast %cst_61 : f32 to vector<8x1xf32>
    %152 = arith.divf %150, %151 : vector<8x1xf32>
    %153 = vector.broadcast %145 : vector<8x1xf32> to vector<8x32xf32>
    %154 = arith.subf %141, %153 : vector<8x32xf32>
    %cst_62 = arith.constant 9.99999974E-6 : f32
    %155 = vector.broadcast %cst_62 : f32 to vector<8x1xf32>
    %156 = arith.addf %152, %155 : vector<8x1xf32>
    %157 = math.rsqrt %156 : vector<8x1xf32>
    %158 = vector.broadcast %157 : vector<8x1xf32> to vector<8x32xf32>
    %159 = arith.mulf %154, %158 : vector<8x32xf32>
    %160 = vector.broadcast %129 : vector<1x32xf32> to vector<8x32xf32>
    %161 = arith.mulf %159, %160 : vector<8x32xf32>
    %162 = vector.broadcast %130 : vector<1x32xf32> to vector<8x32xf32>
    %163 = arith.addf %161, %162 : vector<8x32xf32>
    %164 = arith.truncf %3 : vector<8x32xf32> to vector<8x32xbf16>
    %c0_63 = arith.constant 0 : index
    %c0_64 = arith.constant 0 : index
    %165 = vector.load %arg15[%c0_63, %c0_64] : memref<32x96xbf16, #tpu.memory_space<vmem>>, vector<32x96xbf16>
    %cst_65 = arith.constant dense<0.000000e+00> : vector<8x96xf32>
    %166 = tpu.matmul %164, %165, %cst_65 {dimension_numbers = #tpu.dot_dimension_numbers<[1], [0], [0], [1], [0, 0, 1, 1], [], []>} : vector<8x32xbf16>, vector<32x96xbf16>, vector<8x96xf32> -> vector<8x96xf32>
    %c0_66 = arith.constant 0 : index
    %c0_67 = arith.constant 0 : index
    %167 = vector.load %arg16[%c0_66, %c0_67] : memref<1x96xf32, #tpu.memory_space<vmem>>, vector<1x96xf32>
    %168 = vector.broadcast %167 : vector<1x96xf32> to vector<8x96xf32>
    %169 = arith.addf %166, %168 : vector<8x96xf32>
    %170 = vector.extract_strided_slice %169 {offsets = [0, 0], sizes = [8, 32], strides = [1, 1]} : vector<8x96xf32> to vector<8x32xf32>
    %171 = vector.extract_strided_slice %169 {offsets = [0, 32], sizes = [8, 32], strides = [1, 1]} : vector<8x96xf32> to vector<8x32xf32>
    %172 = vector.extract_strided_slice %169 {offsets = [0, 64], sizes = [8, 32], strides = [1, 1]} : vector<8x96xf32> to vector<8x32xf32>
    %c0_68 = arith.constant 0 : index
    %c0_69 = arith.constant 0 : index
    %173 = vector.load %arg17[%c0_68, %c0_69] : memref<32x32xbf16, #tpu.memory_space<vmem>>, vector<32x32xbf16>
    %c0_70 = arith.constant 0 : index
    %c0_71 = arith.constant 0 : index
    %174 = vector.load %arg18[%c0_70, %c0_71] : memref<1x32xf32, #tpu.memory_space<vmem>>, vector<1x32xf32>
    %c0_72 = arith.constant 0 : index
    %c0_73 = arith.constant 0 : index
    %175 = vector.load %arg19[%c0_72, %c0_73] : memref<1x32xf32, #tpu.memory_space<vmem>>, vector<1x32xf32>
    %c0_74 = arith.constant 0 : index
    %c0_75 = arith.constant 0 : index
    %176 = vector.load %arg20[%c0_74, %c0_75] : memref<1x32xf32, #tpu.memory_space<vmem>>, vector<1x32xf32>
    %177 = tpu.iota {dimensions = array<i32: 0>} : vector<8x8xi32>
    %178 = tpu.iota {dimensions = array<i32: 1>} : vector<8x8xi32>
    %179 = arith.cmpi sle, %178, %177 : vector<8x8xi32>
    %180 = vector.extract_strided_slice %170 {offsets = [0, 0], sizes = [8, 8], strides = [1, 1]} : vector<8x32xf32> to vector<8x8xf32>
    %181 = arith.truncf %180 : vector<8x8xf32> to vector<8x8xbf16>
    %182 = vector.extract_strided_slice %171 {offsets = [0, 0], sizes = [8, 8], strides = [1, 1]} : vector<8x32xf32> to vector<8x8xf32>
    %183 = arith.truncf %182 : vector<8x8xf32> to vector<8x8xbf16>
    %184 = vector.extract_strided_slice %172 {offsets = [0, 0], sizes = [8, 8], strides = [1, 1]} : vector<8x32xf32> to vector<8x8xf32>
    %185 = arith.truncf %184 : vector<8x8xf32> to vector<8x8xbf16>
    %cst_76 = arith.constant dense<0.000000e+00> : vector<8x8xf32>
    %186 = tpu.matmul %181, %183, %cst_76 {dimension_numbers = #tpu.dot_dimension_numbers<[1], [1], [0], [0], [0, 0, 1, 0], [], []>} : vector<8x8xbf16>, vector<8x8xbf16>, vector<8x8xf32> -> vector<8x8xf32>
    %cst_77 = arith.constant 0.353553385 : f32
    %187 = vector.broadcast %cst_77 : f32 to vector<8x8xf32>
    %188 = arith.mulf %186, %187 : vector<8x8xf32>
    %cst_78 = arith.constant -1.000000e+30 : f32
    %189 = vector.broadcast %cst_78 : f32 to vector<8x8xf32>
    %190 = arith.select %179, %188, %189 : vector<8x8xi1>, vector<8x8xf32>
    %cst_79 = arith.constant dense<0xFF800000> : vector<8xf32>
    %191 = vector.multi_reduction <maximumf>, %190, %cst_79 [1] : vector<8x8xf32> to vector<8xf32>
    %192 = vector.shape_cast %191 : vector<8xf32> to vector<8x1xf32>
    %193 = vector.broadcast %192 : vector<8x1xf32> to vector<8x8xf32>
    %194 = arith.subf %190, %193 : vector<8x8xf32>
    %195 = math.exp %194 : vector<8x8xf32>
    %cst_80 = arith.constant dense<0.000000e+00> : vector<8xf32>
    %196 = vector.multi_reduction <add>, %195, %cst_80 [1] : vector<8x8xf32> to vector<8xf32>
    %197 = vector.shape_cast %196 : vector<8xf32> to vector<8x1xf32>
    %198 = vector.broadcast %197 : vector<8x1xf32> to vector<8x8xf32>
    %199 = arith.divf %195, %198 : vector<8x8xf32>
    %200 = arith.truncf %199 : vector<8x8xf32> to vector<8x8xbf16>
    %cst_81 = arith.constant dense<0.000000e+00> : vector<8x8xf32>
    %201 = tpu.matmul %200, %185, %cst_81 {dimension_numbers = #tpu.dot_dimension_numbers<[1], [0], [0], [1], [0, 0, 1, 1], [], []>} : vector<8x8xbf16>, vector<8x8xbf16>, vector<8x8xf32> -> vector<8x8xf32>
    %202 = vector.extract_strided_slice %170 {offsets = [0, 8], sizes = [8, 8], strides = [1, 1]} : vector<8x32xf32> to vector<8x8xf32>
    %203 = arith.truncf %202 : vector<8x8xf32> to vector<8x8xbf16>
    %204 = vector.extract_strided_slice %171 {offsets = [0, 8], sizes = [8, 8], strides = [1, 1]} : vector<8x32xf32> to vector<8x8xf32>
    %205 = arith.truncf %204 : vector<8x8xf32> to vector<8x8xbf16>
    %206 = vector.extract_strided_slice %172 {offsets = [0, 8], sizes = [8, 8], strides = [1, 1]} : vector<8x32xf32> to vector<8x8xf32>
    %207 = arith.truncf %206 : vector<8x8xf32> to vector<8x8xbf16>
    %cst_82 = arith.constant dense<0.000000e+00> : vector<8x8xf32>
    %208 = tpu.matmul %203, %205, %cst_82 {dimension_numbers = #tpu.dot_dimension_numbers<[1], [1], [0], [0], [0, 0, 1, 0], [], []>} : vector<8x8xbf16>, vector<8x8xbf16>, vector<8x8xf32> -> vector<8x8xf32>
    %cst_83 = arith.constant 0.353553385 : f32
    %209 = vector.broadcast %cst_83 : f32 to vector<8x8xf32>
    %210 = arith.mulf %208, %209 : vector<8x8xf32>
    %cst_84 = arith.constant -1.000000e+30 : f32
    %211 = vector.broadcast %cst_84 : f32 to vector<8x8xf32>
    %212 = arith.select %179, %210, %211 : vector<8x8xi1>, vector<8x8xf32>
    %cst_85 = arith.constant dense<0xFF800000> : vector<8xf32>
    %213 = vector.multi_reduction <maximumf>, %212, %cst_85 [1] : vector<8x8xf32> to vector<8xf32>
    %214 = vector.shape_cast %213 : vector<8xf32> to vector<8x1xf32>
    %215 = vector.broadcast %214 : vector<8x1xf32> to vector<8x8xf32>
    %216 = arith.subf %212, %215 : vector<8x8xf32>
    %217 = math.exp %216 : vector<8x8xf32>
    %cst_86 = arith.constant dense<0.000000e+00> : vector<8xf32>
    %218 = vector.multi_reduction <add>, %217, %cst_86 [1] : vector<8x8xf32> to vector<8xf32>
    %219 = vector.shape_cast %218 : vector<8xf32> to vector<8x1xf32>
    %220 = vector.broadcast %219 : vector<8x1xf32> to vector<8x8xf32>
    %221 = arith.divf %217, %220 : vector<8x8xf32>
    %222 = arith.truncf %221 : vector<8x8xf32> to vector<8x8xbf16>
    %cst_87 = arith.constant dense<0.000000e+00> : vector<8x8xf32>
    %223 = tpu.matmul %222, %207, %cst_87 {dimension_numbers = #tpu.dot_dimension_numbers<[1], [0], [0], [1], [0, 0, 1, 1], [], []>} : vector<8x8xbf16>, vector<8x8xbf16>, vector<8x8xf32> -> vector<8x8xf32>
    %224 = vector.extract_strided_slice %170 {offsets = [0, 16], sizes = [8, 8], strides = [1, 1]} : vector<8x32xf32> to vector<8x8xf32>
    %225 = arith.truncf %224 : vector<8x8xf32> to vector<8x8xbf16>
    %226 = vector.extract_strided_slice %171 {offsets = [0, 16], sizes = [8, 8], strides = [1, 1]} : vector<8x32xf32> to vector<8x8xf32>
    %227 = arith.truncf %226 : vector<8x8xf32> to vector<8x8xbf16>
    %228 = vector.extract_strided_slice %172 {offsets = [0, 16], sizes = [8, 8], strides = [1, 1]} : vector<8x32xf32> to vector<8x8xf32>
    %229 = arith.truncf %228 : vector<8x8xf32> to vector<8x8xbf16>
    %cst_88 = arith.constant dense<0.000000e+00> : vector<8x8xf32>
    %230 = tpu.matmul %225, %227, %cst_88 {dimension_numbers = #tpu.dot_dimension_numbers<[1], [1], [0], [0], [0, 0, 1, 0], [], []>} : vector<8x8xbf16>, vector<8x8xbf16>, vector<8x8xf32> -> vector<8x8xf32>
    %cst_89 = arith.constant 0.353553385 : f32
    %231 = vector.broadcast %cst_89 : f32 to vector<8x8xf32>
    %232 = arith.mulf %230, %231 : vector<8x8xf32>
    %cst_90 = arith.constant -1.000000e+30 : f32
    %233 = vector.broadcast %cst_90 : f32 to vector<8x8xf32>
    %234 = arith.select %179, %232, %233 : vector<8x8xi1>, vector<8x8xf32>
    %cst_91 = arith.constant dense<0xFF800000> : vector<8xf32>
    %235 = vector.multi_reduction <maximumf>, %234, %cst_91 [1] : vector<8x8xf32> to vector<8xf32>
    %236 = vector.shape_cast %235 : vector<8xf32> to vector<8x1xf32>
    %237 = vector.broadcast %236 : vector<8x1xf32> to vector<8x8xf32>
    %238 = arith.subf %234, %237 : vector<8x8xf32>
    %239 = math.exp %238 : vector<8x8xf32>
    %cst_92 = arith.constant dense<0.000000e+00> : vector<8xf32>
    %240 = vector.multi_reduction <add>, %239, %cst_92 [1] : vector<8x8xf32> to vector<8xf32>
    %241 = vector.shape_cast %240 : vector<8xf32> to vector<8x1xf32>
    %242 = vector.broadcast %241 : vector<8x1xf32> to vector<8x8xf32>
    %243 = arith.divf %239, %242 : vector<8x8xf32>
    %244 = arith.truncf %243 : vector<8x8xf32> to vector<8x8xbf16>
    %cst_93 = arith.constant dense<0.000000e+00> : vector<8x8xf32>
    %245 = tpu.matmul %244, %229, %cst_93 {dimension_numbers = #tpu.dot_dimension_numbers<[1], [0], [0], [1], [0, 0, 1, 1], [], []>} : vector<8x8xbf16>, vector<8x8xbf16>, vector<8x8xf32> -> vector<8x8xf32>
    %246 = vector.extract_strided_slice %170 {offsets = [0, 24], sizes = [8, 8], strides = [1, 1]} : vector<8x32xf32> to vector<8x8xf32>
    %247 = arith.truncf %246 : vector<8x8xf32> to vector<8x8xbf16>
    %248 = vector.extract_strided_slice %171 {offsets = [0, 24], sizes = [8, 8], strides = [1, 1]} : vector<8x32xf32> to vector<8x8xf32>
    %249 = arith.truncf %248 : vector<8x8xf32> to vector<8x8xbf16>
    %250 = vector.extract_strided_slice %172 {offsets = [0, 24], sizes = [8, 8], strides = [1, 1]} : vector<8x32xf32> to vector<8x8xf32>
    %251 = arith.truncf %250 : vector<8x8xf32> to vector<8x8xbf16>
    %cst_94 = arith.constant dense<0.000000e+00> : vector<8x8xf32>
    %252 = tpu.matmul %247, %249, %cst_94 {dimension_numbers = #tpu.dot_dimension_numbers<[1], [1], [0], [0], [0, 0, 1, 0], [], []>} : vector<8x8xbf16>, vector<8x8xbf16>, vector<8x8xf32> -> vector<8x8xf32>
    %cst_95 = arith.constant 0.353553385 : f32
    %253 = vector.broadcast %cst_95 : f32 to vector<8x8xf32>
    %254 = arith.mulf %252, %253 : vector<8x8xf32>
    %cst_96 = arith.constant -1.000000e+30 : f32
    %255 = vector.broadcast %cst_96 : f32 to vector<8x8xf32>
    %256 = arith.select %179, %254, %255 : vector<8x8xi1>, vector<8x8xf32>
    %cst_97 = arith.constant dense<0xFF800000> : vector<8xf32>
    %257 = vector.multi_reduction <maximumf>, %256, %cst_97 [1] : vector<8x8xf32> to vector<8xf32>
    %258 = vector.shape_cast %257 : vector<8xf32> to vector<8x1xf32>
    %259 = vector.broadcast %258 : vector<8x1xf32> to vector<8x8xf32>
    %260 = arith.subf %256, %259 : vector<8x8xf32>
    %261 = math.exp %260 : vector<8x8xf32>
    %cst_98 = arith.constant dense<0.000000e+00> : vector<8xf32>
    %262 = vector.multi_reduction <add>, %261, %cst_98 [1] : vector<8x8xf32> to vector<8xf32>
    %263 = vector.shape_cast %262 : vector<8xf32> to vector<8x1xf32>
    %264 = vector.broadcast %263 : vector<8x1xf32> to vector<8x8xf32>
    %265 = arith.divf %261, %264 : vector<8x8xf32>
    %266 = arith.truncf %265 : vector<8x8xf32> to vector<8x8xbf16>
    %cst_99 = arith.constant dense<0.000000e+00> : vector<8x8xf32>
    %267 = tpu.matmul %266, %251, %cst_99 {dimension_numbers = #tpu.dot_dimension_numbers<[1], [0], [0], [1], [0, 0, 1, 1], [], []>} : vector<8x8xbf16>, vector<8x8xbf16>, vector<8x8xf32> -> vector<8x8xf32>
    %268 = tpu.concatenate %201, %223, %245, %267 in 1 : vector<8x8xf32>, vector<8x8xf32>, vector<8x8xf32>, vector<8x8xf32> -> vector<8x32xf32>
    %269 = arith.truncf %268 : vector<8x32xf32> to vector<8x32xbf16>
    %cst_100 = arith.constant dense<0.000000e+00> : vector<8x32xf32>
    %270 = tpu.matmul %269, %173, %cst_100 {dimension_numbers = #tpu.dot_dimension_numbers<[1], [0], [0], [1], [0, 0, 1, 1], [], []>} : vector<8x32xbf16>, vector<32x32xbf16>, vector<8x32xf32> -> vector<8x32xf32>
    %271 = vector.broadcast %174 : vector<1x32xf32> to vector<8x32xf32>
    %272 = arith.addf %270, %271 : vector<8x32xf32>
    %273 = arith.addf %272, %3 : vector<8x32xf32>
    %cst_101 = arith.constant dense<0.000000e+00> : vector<8xf32>
    %274 = vector.multi_reduction <add>, %273, %cst_101 [1] : vector<8x32xf32> to vector<8xf32>
    %275 = vector.shape_cast %274 : vector<8xf32> to vector<8x1xf32>
    %cst_102 = arith.constant 3.200000e+01 : f32
    %276 = vector.broadcast %cst_102 : f32 to vector<8x1xf32>
    %277 = arith.divf %275, %276 : vector<8x1xf32>
    %278 = vector.broadcast %277 : vector<8x1xf32> to vector<8x32xf32>
    %279 = arith.subf %273, %278 : vector<8x32xf32>
    %280 = arith.mulf %279, %279 : vector<8x32xf32>
    %cst_103 = arith.constant dense<0.000000e+00> : vector<8xf32>
    %281 = vector.multi_reduction <add>, %280, %cst_103 [1] : vector<8x32xf32> to vector<8xf32>
    %282 = vector.shape_cast %281 : vector<8xf32> to vector<8x1xf32>
    %cst_104 = arith.constant 3.200000e+01 : f32
    %283 = vector.broadcast %cst_104 : f32 to vector<8x1xf32>
    %284 = arith.divf %282, %283 : vector<8x1xf32>
    %285 = vector.broadcast %277 : vector<8x1xf32> to vector<8x32xf32>
    %286 = arith.subf %273, %285 : vector<8x32xf32>
    %cst_105 = arith.constant 9.99999974E-6 : f32
    %287 = vector.broadcast %cst_105 : f32 to vector<8x1xf32>
    %288 = arith.addf %284, %287 : vector<8x1xf32>
    %289 = math.rsqrt %288 : vector<8x1xf32>
    %290 = vector.broadcast %289 : vector<8x1xf32> to vector<8x32xf32>
    %291 = arith.mulf %286, %290 : vector<8x32xf32>
    %292 = vector.broadcast %175 : vector<1x32xf32> to vector<8x32xf32>
    %293 = arith.mulf %291, %292 : vector<8x32xf32>
    %294 = vector.broadcast %176 : vector<1x32xf32> to vector<8x32xf32>
    %295 = arith.addf %293, %294 : vector<8x32xf32>
    %296 = arith.truncf %295 : vector<8x32xf32> to vector<8x32xbf16>
    %c0_106 = arith.constant 0 : index
    %c0_107 = arith.constant 0 : index
    %297 = vector.load %arg21[%c0_106, %c0_107] : memref<32x32xbf16, #tpu.memory_space<vmem>>, vector<32x32xbf16>
    %cst_108 = arith.constant dense<0.000000e+00> : vector<8x32xf32>
    %298 = tpu.matmul %296, %297, %cst_108 {dimension_numbers = #tpu.dot_dimension_numbers<[1], [0], [0], [1], [0, 0, 1, 1], [], []>} : vector<8x32xbf16>, vector<32x32xbf16>, vector<8x32xf32> -> vector<8x32xf32>
    %c0_109 = arith.constant 0 : index
    %c0_110 = arith.constant 0 : index
    %299 = vector.load %arg22[%c0_109, %c0_110] : memref<1x32xf32, #tpu.memory_space<vmem>>, vector<1x32xf32>
    %300 = vector.broadcast %299 : vector<1x32xf32> to vector<8x32xf32>
    %301 = arith.addf %298, %300 : vector<8x32xf32>
    %302 = arith.truncf %163 : vector<8x32xf32> to vector<8x32xbf16>
    %c0_111 = arith.constant 0 : index
    %c0_112 = arith.constant 0 : index
    %303 = vector.load %arg23[%c0_111, %c0_112] : memref<32x64xbf16, #tpu.memory_space<vmem>>, vector<32x64xbf16>
    %cst_113 = arith.constant dense<0.000000e+00> : vector<8x64xf32>
    %304 = tpu.matmul %302, %303, %cst_113 {dimension_numbers = #tpu.dot_dimension_numbers<[1], [0], [0], [1], [0, 0, 1, 1], [], []>} : vector<8x32xbf16>, vector<32x64xbf16>, vector<8x64xf32> -> vector<8x64xf32>
    %c0_114 = arith.constant 0 : index
    %c0_115 = arith.constant 0 : index
    %305 = vector.load %arg24[%c0_114, %c0_115] : memref<1x64xf32, #tpu.memory_space<vmem>>, vector<1x64xf32>
    %306 = vector.broadcast %305 : vector<1x64xf32> to vector<8x64xf32>
    %307 = arith.addf %304, %306 : vector<8x64xf32>
    %308 = vector.extract_strided_slice %307 {offsets = [0, 0], sizes = [8, 32], strides = [1, 1]} : vector<8x64xf32> to vector<8x32xf32>
    %309 = vector.extract_strided_slice %307 {offsets = [0, 32], sizes = [8, 32], strides = [1, 1]} : vector<8x64xf32> to vector<8x32xf32>
    %c0_116 = arith.constant 0 : index
    %c0_117 = arith.constant 0 : index
    %310 = vector.load %arg25[%c0_116, %c0_117] : memref<32x32xbf16, #tpu.memory_space<vmem>>, vector<32x32xbf16>
    %c0_118 = arith.constant 0 : index
    %c0_119 = arith.constant 0 : index
    %311 = vector.load %arg26[%c0_118, %c0_119] : memref<1x32xf32, #tpu.memory_space<vmem>>, vector<1x32xf32>
    %c0_120 = arith.constant 0 : index
    %c0_121 = arith.constant 0 : index
    %312 = vector.load %arg27[%c0_120, %c0_121] : memref<1x32xf32, #tpu.memory_space<vmem>>, vector<1x32xf32>
    %c0_122 = arith.constant 0 : index
    %c0_123 = arith.constant 0 : index
    %313 = vector.load %arg28[%c0_122, %c0_123] : memref<1x32xf32, #tpu.memory_space<vmem>>, vector<1x32xf32>
    %314 = vector.extract_strided_slice %301 {offsets = [0, 0], sizes = [8, 8], strides = [1, 1]} : vector<8x32xf32> to vector<8x8xf32>
    %315 = arith.truncf %314 : vector<8x8xf32> to vector<8x8xbf16>
    %316 = vector.extract_strided_slice %308 {offsets = [0, 0], sizes = [8, 8], strides = [1, 1]} : vector<8x32xf32> to vector<8x8xf32>
    %317 = arith.truncf %316 : vector<8x8xf32> to vector<8x8xbf16>
    %318 = vector.extract_strided_slice %309 {offsets = [0, 0], sizes = [8, 8], strides = [1, 1]} : vector<8x32xf32> to vector<8x8xf32>
    %319 = arith.truncf %318 : vector<8x8xf32> to vector<8x8xbf16>
    %cst_124 = arith.constant dense<0.000000e+00> : vector<8x8xf32>
    %320 = tpu.matmul %315, %317, %cst_124 {dimension_numbers = #tpu.dot_dimension_numbers<[1], [1], [0], [0], [0, 0, 1, 0], [], []>} : vector<8x8xbf16>, vector<8x8xbf16>, vector<8x8xf32> -> vector<8x8xf32>
    %cst_125 = arith.constant 0.353553385 : f32
    %321 = vector.broadcast %cst_125 : f32 to vector<8x8xf32>
    %322 = arith.mulf %320, %321 : vector<8x8xf32>
    %cst_126 = arith.constant dense<0xFF800000> : vector<8xf32>
    %323 = vector.multi_reduction <maximumf>, %322, %cst_126 [1] : vector<8x8xf32> to vector<8xf32>
    %324 = vector.shape_cast %323 : vector<8xf32> to vector<8x1xf32>
    %325 = vector.broadcast %324 : vector<8x1xf32> to vector<8x8xf32>
    %326 = arith.subf %322, %325 : vector<8x8xf32>
    %327 = math.exp %326 : vector<8x8xf32>
    %cst_127 = arith.constant dense<0.000000e+00> : vector<8xf32>
    %328 = vector.multi_reduction <add>, %327, %cst_127 [1] : vector<8x8xf32> to vector<8xf32>
    %329 = vector.shape_cast %328 : vector<8xf32> to vector<8x1xf32>
    %330 = vector.broadcast %329 : vector<8x1xf32> to vector<8x8xf32>
    %331 = arith.divf %327, %330 : vector<8x8xf32>
    %332 = arith.truncf %331 : vector<8x8xf32> to vector<8x8xbf16>
    %cst_128 = arith.constant dense<0.000000e+00> : vector<8x8xf32>
    %333 = tpu.matmul %332, %319, %cst_128 {dimension_numbers = #tpu.dot_dimension_numbers<[1], [0], [0], [1], [0, 0, 1, 1], [], []>} : vector<8x8xbf16>, vector<8x8xbf16>, vector<8x8xf32> -> vector<8x8xf32>
    %334 = vector.extract_strided_slice %301 {offsets = [0, 8], sizes = [8, 8], strides = [1, 1]} : vector<8x32xf32> to vector<8x8xf32>
    %335 = arith.truncf %334 : vector<8x8xf32> to vector<8x8xbf16>
    %336 = vector.extract_strided_slice %308 {offsets = [0, 8], sizes = [8, 8], strides = [1, 1]} : vector<8x32xf32> to vector<8x8xf32>
    %337 = arith.truncf %336 : vector<8x8xf32> to vector<8x8xbf16>
    %338 = vector.extract_strided_slice %309 {offsets = [0, 8], sizes = [8, 8], strides = [1, 1]} : vector<8x32xf32> to vector<8x8xf32>
    %339 = arith.truncf %338 : vector<8x8xf32> to vector<8x8xbf16>
    %cst_129 = arith.constant dense<0.000000e+00> : vector<8x8xf32>
    %340 = tpu.matmul %335, %337, %cst_129 {dimension_numbers = #tpu.dot_dimension_numbers<[1], [1], [0], [0], [0, 0, 1, 0], [], []>} : vector<8x8xbf16>, vector<8x8xbf16>, vector<8x8xf32> -> vector<8x8xf32>
    %cst_130 = arith.constant 0.353553385 : f32
    %341 = vector.broadcast %cst_130 : f32 to vector<8x8xf32>
    %342 = arith.mulf %340, %341 : vector<8x8xf32>
    %cst_131 = arith.constant dense<0xFF800000> : vector<8xf32>
    %343 = vector.multi_reduction <maximumf>, %342, %cst_131 [1] : vector<8x8xf32> to vector<8xf32>
    %344 = vector.shape_cast %343 : vector<8xf32> to vector<8x1xf32>
    %345 = vector.broadcast %344 : vector<8x1xf32> to vector<8x8xf32>
    %346 = arith.subf %342, %345 : vector<8x8xf32>
    %347 = math.exp %346 : vector<8x8xf32>
    %cst_132 = arith.constant dense<0.000000e+00> : vector<8xf32>
    %348 = vector.multi_reduction <add>, %347, %cst_132 [1] : vector<8x8xf32> to vector<8xf32>
    %349 = vector.shape_cast %348 : vector<8xf32> to vector<8x1xf32>
    %350 = vector.broadcast %349 : vector<8x1xf32> to vector<8x8xf32>
    %351 = arith.divf %347, %350 : vector<8x8xf32>
    %352 = arith.truncf %351 : vector<8x8xf32> to vector<8x8xbf16>
    %cst_133 = arith.constant dense<0.000000e+00> : vector<8x8xf32>
    %353 = tpu.matmul %352, %339, %cst_133 {dimension_numbers = #tpu.dot_dimension_numbers<[1], [0], [0], [1], [0, 0, 1, 1], [], []>} : vector<8x8xbf16>, vector<8x8xbf16>, vector<8x8xf32> -> vector<8x8xf32>
    %354 = vector.extract_strided_slice %301 {offsets = [0, 16], sizes = [8, 8], strides = [1, 1]} : vector<8x32xf32> to vector<8x8xf32>
    %355 = arith.truncf %354 : vector<8x8xf32> to vector<8x8xbf16>
    %356 = vector.extract_strided_slice %308 {offsets = [0, 16], sizes = [8, 8], strides = [1, 1]} : vector<8x32xf32> to vector<8x8xf32>
    %357 = arith.truncf %356 : vector<8x8xf32> to vector<8x8xbf16>
    %358 = vector.extract_strided_slice %309 {offsets = [0, 16], sizes = [8, 8], strides = [1, 1]} : vector<8x32xf32> to vector<8x8xf32>
    %359 = arith.truncf %358 : vector<8x8xf32> to vector<8x8xbf16>
    %cst_134 = arith.constant dense<0.000000e+00> : vector<8x8xf32>
    %360 = tpu.matmul %355, %357, %cst_134 {dimension_numbers = #tpu.dot_dimension_numbers<[1], [1], [0], [0], [0, 0, 1, 0], [], []>} : vector<8x8xbf16>, vector<8x8xbf16>, vector<8x8xf32> -> vector<8x8xf32>
    %cst_135 = arith.constant 0.353553385 : f32
    %361 = vector.broadcast %cst_135 : f32 to vector<8x8xf32>
    %362 = arith.mulf %360, %361 : vector<8x8xf32>
    %cst_136 = arith.constant dense<0xFF800000> : vector<8xf32>
    %363 = vector.multi_reduction <maximumf>, %362, %cst_136 [1] : vector<8x8xf32> to vector<8xf32>
    %364 = vector.shape_cast %363 : vector<8xf32> to vector<8x1xf32>
    %365 = vector.broadcast %364 : vector<8x1xf32> to vector<8x8xf32>
    %366 = arith.subf %362, %365 : vector<8x8xf32>
    %367 = math.exp %366 : vector<8x8xf32>
    %cst_137 = arith.constant dense<0.000000e+00> : vector<8xf32>
    %368 = vector.multi_reduction <add>, %367, %cst_137 [1] : vector<8x8xf32> to vector<8xf32>
    %369 = vector.shape_cast %368 : vector<8xf32> to vector<8x1xf32>
    %370 = vector.broadcast %369 : vector<8x1xf32> to vector<8x8xf32>
    %371 = arith.divf %367, %370 : vector<8x8xf32>
    %372 = arith.truncf %371 : vector<8x8xf32> to vector<8x8xbf16>
    %cst_138 = arith.constant dense<0.000000e+00> : vector<8x8xf32>
    %373 = tpu.matmul %372, %359, %cst_138 {dimension_numbers = #tpu.dot_dimension_numbers<[1], [0], [0], [1], [0, 0, 1, 1], [], []>} : vector<8x8xbf16>, vector<8x8xbf16>, vector<8x8xf32> -> vector<8x8xf32>
    %374 = vector.extract_strided_slice %301 {offsets = [0, 24], sizes = [8, 8], strides = [1, 1]} : vector<8x32xf32> to vector<8x8xf32>
    %375 = arith.truncf %374 : vector<8x8xf32> to vector<8x8xbf16>
    %376 = vector.extract_strided_slice %308 {offsets = [0, 24], sizes = [8, 8], strides = [1, 1]} : vector<8x32xf32> to vector<8x8xf32>
    %377 = arith.truncf %376 : vector<8x8xf32> to vector<8x8xbf16>
    %378 = vector.extract_strided_slice %309 {offsets = [0, 24], sizes = [8, 8], strides = [1, 1]} : vector<8x32xf32> to vector<8x8xf32>
    %379 = arith.truncf %378 : vector<8x8xf32> to vector<8x8xbf16>
    %cst_139 = arith.constant dense<0.000000e+00> : vector<8x8xf32>
    %380 = tpu.matmul %375, %377, %cst_139 {dimension_numbers = #tpu.dot_dimension_numbers<[1], [1], [0], [0], [0, 0, 1, 0], [], []>} : vector<8x8xbf16>, vector<8x8xbf16>, vector<8x8xf32> -> vector<8x8xf32>
    %cst_140 = arith.constant 0.353553385 : f32
    %381 = vector.broadcast %cst_140 : f32 to vector<8x8xf32>
    %382 = arith.mulf %380, %381 : vector<8x8xf32>
    %cst_141 = arith.constant dense<0xFF800000> : vector<8xf32>
    %383 = vector.multi_reduction <maximumf>, %382, %cst_141 [1] : vector<8x8xf32> to vector<8xf32>
    %384 = vector.shape_cast %383 : vector<8xf32> to vector<8x1xf32>
    %385 = vector.broadcast %384 : vector<8x1xf32> to vector<8x8xf32>
    %386 = arith.subf %382, %385 : vector<8x8xf32>
    %387 = math.exp %386 : vector<8x8xf32>
    %cst_142 = arith.constant dense<0.000000e+00> : vector<8xf32>
    %388 = vector.multi_reduction <add>, %387, %cst_142 [1] : vector<8x8xf32> to vector<8xf32>
    %389 = vector.shape_cast %388 : vector<8xf32> to vector<8x1xf32>
    %390 = vector.broadcast %389 : vector<8x1xf32> to vector<8x8xf32>
    %391 = arith.divf %387, %390 : vector<8x8xf32>
    %392 = arith.truncf %391 : vector<8x8xf32> to vector<8x8xbf16>
    %cst_143 = arith.constant dense<0.000000e+00> : vector<8x8xf32>
    %393 = tpu.matmul %392, %379, %cst_143 {dimension_numbers = #tpu.dot_dimension_numbers<[1], [0], [0], [1], [0, 0, 1, 1], [], []>} : vector<8x8xbf16>, vector<8x8xbf16>, vector<8x8xf32> -> vector<8x8xf32>
    %394 = tpu.concatenate %333, %353, %373, %393 in 1 : vector<8x8xf32>, vector<8x8xf32>, vector<8x8xf32>, vector<8x8xf32> -> vector<8x32xf32>
    %395 = arith.truncf %394 : vector<8x32xf32> to vector<8x32xbf16>
    %cst_144 = arith.constant dense<0.000000e+00> : vector<8x32xf32>
    %396 = tpu.matmul %395, %310, %cst_144 {dimension_numbers = #tpu.dot_dimension_numbers<[1], [0], [0], [1], [0, 0, 1, 1], [], []>} : vector<8x32xbf16>, vector<32x32xbf16>, vector<8x32xf32> -> vector<8x32xf32>
    %397 = vector.broadcast %311 : vector<1x32xf32> to vector<8x32xf32>
    %398 = arith.addf %396, %397 : vector<8x32xf32>
    %399 = arith.addf %398, %295 : vector<8x32xf32>
    %cst_145 = arith.constant dense<0.000000e+00> : vector<8xf32>
    %400 = vector.multi_reduction <add>, %399, %cst_145 [1] : vector<8x32xf32> to vector<8xf32>
    %401 = vector.shape_cast %400 : vector<8xf32> to vector<8x1xf32>
    %cst_146 = arith.constant 3.200000e+01 : f32
    %402 = vector.broadcast %cst_146 : f32 to vector<8x1xf32>
    %403 = arith.divf %401, %402 : vector<8x1xf32>
    %404 = vector.broadcast %403 : vector<8x1xf32> to vector<8x32xf32>
    %405 = arith.subf %399, %404 : vector<8x32xf32>
    %406 = arith.mulf %405, %405 : vector<8x32xf32>
    %cst_147 = arith.constant dense<0.000000e+00> : vector<8xf32>
    %407 = vector.multi_reduction <add>, %406, %cst_147 [1] : vector<8x32xf32> to vector<8xf32>
    %408 = vector.shape_cast %407 : vector<8xf32> to vector<8x1xf32>
    %cst_148 = arith.constant 3.200000e+01 : f32
    %409 = vector.broadcast %cst_148 : f32 to vector<8x1xf32>
    %410 = arith.divf %408, %409 : vector<8x1xf32>
    %411 = vector.broadcast %403 : vector<8x1xf32> to vector<8x32xf32>
    %412 = arith.subf %399, %411 : vector<8x32xf32>
    %cst_149 = arith.constant 9.99999974E-6 : f32
    %413 = vector.broadcast %cst_149 : f32 to vector<8x1xf32>
    %414 = arith.addf %410, %413 : vector<8x1xf32>
    %415 = math.rsqrt %414 : vector<8x1xf32>
    %416 = vector.broadcast %415 : vector<8x1xf32> to vector<8x32xf32>
    %417 = arith.mulf %412, %416 : vector<8x32xf32>
    %418 = vector.broadcast %312 : vector<1x32xf32> to vector<8x32xf32>
    %419 = arith.mulf %417, %418 : vector<8x32xf32>
    %420 = vector.broadcast %313 : vector<1x32xf32> to vector<8x32xf32>
    %421 = arith.addf %419, %420 : vector<8x32xf32>
    %c0_150 = arith.constant 0 : index
    %c0_151 = arith.constant 0 : index
    %422 = vector.load %arg29[%c0_150, %c0_151] : memref<32x128xbf16, #tpu.memory_space<vmem>>, vector<32x128xbf16>
    %c0_152 = arith.constant 0 : index
    %c0_153 = arith.constant 0 : index
    %423 = vector.load %arg30[%c0_152, %c0_153] : memref<1x128xf32, #tpu.memory_space<vmem>>, vector<1x128xf32>
    %c0_154 = arith.constant 0 : index
    %c0_155 = arith.constant 0 : index
    %424 = vector.load %arg31[%c0_154, %c0_155] : memref<128x32xbf16, #tpu.memory_space<vmem>>, vector<128x32xbf16>
    %c0_156 = arith.constant 0 : index
    %c0_157 = arith.constant 0 : index
    %425 = vector.load %arg32[%c0_156, %c0_157] : memref<1x32xf32, #tpu.memory_space<vmem>>, vector<1x32xf32>
    %c0_158 = arith.constant 0 : index
    %c0_159 = arith.constant 0 : index
    %426 = vector.load %arg33[%c0_158, %c0_159] : memref<1x32xf32, #tpu.memory_space<vmem>>, vector<1x32xf32>
    %c0_160 = arith.constant 0 : index
    %c0_161 = arith.constant 0 : index
    %427 = vector.load %arg34[%c0_160, %c0_161] : memref<1x32xf32, #tpu.memory_space<vmem>>, vector<1x32xf32>
    %428 = arith.truncf %421 : vector<8x32xf32> to vector<8x32xbf16>
    %cst_162 = arith.constant dense<0.000000e+00> : vector<8x128xf32>
    %429 = tpu.matmul %428, %422, %cst_162 {dimension_numbers = #tpu.dot_dimension_numbers<[1], [0], [0], [1], [0, 0, 1, 1], [], []>} : vector<8x32xbf16>, vector<32x128xbf16>, vector<8x128xf32> -> vector<8x128xf32>
    %430 = vector.broadcast %423 : vector<1x128xf32> to vector<8x128xf32>
    %431 = arith.addf %429, %430 : vector<8x128xf32>
    %cst_163 = arith.constant 0.000000e+00 : f32
    %432 = vector.broadcast %cst_163 : f32 to vector<8x128xf32>
    %433 = arith.maximumf %431, %432 : vector<8x128xf32>
    %434 = arith.truncf %433 : vector<8x128xf32> to vector<8x128xbf16>
    %cst_164 = arith.constant dense<0.000000e+00> : vector<8x32xf32>
    %435 = tpu.matmul %434, %424, %cst_164 {dimension_numbers = #tpu.dot_dimension_numbers<[1], [0], [0], [1], [0, 0, 1, 1], [], []>} : vector<8x128xbf16>, vector<128x32xbf16>, vector<8x32xf32> -> vector<8x32xf32>
    %436 = vector.broadcast %425 : vector<1x32xf32> to vector<8x32xf32>
    %437 = arith.addf %435, %436 : vector<8x32xf32>
    %438 = arith.addf %437, %421 : vector<8x32xf32>
    %cst_165 = arith.constant dense<0.000000e+00> : vector<8xf32>
    %439 = vector.multi_reduction <add>, %438, %cst_165 [1] : vector<8x32xf32> to vector<8xf32>
    %440 = vector.shape_cast %439 : vector<8xf32> to vector<8x1xf32>
    %cst_166 = arith.constant 3.200000e+01 : f32
    %441 = vector.broadcast %cst_166 : f32 to vector<8x1xf32>
    %442 = arith.divf %440, %441 : vector<8x1xf32>
    %443 = vector.broadcast %442 : vector<8x1xf32> to vector<8x32xf32>
    %444 = arith.subf %438, %443 : vector<8x32xf32>
    %445 = arith.mulf %444, %444 : vector<8x32xf32>
    %cst_167 = arith.constant dense<0.000000e+00> : vector<8xf32>
    %446 = vector.multi_reduction <add>, %445, %cst_167 [1] : vector<8x32xf32> to vector<8xf32>
    %447 = vector.shape_cast %446 : vector<8xf32> to vector<8x1xf32>
    %cst_168 = arith.constant 3.200000e+01 : f32
    %448 = vector.broadcast %cst_168 : f32 to vector<8x1xf32>
    %449 = arith.divf %447, %448 : vector<8x1xf32>
    %450 = vector.broadcast %442 : vector<8x1xf32> to vector<8x32xf32>
    %451 = arith.subf %438, %450 : vector<8x32xf32>
    %cst_169 = arith.constant 9.99999974E-6 : f32
    %452 = vector.broadcast %cst_169 : f32 to vector<8x1xf32>
    %453 = arith.addf %449, %452 : vector<8x1xf32>
    %454 = math.rsqrt %453 : vector<8x1xf32>
    %455 = vector.broadcast %454 : vector<8x1xf32> to vector<8x32xf32>
    %456 = arith.mulf %451, %455 : vector<8x32xf32>
    %457 = vector.broadcast %426 : vector<1x32xf32> to vector<8x32xf32>
    %458 = arith.mulf %456, %457 : vector<8x32xf32>
    %459 = vector.broadcast %427 : vector<1x32xf32> to vector<8x32xf32>
    %460 = arith.addf %458, %459 : vector<8x32xf32>
    %461 = arith.truncf %460 : vector<8x32xf32> to vector<8x32xbf16>
    %c0_170 = arith.constant 0 : index
    %c0_171 = arith.constant 0 : index
    %462 = vector.load %arg35[%c0_170, %c0_171] : memref<32x64xbf16, #tpu.memory_space<vmem>>, vector<32x64xbf16>
    %cst_172 = arith.constant dense<0.000000e+00> : vector<8x64xf32>
    %463 = tpu.matmul %461, %462, %cst_172 {dimension_numbers = #tpu.dot_dimension_numbers<[1], [0], [0], [1], [0, 0, 1, 1], [], []>} : vector<8x32xbf16>, vector<32x64xbf16>, vector<8x64xf32> -> vector<8x64xf32>
    %c0_173 = arith.constant 0 : index
    %c0_174 = arith.constant 0 : index
    %464 = vector.load %arg36[%c0_173, %c0_174] : memref<1x64xf32, #tpu.memory_space<vmem>>, vector<1x64xf32>
    %465 = vector.broadcast %464 : vector<1x64xf32> to vector<8x64xf32>
    %466 = arith.addf %463, %465 : vector<8x64xf32>
    %cst_175 = arith.constant 0.000000e+00 : f32
    %467 = vector.broadcast %cst_175 : f32 to vector<8x64xf32>
    %468 = arith.maximumf %466, %467 : vector<8x64xf32>
    %cst_176 = arith.constant dense<0xFF800000> : vector<8xf32>
    %469 = vector.multi_reduction <maximumf>, %468, %cst_176 [1] : vector<8x64xf32> to vector<8xf32>
    %470 = vector.shape_cast %469 : vector<8xf32> to vector<8x1xf32>
    %471 = vector.broadcast %470 : vector<8x1xf32> to vector<8x64xf32>
    %472 = arith.subf %468, %471 : vector<8x64xf32>
    %473 = math.exp %472 : vector<8x64xf32>
    %cst_177 = arith.constant dense<0.000000e+00> : vector<8xf32>
    %474 = vector.multi_reduction <add>, %473, %cst_177 [1] : vector<8x64xf32> to vector<8xf32>
    %475 = vector.shape_cast %474 : vector<8xf32> to vector<8x1xf32>
    %476 = vector.broadcast %475 : vector<8x1xf32> to vector<8x64xf32>
    %477 = arith.divf %473, %476 : vector<8x64xf32>
    %c0_178 = arith.constant 0 : index
    %c0_179 = arith.constant 0 : index
    %c0_180 = arith.constant 0 : index
    %478 = vector.load %arg37[%c0_178, %c0_179, %c0_180] : memref<1x8x64xf32, #tpu.memory_space<vmem>>, vector<1x8x64xf32>
    %479 = vector.shape_cast %478 : vector<1x8x64xf32> to vector<8x64xf32>
    %480 = vector.shape_cast %477 : vector<8x64xf32> to vector<1x8x64xf32>
    tpu.vector_store %arg37[%c0_178, %c0_179, %c0_180], %480 {strides = array<i32>} : memref<1x8x64xf32, #tpu.memory_space<vmem>>, vector<1x8x64xf32>,
    return
  }
  func.func @transform_0(%arg0: i32) -> (i32, i32, i32) {
    %c0_i32 = arith.constant 0 : i32
    %c0_i32_0 = arith.constant 0 : i32
    %c0_i32_1 = arith.constant 0 : i32
    return %arg0, %c0_i32, %c0_i32_0 : i32, i32, i32
  }
  func.func @transform_1(%arg0: i32) -> (i32, i32, i32) {
    %c0_i32 = arith.constant 0 : i32
    %c0_i32_0 = arith.constant 0 : i32
    %c0_i32_1 = arith.constant 0 : i32
    return %arg0, %c0_i32, %c0_i32_0 : i32, i32, i32
  }
  func.func @transform_2(%arg0: i32) -> (i32, i32) {
    %c0_i32 = arith.constant 0 : i32
    %c0_i32_0 = arith.constant 0 : i32
    %c0_i32_1 = arith.constant 0 : i32
    return %c0_i32, %c0_i32_0 : i32, i32
  }
  func.func @transform_3(%arg0: i32) -> (i32, i32) {
    %c0_i32 = arith.constant 0 : i32
    %c0_i32_0 = arith.constant 0 : i32
    %c0_i32_1 = arith.constant 0 : i32
    return %c0_i32, %c0_i32_0 : i32, i32
  }
  func.func @transform_4(%arg0: i32) -> (i32, i32) {
    %c0_i32 = arith.constant 0 : i32
    %c0_i32_0 = arith.constant 0 : i32
    %c0_i32_1 = arith.constant 0 : i32
    return %c0_i32, %c0_i32_0 : i32, i32
  }
  func.func @transform_5(%arg0: i32) -> (i32, i32) {
    %c0_i32 = arith.constant 0 : i32
    %c0_i32_0 = arith.constant 0 : i32
    %c0_i32_1 = arith.constant 0 : i32
    return %c0_i32, %c0_i32_0 : i32, i32
  }
  func.func @transform_6(%arg0: i32) -> (i32, i32) {
    %c0_i32 = arith.constant 0 : i32
    %c0_i32_0 = arith.constant 0 : i32
    %c0_i32_1 = arith.constant 0 : i32
    return %c0_i32, %c0_i32_0 : i32, i32
  }
  func.func @transform_7(%arg0: i32) -> (i32, i32) {
    %c0_i32 = arith.constant 0 : i32
    %c0_i32_0 = arith.constant 0 : i32
    %c0_i32_1 = arith.constant 0 : i32
    return %c0_i32, %c0_i32_0 : i32, i32
  }
  func.func @transform_8(%arg0: i32) -> (i32, i32) {
    %c0_i32 = arith.constant 0 : i32
    %c0_i32_0 = arith.constant 0 : i32
    %c0_i32_1 = arith.constant 0 : i32
    return %c0_i32, %c0_i32_0 : i32, i32
  }
  func.func @transform_9(%arg0: i32) -> (i32, i32) {
    %c0_i32 = arith.constant 0 : i32
    %c0_i32_0 = arith.constant 0 : i32
    %c0_i32_1 = arith.constant 0 : i32
    return %c0_i32, %c0_i32_0 : i32, i32
  }
  func.func @transform_10(%arg0: i32) -> (i32, i32) {
    %c0_i32 = arith.constant 0 : i32
    %c0_i32_0 = arith.constant 0 : i32
    %c0_i32_1 = arith.constant 0 : i32
    return %c0_i32, %c0_i32_0 : i32, i32
  }
  func.func @transform_11(%arg0: i32) -> (i32, i32) {
    %c0_i32 = arith.constant 0 : i32
    %c0_i32_0 = arith.constant 0 : i32
    %c0_i32_1 = arith.constant 0 : i32
    return %c0_i32, %c0_i32_0 : i32, i32
  }
  func.func @transform_12(%arg0: i32) -> (i32, i32) {
    %c0_i32 = arith.constant 0 : i32
    %c0_i32_0 = arith.constant 0 : i32
    %c0_i32_1 = arith.constant 0 : i32
    return %c0_i32, %c0_i32_0 : i32, i32
  }
  func.func @transform_13(%arg0: i32) -> (i32, i32) {
    %c0_i32 = arith.constant 0 : i32
    %c0_i32_0 = arith.constant 0 : i32
    %c0_i32_1 = arith.constant 0 : i32
    return %c0_i32, %c0_i32_0 : i32, i32
  }
  func.func @transform_14(%arg0: i32) -> (i32, i32) {
    %c0_i32 = arith.constant 0 : i32
    %c0_i32_0 = arith.constant 0 : i32
    %c0_i32_1 = arith.constant 0 : i32
    return %c0_i32, %c0_i32_0 : i32, i32
  }
  func.func @transform_15(%arg0: i32) -> (i32, i32) {
    %c0_i32 = arith.constant 0 : i32
    %c0_i32_0 = arith.constant 0 : i32
    %c0_i32_1 = arith.constant 0 : i32
    return %c0_i32, %c0_i32_0 : i32, i32
  }
  func.func @transform_16(%arg0: i32) -> (i32, i32) {
    %c0_i32 = arith.constant 0 : i32
    %c0_i32_0 = arith.constant 0 : i32
    %c0_i32_1 = arith.constant 0 : i32
    return %c0_i32, %c0_i32_0 : i32, i32
  }
  func.func @transform_17(%arg0: i32) -> (i32, i32) {
    %c0_i32 = arith.constant 0 : i32
    %c0_i32_0 = arith.constant 0 : i32
    %c0_i32_1 = arith.constant 0 : i32
    return %c0_i32, %c0_i32_0 : i32, i32
  }
  func.func @transform_18(%arg0: i32) -> (i32, i32) {
    %c0_i32 = arith.constant 0 : i32
    %c0_i32_0 = arith.constant 0 : i32
    %c0_i32_1 = arith.constant 0 : i32
    return %c0_i32, %c0_i32_0 : i32, i32
  }
  func.func @transform_19(%arg0: i32) -> (i32, i32) {
    %c0_i32 = arith.constant 0 : i32
    %c0_i32_0 = arith.constant 0 : i32
    %c0_i32_1 = arith.constant 0 : i32
    return %c0_i32, %c0_i32_0 : i32, i32
  }
  func.func @transform_20(%arg0: i32) -> (i32, i32) {
    %c0_i32 = arith.constant 0 : i32
    %c0_i32_0 = arith.constant 0 : i32
    %c0_i32_1 = arith.constant 0 : i32
    return %c0_i32, %c0_i32_0 : i32, i32
  }
  func.func @transform_21(%arg0: i32) -> (i32, i32) {
    %c0_i32 = arith.constant 0 : i32
    %c0_i32_0 = arith.constant 0 : i32
    %c0_i32_1 = arith.constant 0 : i32
    return %c0_i32, %c0_i32_0 : i32, i32
  }
  func.func @transform_22(%arg0: i32) -> (i32, i32) {
    %c0_i32 = arith.constant 0 : i32
    %c0_i32_0 = arith.constant 0 : i32
    %c0_i32_1 = arith.constant 0 : i32
    return %c0_i32, %c0_i32_0 : i32, i32
  }
  func.func @transform_23(%arg0: i32) -> (i32, i32) {
    %c0_i32 = arith.constant 0 : i32
    %c0_i32_0 = arith.constant 0 : i32
    %c0_i32_1 = arith.constant 0 : i32
    return %c0_i32, %c0_i32_0 : i32, i32
  }
  func.func @transform_24(%arg0: i32) -> (i32, i32) {
    %c0_i32 = arith.constant 0 : i32
    %c0_i32_0 = arith.constant 0 : i32
    %c0_i32_1 = arith.constant 0 : i32
    return %c0_i32, %c0_i32_0 : i32, i32
  }
  func.func @transform_25(%arg0: i32) -> (i32, i32) {
    %c0_i32 = arith.constant 0 : i32
    %c0_i32_0 = arith.constant 0 : i32
    %c0_i32_1 = arith.constant 0 : i32
    return %c0_i32, %c0_i32_0 : i32, i32
  }
  func.func @transform_26(%arg0: i32) -> (i32, i32) {
    %c0_i32 = arith.constant 0 : i32
    %c0_i32_0 = arith.constant 0 : i32
    %c0_i32_1 = arith.constant 0 : i32
    return %c0_i32, %c0_i32_0 : i32, i32
  }
  func.func @transform_27(%arg0: i32) -> (i32, i32) {
    %c0_i32 = arith.constant 0 : i32
    %c0_i32_0 = arith.constant 0 : i32
    %c0_i32_1 = arith.constant 0 : i32
    return %c0_i32, %c0_i32_0 : i32, i32
  }
  func.func @transform_28(%arg0: i32) -> (i32, i32) {
    %c0_i32 = arith.constant 0 : i32
    %c0_i32_0 = arith.constant 0 : i32
    %c0_i32_1 = arith.constant 0 : i32
    return %c0_i32, %c0_i32_0 : i32, i32
  }
  func.func @transform_29(%arg0: i32) -> (i32, i32) {
    %c0_i32 = arith.constant 0 : i32
    %c0_i32_0 = arith.constant 0 : i32
    %c0_i32_1 = arith.constant 0 : i32
    return %c0_i32, %c0_i32_0 : i32, i32
  }
  func.func @transform_30(%arg0: i32) -> (i32, i32) {
    %c0_i32 = arith.constant 0 : i32
    %c0_i32_0 = arith.constant 0 : i32
    %c0_i32_1 = arith.constant 0 : i32
    return %c0_i32, %c0_i32_0 : i32, i32
  }
  func.func @transform_31(%arg0: i32) -> (i32, i32) {
    %c0_i32 = arith.constant 0 : i32
    %c0_i32_0 = arith.constant 0 : i32
    %c0_i32_1 = arith.constant 0 : i32
    return %c0_i32, %c0_i32_0 : i32, i32
  }
  func.func @transform_32(%arg0: i32) -> (i32, i32) {
    %c0_i32 = arith.constant 0 : i32
    %c0_i32_0 = arith.constant 0 : i32
    %c0_i32_1 = arith.constant 0 : i32
    return %c0_i32, %c0_i32_0 : i32, i32
  }
  func.func @transform_33(%arg0: i32) -> (i32, i32) {
    %c0_i32 = arith.constant 0 : i32
    %c0_i32_0 = arith.constant 0 : i32
    %c0_i32_1 = arith.constant 0 : i32
    return %c0_i32, %c0_i32_0 : i32, i32
  }
  func.func @transform_34(%arg0: i32) -> (i32, i32) {
    %c0_i32 = arith.constant 0 : i32
    %c0_i32_0 = arith.constant 0 : i32
    %c0_i32_1 = arith.constant 0 : i32
    return %c0_i32, %c0_i32_0 : i32, i32
  }
  func.func @transform_35(%arg0: i32) -> (i32, i32) {
    %c0_i32 = arith.constant 0 : i32
    %c0_i32_0 = arith.constant 0 : i32
    %c0_i32_1 = arith.constant 0 : i32
    return %c0_i32, %c0_i32_0 : i32, i32
  }
  func.func @transform_36(%arg0: i32) -> (i32, i32, i32) {
    %c0_i32 = arith.constant 0 : i32
    %c0_i32_0 = arith.constant 0 : i32
    %c0_i32_1 = arith.constant 0 : i32
    return %arg0, %c0_i32, %c0_i32_0 : i32, i32, i32
  }
}

</mosaic_0001>

<llo_original>
// kernel: transformer_forward.1
$region0: #{transformer_forward.1}
  #allocation0 [shape = 'u32[]', space=smem, size = 0x4, offset = 0x4, fixed_abs, tag = 'smem constant byte address 0x4 - core index']
  #allocation1 [shape = 'u32[72,128]{1,0:T(1,128)}', space=vmem, size = 0x9000, scoped, tag = 'internal scratch']
  %s0 = inlined_call_operand.smem [shape: u32[37], index: -1, kind: input, shape index: {}]
  %s1 = sld [smem:[%s0]]
  %s2 = scalar_lea.smem %s0, 1
  %s3 = sld [smem:[%s2]]
  %s4 = scalar_lea.smem %s0, 2
  %s5 = sld [smem:[%s4]]
  %s6 = scalar_lea.smem %s0, 3
  %s7 = sld [smem:[%s6]]
  %s8 = scalar_lea.smem %s0, 4
  %s9 = sld [smem:[%s8]]
  %s10 = scalar_lea.smem %s0, 5
  %s11 = sld [smem:[%s10]]
  %s12 = scalar_lea.smem %s0, 6
  %s13 = sld [smem:[%s12]]
  %s14 = scalar_lea.smem %s0, 7
  %s15 = sld [smem:[%s14]]
  %s16 = scalar_lea.smem %s0, 8
  %s17 = sld [smem:[%s16]]
  %s18 = scalar_lea.smem %s0, 9
  %s19 = sld [smem:[%s18]]
  %s20 = scalar_lea.smem %s0, 10
  %s21 = sld [smem:[%s20]]
  %s22 = scalar_lea.smem %s0, 11
  %s23 = sld [smem:[%s22]]
  %s24 = scalar_lea.smem %s0, 12
  %s25 = sld [smem:[%s24]]
  %s26 = scalar_lea.smem %s0, 13
  %s27 = sld [smem:[%s26]]
  %s28 = scalar_lea.smem %s0, 14
  %s29 = sld [smem:[%s28]]
  %s30 = scalar_lea.smem %s0, 15
  %s31 = sld [smem:[%s30]]
  %s32 = scalar_lea.smem %s0, 16
  %s33 = sld [smem:[%s32]]
  %s34 = scalar_lea.smem %s0, 17
  %s35 = sld [smem:[%s34]]
  %s36 = scalar_lea.smem %s0, 18
  %s37 = sld [smem:[%s36]]
  %s38 = scalar_lea.smem %s0, 19
  %s39 = sld [smem:[%s38]]
  %s40 = scalar_lea.smem %s0, 20
  %s41 = sld [smem:[%s40]]
  %s42 = scalar_lea.smem %s0, 21
  %s43 = sld [smem:[%s42]]
  %s44 = scalar_lea.smem %s0, 22
  %s45 = sld [smem:[%s44]]
  %s46 = scalar_lea.smem %s0, 23
  %s47 = sld [smem:[%s46]]
  %s48 = scalar_lea.smem %s0, 24
  %s49 = sld [smem:[%s48]]
  %s50 = scalar_lea.smem %s0, 25
  %s51 = sld [smem:[%s50]]
  %s52 = scalar_lea.smem %s0, 26
  %s53 = sld [smem:[%s52]]
  %s54 = scalar_lea.smem %s0, 27
  %s55 = sld [smem:[%s54]]
  %s56 = scalar_lea.smem %s0, 28
  %s57 = sld [smem:[%s56]]
  %s58 = scalar_lea.smem %s0, 29
  %s59 = sld [smem:[%s58]]
  %s60 = scalar_lea.smem %s0, 30
  %s61 = sld [smem:[%s60]]
  %s62 = scalar_lea.smem %s0, 31
  %s63 = sld [smem:[%s62]]
  %s64 = scalar_lea.smem %s0, 32
  %s65 = sld [smem:[%s64]]
  %s66 = scalar_lea.smem %s0, 33
  %s67 = sld [smem:[%s66]]
  %s68 = scalar_lea.smem %s0, 34
  %s69 = sld [smem:[%s68]]
  %s70 = scalar_lea.smem %s0, 35
  %s71 = sld [smem:[%s70]]
  %s72 = scalar_lea.smem %s0, 36
  %s73 = sld [smem:[%s72]]
  %s74 = sld [smem:[#allocation0]]
  $region237: #{transformer_forward.1} parent=0
    _
  %s76 = ssub.s32 1, %s74
  %s77 = scalar_select 0, %s76, %s74
  $region1: #{transformer_forward.1} parent=0
    #allocation2 [shape = 'u8[512]{0}', space=vmem, size = 0x400, scoped, tag = 'input window, operand 15, single buffered']
    #allocation3 [shape = 's32[2]{0}', space=sflag, size = 0x8, scoped, tag = 'scoped memory for transformer_forward.1']
    #allocation4 [shape = 's32[2]{0}', space=sflag, size = 0x8, scoped, tag = 'scoped memory for transformer_forward.1']
    #allocation5 [shape = 'u8[512]{0}', space=vmem, size = 0x400, scoped, tag = 'input window, operand 17, single buffered']
    #allocation6 [shape = 's32[1]{0}', space=sflag, size = 0x4, scoped, tag = 'scoped memory for transformer_forward.1']
    #allocation7 [shape = 'u8[512]{0}', space=vmem, size = 0x400, scoped, tag = 'input window, operand 18, single buffered']
    #allocation8 [shape = 'u8[512]{0}', space=vmem, size = 0x400, scoped, tag = 'input window, operand 19, single buffered']
    #allocation9 [shape = 's32[1]{0}', space=sflag, size = 0x4, scoped, tag = 'scoped memory for transformer_forward.1']
    #allocation10 [shape = 'u8[512]{0}', space=vmem, size = 0x400, scoped, tag = 'input window, operand 21, single buffered']
    #allocation11 [shape = 'u8[512]{0}', space=vmem, size = 0x400, scoped, tag = 'input window, operand 23, single buffered']
    #allocation12 [shape = 's32[1]{0}', space=sflag, size = 0x4, scoped, tag = 'scoped memory for transformer_forward.1']
    #allocation13 [shape = 'u8[8192]{0}', space=vmem, size = 0x2000, scoped, tag = 'input window, operand 24, single buffered']
    #allocation14 [shape = 'u8[512]{0}', space=vmem, size = 0x400, scoped, tag = 'input window, operand 25, single buffered']
    #allocation15 [shape = 's32[1]{0}', space=sflag, size = 0x4, scoped, tag = 'scoped memory for transformer_forward.1']
    #allocation16 [shape = 'u8[512]{0}', space=vmem, size = 0x400, scoped, tag = 'input window, operand 26, single buffered']
    #allocation17 [shape = 'u8[512]{0}', space=vmem, size = 0x400, scoped, tag = 'input window, operand 27, single buffered']
    #allocation18 [shape = 's32[1]{0}', space=sflag, size = 0x4, scoped, tag = 'scoped memory for transformer_forward.1']
    #allocation19 [shape = 'u8[8192]{0}', space=vmem, size = 0x2000, scoped, tag = 'input window, operand 28, single buffered']
    #allocation20 [shape = 'u8[512]{0}', space=vmem, size = 0x400, scoped, tag = 'input window, operand 29, single buffered']
    #allocation21 [shape = 's32[1]{0}', space=sflag, size = 0x4, scoped, tag = 'scoped memory for transformer_forward.1']
    #allocation22 [shape = 'u8[512]{0}', space=vmem, size = 0x400, scoped, tag = 'input window, operand 31, single buffered']
    #allocation23 [shape = 'u8[512]{0}', space=vmem, size = 0x400, scoped, tag = 'input window, operand 32, single buffered']
    #allocation24 [shape = 's32[1]{0}', space=sflag, size = 0x4, scoped, tag = 'scoped memory for transformer_forward.1']
    #allocation25 [shape = 'u8[512]{0}', space=vmem, size = 0x400, scoped, tag = 'input window, operand 33, single buffered']
    #allocation26 [shape = 'u8[8192]{0}', space=vmem, size = 0x2000, scoped, tag = 'output window, operand 0']
    %78 = vsyncpa [#allocation3], 0
    %79 = vsyncpa [#allocation6], 0
    %80 = vsyncpa [#allocation9], 0
    %81 = vsyncpa [#allocation12], 0
    %82 = vsyncpa [#allocation15], 0
    %83 = vsyncpa [#allocation18], 0
    %84 = vsyncpa [#allocation21], 0
    %85 = vsyncpa [#allocation24], 0
    %86 = vsyncpa [#allocation4], 0
    %s87 = scalar_lea.sflag [#allocation4], 1
    %88 = vsyncpa %s87, 0
    loop: start=0, step=1, limit=4
    $region2: #{transformer_forward.1} parent=1 // loop_pre_header
      _
    $region3: #{transformer_forward.1} parent=1 // loop_header
      %s90 = sphi 0, %s94
      %p91 = scmp.ge.s32.totalorder %s90, 4
      %s100 = sphi 0, %s102
      %s103 = sphi 0, %s100
      %s104 = sphi 0, %s103
      %s120 = sphi 0, %s104
      %s126 = sphi 0, %s128
      %s129 = sphi 0, %s126
      %s130 = sphi 0, %s129
      %s146 = sphi 0, %s130
      %s150 = sphi 0, %s150
      %s152 = sphi 0, %s150
      %s153 = sphi 0, %s152
      %s167 = sphi 0, %s153
      %s171 = sphi 0, %s171
      %s173 = sphi 0, %s171
      %s174 = sphi 0, %s173
      %s188 = sphi 0, %s174
      %s192 = sphi 0, %s192
      %s194 = sphi 0, %s192
      %s195 = sphi 0, %s194
      %s209 = sphi 0, %s195
      %s213 = sphi 0, %s213
      %s215 = sphi 0, %s213
      %s216 = sphi 0, %s215
      %s230 = sphi 0, %s216
      %s234 = sphi 0, %s234
      %s236 = sphi 0, %s234
      %s237 = sphi 0, %s236
      %s251 = sphi 0, %s237
      %s255 = sphi 0, %s255
      %s257 = sphi 0, %s255
      %s258 = sphi 0, %s257
      %s272 = sphi 0, %s258
      %s276 = sphi 0, %s276
      %s278 = sphi 0, %s276
      %s279 = sphi 0, %s278
      %s293 = sphi 0, %s279
      %s297 = sphi 0, %s297
      %s299 = sphi 0, %s297
      %s300 = sphi 0, %s299
      %s314 = sphi 0, %s300
      %s318 = sphi 0, %s318
      %s320 = sphi 0, %s318
      %s321 = sphi 0, %s320
      %s335 = sphi 0, %s321
      %s339 = sphi 0, %s339
      %s341 = sphi 0, %s339
      %s342 = sphi 0, %s341
      %s356 = sphi 0, %s342
      %s360 = sphi 0, %s360
      %s362 = sphi 0, %s360
      %s363 = sphi 0, %s362
      %s377 = sphi 0, %s363
      %s381 = sphi 0, %s381
      %s383 = sphi 0, %s381
      %s384 = sphi 0, %s383
      %s398 = sphi 0, %s384
      %s402 = sphi 0, %s402
      %s404 = sphi 0, %s402
      %s405 = sphi 0, %s404
      %s419 = sphi 0, %s405
      %s423 = sphi 0, %s423
      %s425 = sphi 0, %s423
      %s426 = sphi 0, %s425
      %s440 = sphi 0, %s426
      %s444 = sphi 0, %s444
      %s446 = sphi 0, %s444
      %s447 = sphi 0, %s446
      %s461 = sphi 0, %s447
      %s465 = sphi 0, %s465
      %s467 = sphi 0, %s465
      %s468 = sphi 0, %s467
      %s482 = sphi 0, %s468
      %s486 = sphi 0, %s486
      %s488 = sphi 0, %s486
      %s489 = sphi 0, %s488
      %s503 = sphi 0, %s489
      %s507 = sphi 0, %s507
      %s509 = sphi 0, %s507
      %s510 = sphi 0, %s509
      %s524 = sphi 0, %s510
      %s528 = sphi 0, %s528
      %s530 = sphi 0, %s528
      %s531 = sphi 0, %s530
      %s545 = sphi 0, %s531
      %s549 = sphi 0, %s549
      %s551 = sphi 0, %s549
      %s552 = sphi 0, %s551
      %s566 = sphi 0, %s552
      %s570 = sphi 0, %s570
      %s572 = sphi 0, %s570
      %s573 = sphi 0, %s572
      %s587 = sphi 0, %s573
      %s591 = sphi 0, %s591
      %s593 = sphi 0, %s591
      %s594 = sphi 0, %s593
      %s608 = sphi 0, %s594
      %s612 = sphi 0, %s612
      %s614 = sphi 0, %s612
      %s615 = sphi 0, %s614
      %s629 = sphi 0, %s615
      %s633 = sphi 0, %s633
      %s635 = sphi 0, %s633
      %s636 = sphi 0, %s635
      %s650 = sphi 0, %s636
      %s654 = sphi 0, %s654
      %s656 = sphi 0, %s654
      %s657 = sphi 0, %s656
      %s671 = sphi 0, %s657
      %s675 = sphi 0, %s675
      %s677 = sphi 0, %s675
      %s678 = sphi 0, %s677
      %s692 = sphi 0, %s678
      %s696 = sphi 0, %s696
      %s698 = sphi 0, %s696
      %s699 = sphi 0, %s698
      %s713 = sphi 0, %s699
      %s717 = sphi 0, %s717
      %s719 = sphi 0, %s717
      %s720 = sphi 0, %s719
      %s734 = sphi 0, %s720
      %s738 = sphi 0, %s738
      %s740 = sphi 0, %s738
      %s741 = sphi 0, %s740
      %s755 = sphi 0, %s741
      %s759 = sphi 0, %s759
      %s761 = sphi 0, %s759
      %s762 = sphi 0, %s761
      %s776 = sphi 0, %s762
      %s780 = sphi 0, %s780
      %s782 = sphi 0, %s780
      %s783 = sphi 0, %s782
      %s797 = sphi 0, %s783
      %s801 = sphi 0, %s801
      %s803 = sphi 0, %s801
      %s804 = sphi 0, %s803
      %s818 = sphi 0, %s804
      %s822 = sphi 0, %s822
      %s824 = sphi 0, %s822
      %s825 = sphi 0, %s824
      %s839 = sphi 0, %s825
      %s843 = sphi 0, %s843
      %s845 = sphi 0, %s843
      %s846 = sphi 0, %s845
      %s860 = sphi 0, %s846
      %s866 = sphi 0, %s868
      %s869 = sphi 0, %s866
      %s870 = sphi 0, %s869
      %s886 = sphi 0, %s870
    $region4: #{transformer_forward.1} parent=1 // loop_header_branch
      %93 = sbr.rel (%p91) target = $region8
    $region5: #{transformer_forward.1} parent=1 // loop_body
      %s95 = ssub.s32 %s90, 1
      %s96 = ssub.s32 %s90, 2
      %s97 = sadd.s32 %s90, 1
      %s98 = ssub.s32 %s90, %s97
      %p99 = scmp.eq.s32.totalorder %s98, 0
      %s101 = sadd.s32 %s100, 1
      %s102 = scalar_select %p99, %s100, %s101
      %p105 = pneg %p99
      %p106 = scmp.eq.s32.totalorder %s90, 1
      %p107 = por %p105, %p106
      %p108 = scmp.ne.s32.totalorder %s100, %s103
      %p109 = scmp.eq.s32.totalorder %s90, 0
      %p110 = por %p108, %p109
      %p111 = scmp.ne.s32.totalorder %s100, %s103
      %p112 = scmp.eq.s32.totalorder %s95, 1
      %p113 = por %p111, %p112
      %p114 = scmp.ne.s32.totalorder %s103, %s104
      %p115 = scmp.eq.s32.totalorder %s95, 0
      %p116 = por %p114, %p115
      %p117 = scmp.ne.s32.totalorder %s103, %s104
      %p118 = scmp.eq.s32.totalorder %s96, 1
      %p119 = por %p117, %p118
      %p121 = scmp.ne.s32.totalorder %s104, %s120
      %p122 = scmp.eq.s32.totalorder %s96, 0
      %p123 = por %p121, %p122
      %s124 = ssub.s32 %s90, %s97
      %p125 = scmp.eq.s32.totalorder %s124, 0
      %s127 = sadd.s32 %s126, 1
      %s128 = scalar_select %p125, %s126, %s127
      %p131 = pneg %p125
      %p132 = scmp.eq.s32.totalorder %s90, 1
      %p133 = por %p131, %p132
      %p134 = scmp.ne.s32.totalorder %s126, %s129
      %p135 = scmp.eq.s32.totalorder %s90, 0
      %p136 = por %p134, %p135
      %p137 = scmp.ne.s32.totalorder %s126, %s129
      %p138 = scmp.eq.s32.totalorder %s95, 1
      %p139 = por %p137, %p138
      %p140 = scmp.ne.s32.totalorder %s129, %s130
      %p141 = scmp.eq.s32.totalorder %s95, 0
      %p142 = por %p140, %p141
      %p143 = scmp.ne.s32.totalorder %s129, %s130
      %p144 = scmp.eq.s32.totalorder %s96, 1
      %p145 = por %p143, %p144
      %p147 = scmp.ne.s32.totalorder %s130, %s146
      %p148 = scmp.eq.s32.totalorder %s96, 0
      %p149 = por %p147, %p148
      %s151 = sadd.s32 %s150, 1
      %p154 = scmp.eq.s32.totalorder %s90, 1
      %p155 = scmp.ne.s32.totalorder %s150, %s152
      %p156 = scmp.eq.s32.totalorder %s90, 0
      %p157 = por %p155, %p156
      %p158 = scmp.ne.s32.totalorder %s150, %s152
      %p159 = scmp.eq.s32.totalorder %s95, 1
      %p160 = por %p158, %p159
      %p161 = scmp.ne.s32.totalorder %s152, %s153
      %p162 = scmp.eq.s32.totalorder %s95, 0
      %p163 = por %p161, %p162
      %p164 = scmp.ne.s32.totalorder %s152, %s153
      %p165 = scmp.eq.s32.totalorder %s96, 1
      %p166 = por %p164, %p165
      %p168 = scmp.ne.s32.totalorder %s153, %s167
      %p169 = scmp.eq.s32.totalorder %s96, 0
      %p170 = por %p168, %p169
      %s172 = sadd.s32 %s171, 1
      %p175 = scmp.eq.s32.totalorder %s90, 1
      %p176 = scmp.ne.s32.totalorder %s171, %s173
      %p177 = scmp.eq.s32.totalorder %s90, 0
      %p178 = por %p176, %p177
      %p179 = scmp.ne.s32.totalorder %s171, %s173
      %p180 = scmp.eq.s32.totalorder %s95, 1
      %p181 = por %p179, %p180
      %p182 = scmp.ne.s32.totalorder %s173, %s174
      %p183 = scmp.eq.s32.totalorder %s95, 0
      %p184 = por %p182, %p183
      %p185 = scmp.ne.s32.totalorder %s173, %s174
      %p186 = scmp.eq.s32.totalorder %s96, 1
      %p187 = por %p185, %p186
      %p189 = scmp.ne.s32.totalorder %s174, %s188
      %p190 = scmp.eq.s32.totalorder %s96, 0
      %p191 = por %p189, %p190
      %s193 = sadd.s32 %s192, 1
      %p196 = scmp.eq.s32.totalorder %s90, 1
      %p197 = scmp.ne.s32.totalorder %s192, %s194
      %p198 = scmp.eq.s32.totalorder %s90, 0
      %p199 = por %p197, %p198
      %p200 = scmp.ne.s32.totalorder %s192, %s194
      %p201 = scmp.eq.s32.totalorder %s95, 1
      %p202 = por %p200, %p201
      %p203 = scmp.ne.s32.totalorder %s194, %s195
      %p204 = scmp.eq.s32.totalorder %s95, 0
      %p205 = por %p203, %p204
      %p206 = scmp.ne.s32.totalorder %s194, %s195
      %p207 = scmp.eq.s32.totalorder %s96, 1
      %p208 = por %p206, %p207
      %p210 = scmp.ne.s32.totalorder %s195, %s209
      %p211 = scmp.eq.s32.totalorder %s96, 0
      %p212 = por %p210, %p211
      %s214 = sadd.s32 %s213, 1
      %p217 = scmp.eq.s32.totalorder %s90, 1
      %p218 = scmp.ne.s32.totalorder %s213, %s215
      %p219 = scmp.eq.s32.totalorder %s90, 0
      %p220 = por %p218, %p219
      %p221 = scmp.ne.s32.totalorder %s213, %s215
      %p222 = scmp.eq.s32.totalorder %s95, 1
      %p223 = por %p221, %p222
      %p224 = scmp.ne.s32.totalorder %s215, %s216
      %p225 = scmp.eq.s32.totalorder %s95, 0
      %p226 = por %p224, %p225
      %p227 = scmp.ne.s32.totalorder %s215, %s216
      %p228 = scmp.eq.s32.totalorder %s96, 1
      %p229 = por %p227, %p228
      %p231 = scmp.ne.s32.totalorder %s216, %s230
      %p232 = scmp.eq.s32.totalorder %s96, 0
      %p233 = por %p231, %p232
      %s235 = sadd.s32 %s234, 1
      %p238 = scmp.eq.s32.totalorder %s90, 1
      %p239 = scmp.ne.s32.totalorder %s234, %s236
      %p240 = scmp.eq.s32.totalorder %s90, 0
      %p241 = por %p239, %p240
      %p242 = scmp.ne.s32.totalorder %s234, %s236
      %p243 = scmp.eq.s32.totalorder %s95, 1
      %p244 = por %p242, %p243
      %p245 = scmp.ne.s32.totalorder %s236, %s237
      %p246 = scmp.eq.s32.totalorder %s95, 0
      %p247 = por %p245, %p246
      %p248 = scmp.ne.s32.totalorder %s236, %s237
      %p249 = scmp.eq.s32.totalorder %s96, 1
      %p250 = por %p248, %p249
      %p252 = scmp.ne.s32.totalorder %s237, %s251
      %p253 = scmp.eq.s32.totalorder %s96, 0
      %p254 = por %p252, %p253
      %s256 = sadd.s32 %s255, 1
      %p259 = scmp.eq.s32.totalorder %s90, 1
      %p260 = scmp.ne.s32.totalorder %s255, %s257
      %p261 = scmp.eq.s32.totalorder %s90, 0
      %p262 = por %p260, %p261
      %p263 = scmp.ne.s32.totalorder %s255, %s257
      %p264 = scmp.eq.s32.totalorder %s95, 1
      %p265 = por %p263, %p264
      %p266 = scmp.ne.s32.totalorder %s257, %s258
      %p267 = scmp.eq.s32.totalorder %s95, 0
      %p268 = por %p266, %p267
      %p269 = scmp.ne.s32.totalorder %s257, %s258
      %p270 = scmp.eq.s32.totalorder %s96, 1
      %p271 = por %p269, %p270
      %p273 = scmp.ne.s32.totalorder %s258, %s272
      %p274 = scmp.eq.s32.totalorder %s96, 0
      %p275 = por %p273, %p274
      %s277 = sadd.s32 %s276, 1
      %p280 = scmp.eq.s32.totalorder %s90, 1
      %p281 = scmp.ne.s32.totalorder %s276, %s278
      %p282 = scmp.eq.s32.totalorder %s90, 0
      %p283 = por %p281, %p282
      %p284 = scmp.ne.s32.totalorder %s276, %s278
      %p285 = scmp.eq.s32.totalorder %s95, 1
      %p286 = por %p284, %p285
      %p287 = scmp.ne.s32.totalorder %s278, %s279
      %p288 = scmp.eq.s32.totalorder %s95, 0
      %p289 = por %p287, %p288
      %p290 = scmp.ne.s32.totalorder %s278, %s279
      %p291 = scmp.eq.s32.totalorder %s96, 1
      %p292 = por %p290, %p291
      %p294 = scmp.ne.s32.totalorder %s279, %s293
      %p295 = scmp.eq.s32.totalorder %s96, 0
      %p296 = por %p294, %p295
      %s298 = sadd.s32 %s297, 1
      %p301 = scmp.eq.s32.totalorder %s90, 1
      %p302 = scmp.ne.s32.totalorder %s297, %s299
      %p303 = scmp.eq.s32.totalorder %s90, 0
      %p304 = por %p302, %p303
      %p305 = scmp.ne.s32.totalorder %s297, %s299
      %p306 = scmp.eq.s32.totalorder %s95, 1
      %p307 = por %p305, %p306
      %p308 = scmp.ne.s32.totalorder %s299, %s300
      %p309 = scmp.eq.s32.totalorder %s95, 0
      %p310 = por %p308, %p309
      %p311 = scmp.ne.s32.totalorder %s299, %s300
      %p312 = scmp.eq.s32.totalorder %s96, 1
      %p313 = por %p311, %p312
      %p315 = scmp.ne.s32.totalorder %s300, %s314
      %p316 = scmp.eq.s32.totalorder %s96, 0
      %p317 = por %p315, %p316
      %s319 = sadd.s32 %s318, 1
      %p322 = scmp.eq.s32.totalorder %s90, 1
      %p323 = scmp.ne.s32.totalorder %s318, %s320
      %p324 = scmp.eq.s32.totalorder %s90, 0
      %p325 = por %p323, %p324
      %p326 = scmp.ne.s32.totalorder %s318, %s320
      %p327 = scmp.eq.s32.totalorder %s95, 1
      %p328 = por %p326, %p327
      %p329 = scmp.ne.s32.totalorder %s320, %s321
      %p330 = scmp.eq.s32.totalorder %s95, 0
      %p331 = por %p329, %p330
      %p332 = scmp.ne.s32.totalorder %s320, %s321
      %p333 = scmp.eq.s32.totalorder %s96, 1
      %p334 = por %p332, %p333
      %p336 = scmp.ne.s32.totalorder %s321, %s335
      %p337 = scmp.eq.s32.totalorder %s96, 0
      %p338 = por %p336, %p337
      %s340 = sadd.s32 %s339, 1
      %p343 = scmp.eq.s32.totalorder %s90, 1
      %p344 = scmp.ne.s32.totalorder %s339, %s341
      %p345 = scmp.eq.s32.totalorder %s90, 0
      %p346 = por %p344, %p345
      %p347 = scmp.ne.s32.totalorder %s339, %s341
      %p348 = scmp.eq.s32.totalorder %s95, 1
      %p349 = por %p347, %p348
      %p350 = scmp.ne.s32.totalorder %s341, %s342
      %p351 = scmp.eq.s32.totalorder %s95, 0
      %p352 = por %p350, %p351
      %p353 = scmp.ne.s32.totalorder %s341, %s342
      %p354 = scmp.eq.s32.totalorder %s96, 1
      %p355 = por %p353, %p354
      %p357 = scmp.ne.s32.totalorder %s342, %s356
      %p358 = scmp.eq.s32.totalorder %s96, 0
      %p359 = por %p357, %p358
      %s361 = sadd.s32 %s360, 1
      %p364 = scmp.eq.s32.totalorder %s90, 1
      %p365 = scmp.ne.s32.totalorder %s360, %s362
      %p366 = scmp.eq.s32.totalorder %s90, 0
      %p367 = por %p365, %p366
      %p368 = scmp.ne.s32.totalorder %s360, %s362
      %p369 = scmp.eq.s32.totalorder %s95, 1
      %p370 = por %p368, %p369
      %p371 = scmp.ne.s32.totalorder %s362, %s363
      %p372 = scmp.eq.s32.totalorder %s95, 0
      %p373 = por %p371, %p372
      %p374 = scmp.ne.s32.totalorder %s362, %s363
      %p375 = scmp.eq.s32.totalorder %s96, 1
      %p376 = por %p374, %p375
      %p378 = scmp.ne.s32.totalorder %s363, %s377
      %p379 = scmp.eq.s32.totalorder %s96, 0
      %p380 = por %p378, %p379
      %s382 = sadd.s32 %s381, 1
      %p385 = scmp.eq.s32.totalorder %s90, 1
      %p386 = scmp.ne.s32.totalorder %s381, %s383
      %p387 = scmp.eq.s32.totalorder %s90, 0
      %p388 = por %p386, %p387
      %p389 = scmp.ne.s32.totalorder %s381, %s383
      %p390 = scmp.eq.s32.totalorder %s95, 1
      %p391 = por %p389, %p390
      %p392 = scmp.ne.s32.totalorder %s383, %s384
      %p393 = scmp.eq.s32.totalorder %s95, 0
      %p394 = por %p392, %p393
      %p395 = scmp.ne.s32.totalorder %s383, %s384
      %p396 = scmp.eq.s32.totalorder %s96, 1
      %p397 = por %p395, %p396
      %p399 = scmp.ne.s32.totalorder %s384, %s398
      %p400 = scmp.eq.s32.totalorder %s96, 0
      %p401 = por %p399, %p400
      %s403 = sadd.s32 %s402, 1
      %p406 = scmp.eq.s32.totalorder %s90, 1
      %p407 = scmp.ne.s32.totalorder %s402, %s404
      %p408 = scmp.eq.s32.totalorder %s90, 0
      %p409 = por %p407, %p408
      %p410 = scmp.ne.s32.totalorder %s402, %s404
      %p411 = scmp.eq.s32.totalorder %s95, 1
      %p412 = por %p410, %p411
      %p413 = scmp.ne.s32.totalorder %s404, %s405
      %p414 = scmp.eq.s32.totalorder %s95, 0
      %p415 = por %p413, %p414
      %p416 = scmp.ne.s32.totalorder %s404, %s405
      %p417 = scmp.eq.s32.totalorder %s96, 1
      %p418 = por %p416, %p417
      %p420 = scmp.ne.s32.totalorder %s405, %s419
      %p421 = scmp.eq.s32.totalorder %s96, 0
      %p422 = por %p420, %p421
      %s424 = sadd.s32 %s423, 1
      %p427 = scmp.eq.s32.totalorder %s90, 1
      %p428 = scmp.ne.s32.totalorder %s423, %s425
      %p429 = scmp.eq.s32.totalorder %s90, 0
      %p430 = por %p428, %p429
      %p431 = scmp.ne.s32.totalorder %s423, %s425
      %p432 = scmp.eq.s32.totalorder %s95, 1
      %p433 = por %p431, %p432
      %p434 = scmp.ne.s32.totalorder %s425, %s426
      %p435 = scmp.eq.s32.totalorder %s95, 0
      %p436 = por %p434, %p435
      %p437 = scmp.ne.s32.totalorder %s425, %s426
      %p438 = scmp.eq.s32.totalorder %s96, 1
      %p439 = por %p437, %p438
      %p441 = scmp.ne.s32.totalorder %s426, %s440
      %p442 = scmp.eq.s32.totalorder %s96, 0
      %p443 = por %p441, %p442
      %s445 = sadd.s32 %s444, 1
      %p448 = scmp.eq.s32.totalorder %s90, 1
      %p449 = scmp.ne.s32.totalorder %s444, %s446
      %p450 = scmp.eq.s32.totalorder %s90, 0
      %p451 = por %p449, %p450
      %p452 = scmp.ne.s32.totalorder %s444, %s446
      %p453 = scmp.eq.s32.totalorder %s95, 1
      %p454 = por %p452, %p453
      %p455 = scmp.ne.s32.totalorder %s446, %s447
      %p456 = scmp.eq.s32.totalorder %s95, 0
      %p457 = por %p455, %p456
      %p458 = scmp.ne.s32.totalorder %s446, %s447
      %p459 = scmp.eq.s32.totalorder %s96, 1
      %p460 = por %p458, %p459
      %p462 = scmp.ne.s32.totalorder %s447, %s461
      %p463 = scmp.eq.s32.totalorder %s96, 0
      %p464 = por %p462, %p463
      %s466 = sadd.s32 %s465, 1
      %p469 = scmp.eq.s32.totalorder %s90, 1
      %p470 = scmp.ne.s32.totalorder %s465, %s467
      %p471 = scmp.eq.s32.totalorder %s90, 0
      %p472 = por %p470, %p471
      %p473 = scmp.ne.s32.totalorder %s465, %s467
      %p474 = scmp.eq.s32.totalorder %s95, 1
      %p475 = por %p473, %p474
      %p476 = scmp.ne.s32.totalorder %s467, %s468
      %p477 = scmp.eq.s32.totalorder %s95, 0
      %p478 = por %p476, %p477
      %p479 = scmp.ne.s32.totalorder %s467, %s468
      %p480 = scmp.eq.s32.totalorder %s96, 1
      %p481 = por %p479, %p480
      %p483 = scmp.ne.s32.totalorder %s468, %s482
      %p484 = scmp.eq.s32.totalorder %s96, 0
      %p485 = por %p483, %p484
      %s487 = sadd.s32 %s486, 1
      %p490 = scmp.eq.s32.totalorder %s90, 1
      %p491 = scmp.ne.s32.totalorder %s486, %s488
      %p492 = scmp.eq.s32.totalorder %s90, 0
      %p493 = por %p491, %p492
      %p494 = scmp.ne.s32.totalorder %s486, %s488
      %p495 = scmp.eq.s32.totalorder %s95, 1
      %p496 = por %p494, %p495
      %p497 = scmp.ne.s32.totalorder %s488, %s489
      %p498 = scmp.eq.s32.totalorder %s95, 0
      %p499 = por %p497, %p498
      %p500 = scmp.ne.s32.totalorder %s488, %s489
      %p501 = scmp.eq.s32.totalorder %s96, 1
      %p502 = por %p500, %p501
      %p504 = scmp.ne.s32.totalorder %s489, %s503
      %p505 = scmp.eq.s32.totalorder %s96, 0
      %p506 = por %p504, %p505
      %s508 = sadd.s32 %s507, 1
      %p511 = scmp.eq.s32.totalorder %s90, 1
      %p512 = scmp.ne.s32.totalorder %s507, %s509
      %p513 = scmp.eq.s32.totalorder %s90, 0
      %p514 = por %p512, %p513
      %p515 = scmp.ne.s32.totalorder %s507, %s509
      %p516 = scmp.eq.s32.totalorder %s95, 1
      %p517 = por %p515, %p516
      %p518 = scmp.ne.s32.totalorder %s509, %s510
      %p519 = scmp.eq.s32.totalorder %s95, 0
      %p520 = por %p518, %p519
      %p521 = scmp.ne.s32.totalorder %s509, %s510
      %p522 = scmp.eq.s32.totalorder %s96, 1
      %p523 = por %p521, %p522
      %p525 = scmp.ne.s32.totalorder %s510, %s524
      %p526 = scmp.eq.s32.totalorder %s96, 0
      %p527 = por %p525, %p526
      %s529 = sadd.s32 %s528, 1
      %p532 = scmp.eq.s32.totalorder %s90, 1
      %p533 = scmp.ne.s32.totalorder %s528, %s530
      %p534 = scmp.eq.s32.totalorder %s90, 0
      %p535 = por %p533, %p534
      %p536 = scmp.ne.s32.totalorder %s528, %s530
      %p537 = scmp.eq.s32.totalorder %s95, 1
      %p538 = por %p536, %p537
      %p539 = scmp.ne.s32.totalorder %s530, %s531
      %p540 = scmp.eq.s32.totalorder %s95, 0
      %p541 = por %p539, %p540
      %p542 = scmp.ne.s32.totalorder %s530, %s531
      %p543 = scmp.eq.s32.totalorder %s96, 1
      %p544 = por %p542, %p543
      %p546 = scmp.ne.s32.totalorder %s531, %s545
      %p547 = scmp.eq.s32.totalorder %s96, 0
      %p548 = por %p546, %p547
      %s550 = sadd.s32 %s549, 1
      %p553 = scmp.eq.s32.totalorder %s90, 1
      %p554 = scmp.ne.s32.totalorder %s549, %s551
      %p555 = scmp.eq.s32.totalorder %s90, 0
      %p556 = por %p554, %p555
      %p557 = scmp.ne.s32.totalorder %s549, %s551
      %p558 = scmp.eq.s32.totalorder %s95, 1
      %p559 = por %p557, %p558
      %p560 = scmp.ne.s32.totalorder %s551, %s552
      %p561 = scmp.eq.s32.totalorder %s95, 0
      %p562 = por %p560, %p561
      %p563 = scmp.ne.s32.totalorder %s551, %s552
      %p564 = scmp.eq.s32.totalorder %s96, 1
      %p565 = por %p563, %p564
      %p567 = scmp.ne.s32.totalorder %s552, %s566
      %p568 = scmp.eq.s32.totalorder %s96, 0
      %p569 = por %p567, %p568
      %s571 = sadd.s32 %s570, 1
      %p574 = scmp.eq.s32.totalorder %s90, 1
      %p575 = scmp.ne.s32.totalorder %s570, %s572
      %p576 = scmp.eq.s32.totalorder %s90, 0
      %p577 = por %p575, %p576
      %p578 = scmp.ne.s32.totalorder %s570, %s572
      %p579 = scmp.eq.s32.totalorder %s95, 1
      %p580 = por %p578, %p579
      %p581 = scmp.ne.s32.totalorder %s572, %s573
      %p582 = scmp.eq.s32.totalorder %s95, 0
      %p583 = por %p581, %p582
      %p584 = scmp.ne.s32.totalorder %s572, %s573
      %p585 = scmp.eq.s32.totalorder %s96, 1
      %p586 = por %p584, %p585
      %p588 = scmp.ne.s32.totalorder %s573, %s587
      %p589 = scmp.eq.s32.totalorder %s96, 0
      %p590 = por %p588, %p589
      %s592 = sadd.s32 %s591, 1
      %p595 = scmp.eq.s32.totalorder %s90, 1
      %p596 = scmp.ne.s32.totalorder %s591, %s593
      %p597 = scmp.eq.s32.totalorder %s90, 0
      %p598 = por %p596, %p597
      %p599 = scmp.ne.s32.totalorder %s591, %s593
      %p600 = scmp.eq.s32.totalorder %s95, 1
      %p601 = por %p599, %p600
      %p602 = scmp.ne.s32.totalorder %s593, %s594
      %p603 = scmp.eq.s32.totalorder %s95, 0
      %p604 = por %p602, %p603
      %p605 = scmp.ne.s32.totalorder %s593, %s594
      %p606 = scmp.eq.s32.totalorder %s96, 1
      %p607 = por %p605, %p606
      %p609 = scmp.ne.s32.totalorder %s594, %s608
      %p610 = scmp.eq.s32.totalorder %s96, 0
      %p611 = por %p609, %p610
      %s613 = sadd.s32 %s612, 1
      %p616 = scmp.eq.s32.totalorder %s90, 1
      %p617 = scmp.ne.s32.totalorder %s612, %s614
      %p618 = scmp.eq.s32.totalorder %s90, 0
      %p619 = por %p617, %p618
      %p620 = scmp.ne.s32.totalorder %s612, %s614
      %p621 = scmp.eq.s32.totalorder %s95, 1
      %p622 = por %p620, %p621
      %p623 = scmp.ne.s32.totalorder %s614, %s615
      %p624 = scmp.eq.s32.totalorder %s95, 0
      %p625 = por %p623, %p624
      %p626 = scmp.ne.s32.totalorder %s614, %s615
      %p627 = scmp.eq.s32.totalorder %s96, 1
      %p628 = por %p626, %p627
      %p630 = scmp.ne.s32.totalorder %s615, %s629
      %p631 = scmp.eq.s32.totalorder %s96, 0
      %p632 = por %p630, %p631
      %s634 = sadd.s32 %s633, 1
      %p637 = scmp.eq.s32.totalorder %s90, 1
      %p638 = scmp.ne.s32.totalorder %s633, %s635
      %p639 = scmp.eq.s32.totalorder %s90, 0
      %p640 = por %p638, %p639
      %p641 = scmp.ne.s32.totalorder %s633, %s635
      %p642 = scmp.eq.s32.totalorder %s95, 1
      %p643 = por %p641, %p642
      %p644 = scmp.ne.s32.totalorder %s635, %s636
      %p645 = scmp.eq.s32.totalorder %s95, 0
      %p646 = por %p644, %p645
      %p647 = scmp.ne.s32.totalorder %s635, %s636
      %p648 = scmp.eq.s32.totalorder %s96, 1
      %p649 = por %p647, %p648
      %p651 = scmp.ne.s32.totalorder %s636, %s650
      %p652 = scmp.eq.s32.totalorder %s96, 0
      %p653 = por %p651, %p652
      %s655 = sadd.s32 %s654, 1
      %p658 = scmp.eq.s32.totalorder %s90, 1
      %p659 = scmp.ne.s32.totalorder %s654, %s656
      %p660 = scmp.eq.s32.totalorder %s90, 0
      %p661 = por %p659, %p660
      %p662 = scmp.ne.s32.totalorder %s654, %s656
      %p663 = scmp.eq.s32.totalorder %s95, 1
      %p664 = por %p662, %p663
      %p665 = scmp.ne.s32.totalorder %s656, %s657
      %p666 = scmp.eq.s32.totalorder %s95, 0
      %p667 = por %p665, %p666
      %p668 = scmp.ne.s32.totalorder %s656, %s657
      %p669 = scmp.eq.s32.totalorder %s96, 1
      %p670 = por %p668, %p669
      %p672 = scmp.ne.s32.totalorder %s657, %s671
      %p673 = scmp.eq.s32.totalorder %s96, 0
      %p674 = por %p672, %p673
      %s676 = sadd.s32 %s675, 1
      %p679 = scmp.eq.s32.totalorder %s90, 1
      %p680 = scmp.ne.s32.totalorder %s675, %s677
      %p681 = scmp.eq.s32.totalorder %s90, 0
      %p682 = por %p680, %p681
      %p683 = scmp.ne.s32.totalorder %s675, %s677
      %p684 = scmp.eq.s32.totalorder %s95, 1
      %p685 = por %p683, %p684
      %p686 = scmp.ne.s32.totalorder %s677, %s678
      %p687 = scmp.eq.s32.totalorder %s95, 0
      %p688 = por %p686, %p687
      %p689 = scmp.ne.s32.totalorder %s677, %s678
      %p690 = scmp.eq.s32.totalorder %s96, 1
      %p691 = por %p689, %p690
      %p693 = scmp.ne.s32.totalorder %s678, %s692
      %p694 = scmp.eq.s32.totalorder %s96, 0
      %p695 = por %p693, %p694
      %s697 = sadd.s32 %s696, 1
      %p700 = scmp.eq.s32.totalorder %s90, 1
      %p701 = scmp.ne.s32.totalorder %s696, %s698
      %p702 = scmp.eq.s32.totalorder %s90, 0
      %p703 = por %p701, %p702
      %p704 = scmp.ne.s32.totalorder %s696, %s698
      %p705 = scmp.eq.s32.totalorder %s95, 1
      %p706 = por %p704, %p705
      %p707 = scmp.ne.s32.totalorder %s698, %s699
      %p708 = scmp.eq.s32.totalorder %s95, 0
      %p709 = por %p707, %p708
      %p710 = scmp.ne.s32.totalorder %s698, %s699
      %p711 = scmp.eq.s32.totalorder %s96, 1
      %p712 = por %p710, %p711
      %p714 = scmp.ne.s32.totalorder %s699, %s713
      %p715 = scmp.eq.s32.totalorder %s96, 0
      %p716 = por %p714, %p715
      %s718 = sadd.s32 %s717, 1
      %p721 = scmp.eq.s32.totalorder %s90, 1
      %p722 = scmp.ne.s32.totalorder %s717, %s719
      %p723 = scmp.eq.s32.totalorder %s90, 0
      %p724 = por %p722, %p723
      %p725 = scmp.ne.s32.totalorder %s717, %s719
      %p726 = scmp.eq.s32.totalorder %s95, 1
      %p727 = por %p725, %p726
      %p728 = scmp.ne.s32.totalorder %s719, %s720
      %p729 = scmp.eq.s32.totalorder %s95, 0
      %p730 = por %p728, %p729
      %p731 = scmp.ne.s32.totalorder %s719, %s720
      %p732 = scmp.eq.s32.totalorder %s96, 1
      %p733 = por %p731, %p732
      %p735 = scmp.ne.s32.totalorder %s720, %s734
      %p736 = scmp.eq.s32.totalorder %s96, 0
      %p737 = por %p735, %p736
      %s739 = sadd.s32 %s738, 1
      %p742 = scmp.eq.s32.totalorder %s90, 1
      %p743 = scmp.ne.s32.totalorder %s738, %s740
      %p744 = scmp.eq.s32.totalorder %s90, 0
      %p745 = por %p743, %p744
      %p746 = scmp.ne.s32.totalorder %s738, %s740
      %p747 = scmp.eq.s32.totalorder %s95, 1
      %p748 = por %p746, %p747
      %p749 = scmp.ne.s32.totalorder %s740, %s741
      %p750 = scmp.eq.s32.totalorder %s95, 0
      %p751 = por %p749, %p750
      %p752 = scmp.ne.s32.totalorder %s740, %s741
      %p753 = scmp.eq.s32.totalorder %s96, 1
      %p754 = por %p752, %p753
      %p756 = scmp.ne.s32.totalorder %s741, %s755
      %p757 = scmp.eq.s32.totalorder %s96, 0
      %p758 = por %p756, %p757
      %s760 = sadd.s32 %s759, 1
      %p763 = scmp.eq.s32.totalorder %s90, 1
      %p764 = scmp.ne.s32.totalorder %s759, %s761
      %p765 = scmp.eq.s32.totalorder %s90, 0
      %p766 = por %p764, %p765
      %p767 = scmp.ne.s32.totalorder %s759, %s761
      %p768 = scmp.eq.s32.totalorder %s95, 1
      %p769 = por %p767, %p768
      %p770 = scmp.ne.s32.totalorder %s761, %s762
      %p771 = scmp.eq.s32.totalorder %s95, 0
      %p772 = por %p770, %p771
      %p773 = scmp.ne.s32.totalorder %s761, %s762
      %p774 = scmp.eq.s32.totalorder %s96, 1
      %p775 = por %p773, %p774
      %p777 = scmp.ne.s32.totalorder %s762, %s776
      %p778 = scmp.eq.s32.totalorder %s96, 0
      %p779 = por %p777, %p778
      %s781 = sadd.s32 %s780, 1
      %p784 = scmp.eq.s32.totalorder %s90, 1
      %p785 = scmp.ne.s32.totalorder %s780, %s782
      %p786 = scmp.eq.s32.totalorder %s90, 0
      %p787 = por %p785, %p786
      %p788 = scmp.ne.s32.totalorder %s780, %s782
      %p789 = scmp.eq.s32.totalorder %s95, 1
      %p790 = por %p788, %p789
      %p791 = scmp.ne.s32.totalorder %s782, %s783
      %p792 = scmp.eq.s32.totalorder %s95, 0
      %p793 = por %p791, %p792
      %p794 = scmp.ne.s32.totalorder %s782, %s783
      %p795 = scmp.eq.s32.totalorder %s96, 1
      %p796 = por %p794, %p795
      %p798 = scmp.ne.s32.totalorder %s783, %s797
      %p799 = scmp.eq.s32.totalorder %s96, 0
      %p800 = por %p798, %p799
      %s802 = sadd.s32 %s801, 1
      %p805 = scmp.eq.s32.totalorder %s90, 1
      %p806 = scmp.ne.s32.totalorder %s801, %s803
      %p807 = scmp.eq.s32.totalorder %s90, 0
      %p808 = por %p806, %p807
      %p809 = scmp.ne.s32.totalorder %s801, %s803
      %p810 = scmp.eq.s32.totalorder %s95, 1
      %p811 = por %p809, %p810
      %p812 = scmp.ne.s32.totalorder %s803, %s804
      %p813 = scmp.eq.s32.totalorder %s95, 0
      %p814 = por %p812, %p813
      %p815 = scmp.ne.s32.totalorder %s803, %s804
      %p816 = scmp.eq.s32.totalorder %s96, 1
      %p817 = por %p815, %p816
      %p819 = scmp.ne.s32.totalorder %s804, %s818
      %p820 = scmp.eq.s32.totalorder %s96, 0
      %p821 = por %p819, %p820
      %s823 = sadd.s32 %s822, 1
      %p826 = scmp.eq.s32.totalorder %s90, 1
      %p827 = scmp.ne.s32.totalorder %s822, %s824
      %p828 = scmp.eq.s32.totalorder %s90, 0
      %p829 = por %p827, %p828
      %p830 = scmp.ne.s32.totalorder %s822, %s824
      %p831 = scmp.eq.s32.totalorder %s95, 1
      %p832 = por %p830, %p831
      %p833 = scmp.ne.s32.totalorder %s824, %s825
      %p834 = scmp.eq.s32.totalorder %s95, 0
      %p835 = por %p833, %p834
      %p836 = scmp.ne.s32.totalorder %s824, %s825
      %p837 = scmp.eq.s32.totalorder %s96, 1
      %p838 = por %p836, %p837
      %p840 = scmp.ne.s32.totalorder %s825, %s839
      %p841 = scmp.eq.s32.totalorder %s96, 0
      %p842 = por %p840, %p841
      %s844 = sadd.s32 %s843, 1
      %p847 = scmp.eq.s32.totalorder %s90, 1
      %p848 = scmp.ne.s32.totalorder %s843, %s845
      %p849 = scmp.eq.s32.totalorder %s90, 0
      %p850 = por %p848, %p849
      %p851 = scmp.ne.s32.totalorder %s843, %s845
      %p852 = scmp.eq.s32.totalorder %s95, 1
      %p853 = por %p851, %p852
      %p854 = scmp.ne.s32.totalorder %s845, %s846
      %p855 = scmp.eq.s32.totalorder %s95, 0
      %p856 = por %p854, %p855
      %p857 = scmp.ne.s32.totalorder %s845, %s846
      %p858 = scmp.eq.s32.totalorder %s96, 1
      %p859 = por %p857, %p858
      %p861 = scmp.ne.s32.totalorder %s846, %s860
      %p862 = scmp.eq.s32.totalorder %s96, 0
      %p863 = por %p861, %p862
      %s864 = ssub.s32 %s90, %s97
      %p865 = scmp.eq.s32.totalorder %s864, 0
      %s867 = sadd.s32 %s866, 1
      %s868 = scalar_select %p865, %s866, %s867
      %p871 = pneg %p865
      %p872 = scmp.eq.s32.totalorder %s90, 1
      %p873 = por %p871, %p872
      %p874 = scmp.ne.s32.totalorder %s866, %s869
      %p875 = scmp.eq.s32.totalorder %s90, 0
      %p876 = por %p874, %p875
      %p877 = scmp.ne.s32.totalorder %s866, %s869
      %p878 = scmp.eq.s32.totalorder %s95, 1
      %p879 = por %p877, %p878
      %p880 = scmp.ne.s32.totalorder %s869, %s870
      %p881 = scmp.eq.s32.totalorder %s95, 0
      %p882 = por %p880, %p881
      %p883 = scmp.ne.s32.totalorder %s869, %s870
      %p884 = scmp.eq.s32.totalorder %s96, 1
      %p885 = por %p883, %p884
      %p887 = scmp.ne.s32.totalorder %s870, %s886
      %p888 = scmp.eq.s32.totalorder %s96, 0
      %p889 = por %p887, %p888
      %p890 = scmp.le.s32.totalorder 1, %s90
      %p891 = scmp.lt.s32.totalorder %s90, 3
      %p892 = pnand %p890, %p891
      %p893 = pneg %p892
      // Predicated region
      $region9: #{transformer_forward.1} parent=5 // pred_check
        _
      $region10: #{transformer_forward.1} parent=5 // pred_check_branch
        %895 = sbr.rel (%p892) target = $region12
      $region11: #{transformer_forward.1} parent=5 // pred_region
        %s896 = ssub.s32 %s90, 1
        // Predicated region
        $region13: #{transformer_forward.1} parent=11 // pred_check
          %p897 = pneg %p163
        $region14: #{transformer_forward.1} parent=11 // pred_check_branch
          %899 = sbr.rel (%p897) target = $region16
        $region15: #{transformer_forward.1} parent=11 // pred_region
          _
        $region16: #{transformer_forward.1} parent=11 // pred_fallthru
          _
        // Predicated region
        $region17: #{transformer_forward.1} parent=11 // pred_check
          %p900 = pneg %p184
        $region18: #{transformer_forward.1} parent=11 // pred_check_branch
          %902 = sbr.rel (%p900) target = $region20
        $region19: #{transformer_forward.1} parent=11 // pred_region
          _
        $region20: #{transformer_forward.1} parent=11 // pred_fallthru
          _
        // Predicated region
        $region21: #{transformer_forward.1} parent=11 // pred_check
          %p903 = pneg %p205
        $region22: #{transformer_forward.1} parent=11 // pred_check_branch
          %905 = sbr.rel (%p903) target = $region24
        $region23: #{transformer_forward.1} parent=11 // pred_region
          _
        $region24: #{transformer_forward.1} parent=11 // pred_fallthru
          _
        // Predicated region
        $region25: #{transformer_forward.1} parent=11 // pred_check
          %p906 = pneg %p226
        $region26: #{transformer_forward.1} parent=11 // pred_check_branch
          %908 = sbr.rel (%p906) target = $region28
        $region27: #{transformer_forward.1} parent=11 // pred_region
          _
        $region28: #{transformer_forward.1} parent=11 // pred_fallthru
          _
        // Predicated region
        $region29: #{transformer_forward.1} parent=11 // pred_check
          %p909 = pneg %p247
        $region30: #{transformer_forward.1} parent=11 // pred_check_branch
          %911 = sbr.rel (%p909) target = $region32
        $region31: #{transformer_forward.1} parent=11 // pred_region
          _
        $region32: #{transformer_forward.1} parent=11 // pred_fallthru
          _
        // Predicated region
        $region33: #{transformer_forward.1} parent=11 // pred_check
          %p912 = pneg %p268
        $region34: #{transformer_forward.1} parent=11 // pred_check_branch
          %914 = sbr.rel (%p912) target = $region36
        $region35: #{transformer_forward.1} parent=11 // pred_region
          _
        $region36: #{transformer_forward.1} parent=11 // pred_fallthru
          _
        // Predicated region
        $region37: #{transformer_forward.1} parent=11 // pred_check
          %p915 = pneg %p289
        $region38: #{transformer_forward.1} parent=11 // pred_check_branch
          %917 = sbr.rel (%p915) target = $region40
        $region39: #{transformer_forward.1} parent=11 // pred_region
          _
        $region40: #{transformer_forward.1} parent=11 // pred_fallthru
          _
        // Predicated region
        $region41: #{transformer_forward.1} parent=11 // pred_check
          %p918 = pneg %p310
        $region42: #{transformer_forward.1} parent=11 // pred_check_branch
          %920 = sbr.rel (%p918) target = $region44
        $region43: #{transformer_forward.1} parent=11 // pred_region
          _
        $region44: #{transformer_forward.1} parent=11 // pred_fallthru
          _
        // Predicated region
        $region45: #{transformer_forward.1} parent=11 // pred_check
          %p921 = pneg %p331
        $region46: #{transformer_forward.1} parent=11 // pred_check_branch
          %923 = sbr.rel (%p921) target = $region48
        $region47: #{transformer_forward.1} parent=11 // pred_region
          _
        $region48: #{transformer_forward.1} parent=11 // pred_fallthru
          _
        // Predicated region
        $region49: #{transformer_forward.1} parent=11 // pred_check
          %p924 = pneg %p352
        $region50: #{transformer_forward.1} parent=11 // pred_check_branch
          %926 = sbr.rel (%p924) target = $region52
        $region51: #{transformer_forward.1} parent=11 // pred_region
          _
        $region52: #{transformer_forward.1} parent=11 // pred_fallthru
          _
        // Predicated region
        $region53: #{transformer_forward.1} parent=11 // pred_check
          %p927 = pneg %p373
        $region54: #{transformer_forward.1} parent=11 // pred_check_branch
          %929 = sbr.rel (%p927) target = $region56
        $region55: #{transformer_forward.1} parent=11 // pred_region
          _
        $region56: #{transformer_forward.1} parent=11 // pred_fallthru
          _
        // Predicated region
        $region57: #{transformer_forward.1} parent=11 // pred_check
          %p930 = pneg %p394
        $region58: #{transformer_forward.1} parent=11 // pred_check_branch
          %932 = sbr.rel (%p930) target = $region60
        $region59: #{transformer_forward.1} parent=11 // pred_region
          _
        $region60: #{transformer_forward.1} parent=11 // pred_fallthru
          _
        // Predicated region
        $region61: #{transformer_forward.1} parent=11 // pred_check
          %p933 = pneg %p415
        $region62: #{transformer_forward.1} parent=11 // pred_check_branch
          %935 = sbr.rel (%p933) target = $region64
        $region63: #{transformer_forward.1} parent=11 // pred_region
          _
        $region64: #{transformer_forward.1} parent=11 // pred_fallthru
          _
        // Predicated region
        $region65: #{transformer_forward.1} parent=11 // pred_check
          %p936 = pneg %p436
        $region66: #{transformer_forward.1} parent=11 // pred_check_branch
          %938 = sbr.rel (%p936) target = $region68
        $region67: #{transformer_forward.1} parent=11 // pred_region
          %940 = vsyncadd [#allocation3], 0
          %s942 = sshll.u32 %s31, 4
          %s943 = int_to_ptr.hbm [resolvable:$true] %s942
          %s944 = sshll.u32 [#allocation2], 4
          %s945 = int_to_ptr.vmem [resolvable:$true] %s944
          %947 = dma.hbm_to_vmem [thread:$0]  %s943, 16, %s945, [#allocation3]
        $region68: #{transformer_forward.1} parent=11 // pred_fallthru
          _
        // Predicated region
        $region69: #{transformer_forward.1} parent=11 // pred_check
          %p948 = pneg %p457
        $region70: #{transformer_forward.1} parent=11 // pred_check_branch
          %950 = sbr.rel (%p948) target = $region72
        $region71: #{transformer_forward.1} parent=11 // pred_region
          _
        $region72: #{transformer_forward.1} parent=11 // pred_fallthru
          _
        // Predicated region
        $region73: #{transformer_forward.1} parent=11 // pred_check
          %p951 = pneg %p478
        $region74: #{transformer_forward.1} parent=11 // pred_check_branch
          %953 = sbr.rel (%p951) target = $region76
        $region75: #{transformer_forward.1} parent=11 // pred_region
          %955 = vsyncadd [#allocation6], 0
          %s957 = sshll.u32 %s35, 4
          %s958 = int_to_ptr.hbm [resolvable:$true] %s957
          %s959 = sshll.u32 [#allocation5], 4
          %s960 = int_to_ptr.vmem [resolvable:$true] %s959
          %962 = dma.hbm_to_vmem [thread:$0]  %s958, 16, %s960, [#allocation6]
        $region76: #{transformer_forward.1} parent=11 // pred_fallthru
          _
        // Predicated region
        $region77: #{transformer_forward.1} parent=11 // pred_check
          %p963 = pneg %p499
        $region78: #{transformer_forward.1} parent=11 // pred_check_branch
          %965 = sbr.rel (%p963) target = $region80
        $region79: #{transformer_forward.1} parent=11 // pred_region
          %967 = vsyncadd [#allocation6], 0
          %s969 = sshll.u32 %s37, 4
          %s970 = int_to_ptr.hbm [resolvable:$true] %s969
          %s971 = sshll.u32 [#allocation7], 4
          %s972 = int_to_ptr.vmem [resolvable:$true] %s971
          %974 = dma.hbm_to_vmem [thread:$0]  %s970, 16, %s972, [#allocation6]
        $region80: #{transformer_forward.1} parent=11 // pred_fallthru
          _
        // Predicated region
        $region81: #{transformer_forward.1} parent=11 // pred_check
          %p975 = pneg %p520
        $region82: #{transformer_forward.1} parent=11 // pred_check_branch
          %977 = sbr.rel (%p975) target = $region84
        $region83: #{transformer_forward.1} parent=11 // pred_region
          %979 = vsyncadd [#allocation9], 0
          %s981 = sshll.u32 %s39, 4
          %s982 = int_to_ptr.hbm [resolvable:$true] %s981
          %s983 = sshll.u32 [#allocation8], 4
          %s984 = int_to_ptr.vmem [resolvable:$true] %s983
          %986 = dma.hbm_to_vmem [thread:$0]  %s982, 16, %s984, [#allocation9]
        $region84: #{transformer_forward.1} parent=11 // pred_fallthru
          _
        // Predicated region
        $region85: #{transformer_forward.1} parent=11 // pred_check
          %p987 = pneg %p541
        $region86: #{transformer_forward.1} parent=11 // pred_check_branch
          %989 = sbr.rel (%p987) target = $region88
        $region87: #{transformer_forward.1} parent=11 // pred_region
          _
        $region88: #{transformer_forward.1} parent=11 // pred_fallthru
          _
        // Predicated region
        $region89: #{transformer_forward.1} parent=11 // pred_check
          %p990 = pneg %p562
        $region90: #{transformer_forward.1} parent=11 // pred_check_branch
          %992 = sbr.rel (%p990) target = $region92
        $region91: #{transformer_forward.1} parent=11 // pred_region
          %994 = vsyncadd [#allocation9], 0
          %s996 = sshll.u32 %s43, 4
          %s997 = int_to_ptr.hbm [resolvable:$true] %s996
          %s998 = sshll.u32 [#allocation10], 4
          %s999 = int_to_ptr.vmem [resolvable:$true] %s998
          %1001 = dma.hbm_to_vmem [thread:$0]  %s997, 16, %s999, [#allocation9]
        $region92: #{transformer_forward.1} parent=11 // pred_fallthru
          _
        // Predicated region
        $region93: #{transformer_forward.1} parent=11 // pred_check
          %p1002 = pneg %p583
        $region94: #{transformer_forward.1} parent=11 // pred_check_branch
          %1004 = sbr.rel (%p1002) target = $region96
        $region95: #{transformer_forward.1} parent=11 // pred_region
          _
        $region96: #{transformer_forward.1} parent=11 // pred_fallthru
          _
        // Predicated region
        $region97: #{transformer_forward.1} parent=11 // pred_check
          %p1005 = pneg %p604
        $region98: #{transformer_forward.1} parent=11 // pred_check_branch
          %1007 = sbr.rel (%p1005) target = $region100
        $region99: #{transformer_forward.1} parent=11 // pred_region
          %1009 = vsyncadd [#allocation12], 0
          %s1011 = sshll.u32 %s47, 4
          %s1012 = int_to_ptr.hbm [resolvable:$true] %s1011
          %s1013 = sshll.u32 [#allocation11], 4
          %s1014 = int_to_ptr.vmem [resolvable:$true] %s1013
          %1016 = dma.hbm_to_vmem [thread:$0]  %s1012, 16, %s1014, [#allocation12]
        $region100: #{transformer_forward.1} parent=11 // pred_fallthru
          _
        // Predicated region
        $region101: #{transformer_forward.1} parent=11 // pred_check
          %p1017 = pneg %p625
        $region102: #{transformer_forward.1} parent=11 // pred_check_branch
          %1019 = sbr.rel (%p1017) target = $region104
        $region103: #{transformer_forward.1} parent=11 // pred_region
          %1021 = vsyncadd [#allocation12], 0
          %s1022 = sshll.u32 %s49, 4
          %s1023 = int_to_ptr.hbm [resolvable:$true] %s1022
          %s1024 = sshll.u32 [#allocation13], 4
          %s1025 = int_to_ptr.vmem [resolvable:$true] %s1024
          %1030 = dma.hbm_to_vmem [thread:$0]  %s1023, 256, %s1025, [#allocation12], 64, 64, 4
        $region104: #{transformer_forward.1} parent=11 // pred_fallthru
          _
        // Predicated region
        $region105: #{transformer_forward.1} parent=11 // pred_check
          %p1031 = pneg %p646
        $region106: #{transformer_forward.1} parent=11 // pred_check_branch
          %1033 = sbr.rel (%p1031) target = $region108
        $region107: #{transformer_forward.1} parent=11 // pred_region
          %1035 = vsyncadd [#allocation15], 0
          %s1037 = sshll.u32 %s51, 4
          %s1038 = int_to_ptr.hbm [resolvable:$true] %s1037
          %s1039 = sshll.u32 [#allocation14], 4
          %s1040 = int_to_ptr.vmem [resolvable:$true] %s1039
          %1042 = dma.hbm_to_vmem [thread:$0]  %s1038, 16, %s1040, [#allocation15]
        $region108: #{transformer_forward.1} parent=11 // pred_fallthru
          _
        // Predicated region
        $region109: #{transformer_forward.1} parent=11 // pred_check
          %p1043 = pneg %p667
        $region110: #{transformer_forward.1} parent=11 // pred_check_branch
          %1045 = sbr.rel (%p1043) target = $region112
        $region111: #{transformer_forward.1} parent=11 // pred_region
          %1047 = vsyncadd [#allocation15], 0
          %s1049 = sshll.u32 %s53, 4
          %s1050 = int_to_ptr.hbm [resolvable:$true] %s1049
          %s1051 = sshll.u32 [#allocation16], 4
          %s1052 = int_to_ptr.vmem [resolvable:$true] %s1051
          %1054 = dma.hbm_to_vmem [thread:$0]  %s1050, 16, %s1052, [#allocation15]
        $region112: #{transformer_forward.1} parent=11 // pred_fallthru
          _
        // Predicated region
        $region113: #{transformer_forward.1} parent=11 // pred_check
          %p1055 = pneg %p688
        $region114: #{transformer_forward.1} parent=11 // pred_check_branch
          %1057 = sbr.rel (%p1055) target = $region116
        $region115: #{transformer_forward.1} parent=11 // pred_region
          %1059 = vsyncadd [#allocation18], 0
          %s1061 = sshll.u32 %s55, 4
          %s1062 = int_to_ptr.hbm [resolvable:$true] %s1061
          %s1063 = sshll.u32 [#allocation17], 4
          %s1064 = int_to_ptr.vmem [resolvable:$true] %s1063
          %1066 = dma.hbm_to_vmem [thread:$0]  %s1062, 16, %s1064, [#allocation18]
        $region116: #{transformer_forward.1} parent=11 // pred_fallthru
          _
        // Predicated region
        $region117: #{transformer_forward.1} parent=11 // pred_check
          %p1067 = pneg %p709
        $region118: #{transformer_forward.1} parent=11 // pred_check_branch
          %1069 = sbr.rel (%p1067) target = $region120
        $region119: #{transformer_forward.1} parent=11 // pred_region
          %1071 = vsyncadd [#allocation18], 0
          %s1072 = sshll.u32 %s57, 4
          %s1073 = int_to_ptr.hbm [resolvable:$true] %s1072
          %s1074 = sshll.u32 [#allocation19], 4
          %s1075 = int_to_ptr.vmem [resolvable:$true] %s1074
          %1080 = dma.hbm_to_vmem [thread:$0]  %s1073, 256, %s1075, [#allocation18], 64, 64, 4
        $region120: #{transformer_forward.1} parent=11 // pred_fallthru
          _
        // Predicated region
        $region121: #{transformer_forward.1} parent=11 // pred_check
          %p1081 = pneg %p730
        $region122: #{transformer_forward.1} parent=11 // pred_check_branch
          %1083 = sbr.rel (%p1081) target = $region124
        $region123: #{transformer_forward.1} parent=11 // pred_region
          %1085 = vsyncadd [#allocation21], 0
          %s1087 = sshll.u32 %s59, 4
          %s1088 = int_to_ptr.hbm [resolvable:$true] %s1087
          %s1089 = sshll.u32 [#allocation20], 4
          %s1090 = int_to_ptr.vmem [resolvable:$true] %s1089
          %1092 = dma.hbm_to_vmem [thread:$0]  %s1088, 16, %s1090, [#allocation21]
        $region124: #{transformer_forward.1} parent=11 // pred_fallthru
          _
        // Predicated region
        $region125: #{transformer_forward.1} parent=11 // pred_check
          %p1093 = pneg %p751
        $region126: #{transformer_forward.1} parent=11 // pred_check_branch
          %1095 = sbr.rel (%p1093) target = $region128
        $region127: #{transformer_forward.1} parent=11 // pred_region
          _
        $region128: #{transformer_forward.1} parent=11 // pred_fallthru
          _
        // Predicated region
        $region129: #{transformer_forward.1} parent=11 // pred_check
          %p1096 = pneg %p772
        $region130: #{transformer_forward.1} parent=11 // pred_check_branch
          %1098 = sbr.rel (%p1096) target = $region132
        $region131: #{transformer_forward.1} parent=11 // pred_region
          %1100 = vsyncadd [#allocation21], 0
          %s1102 = sshll.u32 %s63, 4
          %s1103 = int_to_ptr.hbm [resolvable:$true] %s1102
          %s1104 = sshll.u32 [#allocation22], 4
          %s1105 = int_to_ptr.vmem [resolvable:$true] %s1104
          %1107 = dma.hbm_to_vmem [thread:$0]  %s1103, 16, %s1105, [#allocation21]
        $region132: #{transformer_forward.1} parent=11 // pred_fallthru
          _
        // Predicated region
        $region133: #{transformer_forward.1} parent=11 // pred_check
          %p1108 = pneg %p793
        $region134: #{transformer_forward.1} parent=11 // pred_check_branch
          %1110 = sbr.rel (%p1108) target = $region136
        $region135: #{transformer_forward.1} parent=11 // pred_region
          %1112 = vsyncadd [#allocation24], 0
          %s1114 = sshll.u32 %s65, 4
          %s1115 = int_to_ptr.hbm [resolvable:$true] %s1114
          %s1116 = sshll.u32 [#allocation23], 4
          %s1117 = int_to_ptr.vmem [resolvable:$true] %s1116
          %1119 = dma.hbm_to_vmem [thread:$0]  %s1115, 16, %s1117, [#allocation24]
        $region136: #{transformer_forward.1} parent=11 // pred_fallthru
          _
        // Predicated region
        $region137: #{transformer_forward.1} parent=11 // pred_check
          %p1120 = pneg %p814
        $region138: #{transformer_forward.1} parent=11 // pred_check_branch
          %1122 = sbr.rel (%p1120) target = $region140
        $region139: #{transformer_forward.1} parent=11 // pred_region
          %1124 = vsyncadd [#allocation24], 0
          %s1126 = sshll.u32 %s67, 4
          %s1127 = int_to_ptr.hbm [resolvable:$true] %s1126
          %s1128 = sshll.u32 [#allocation25], 4
          %s1129 = int_to_ptr.vmem [resolvable:$true] %s1128
          %1131 = dma.hbm_to_vmem [thread:$0]  %s1127, 16, %s1129, [#allocation24]
        $region140: #{transformer_forward.1} parent=11 // pred_fallthru
          _
        // Predicated region
        $region141: #{transformer_forward.1} parent=11 // pred_check
          %p1132 = pneg %p835
        $region142: #{transformer_forward.1} parent=11 // pred_check_branch
          %1134 = sbr.rel (%p1132) target = $region144
        $region143: #{transformer_forward.1} parent=11 // pred_region
          _
        $region144: #{transformer_forward.1} parent=11 // pred_fallthru
          _
        // Predicated region
        $region145: #{transformer_forward.1} parent=11 // pred_check
          %p1135 = pneg %p856
        $region146: #{transformer_forward.1} parent=11 // pred_check_branch
          %1137 = sbr.rel (%p1135) target = $region148
        $region147: #{transformer_forward.1} parent=11 // pred_region
          _
        $region148: #{transformer_forward.1} parent=11 // pred_fallthru
          _
      $region12: #{transformer_forward.1} parent=5 // pred_fallthru
        _
      %p1138 = scmp.lt.s32.totalorder %s90, 2
      // Predicated region
      $region149: #{transformer_forward.1} parent=5 // pred_check
        %p1139 = pneg %p1138
      $region150: #{transformer_forward.1} parent=5 // pred_check_branch
        %1141 = sbr.rel (%p1139) target = $region152
      $region151: #{transformer_forward.1} parent=5 // pred_region
        // Predicated region
        $region153: #{transformer_forward.1} parent=151 // pred_check
          %p1142 = pneg %p110
        $region154: #{transformer_forward.1} parent=151 // pred_check_branch
          %1144 = sbr.rel (%p1142) target = $region156
        $region155: #{transformer_forward.1} parent=151 // pred_region
          %p1145 = scmp.lt.s32.totalorder %s90, 1
          %s1146 = scalar_select %p1145, %s90, 1
          %s1147 = smul.addr %s1146, 8
          %s1148 = scalar_lea.vmem %s1, %s1147
        $region156: #{transformer_forward.1} parent=151 // pred_fallthru
          _
        // Predicated region
        $region157: #{transformer_forward.1} parent=151 // pred_check
          %p1149 = pneg %p136
        $region158: #{transformer_forward.1} parent=151 // pred_check_branch
          %1151 = sbr.rel (%p1149) target = $region160
        $region159: #{transformer_forward.1} parent=151 // pred_region
          %p1152 = scmp.lt.s32.totalorder %s90, 1
          %s1153 = scalar_select %p1152, %s90, 1
          %s1154 = smul.addr %s1153, 8
          %s1155 = scalar_lea.vmem %s3, %s1154
        $region160: #{transformer_forward.1} parent=151 // pred_fallthru
          _
      $region152: #{transformer_forward.1} parent=5 // pred_fallthru
        _
      %p1156 = scmp.le.s32.totalorder 1, %s90
      %p1157 = scmp.lt.s32.totalorder %s90, 3
      %p1158 = pnand %p1156, %p1157
      %p1159 = pneg %p1158
      // Predicated region
      $region161: #{transformer_forward.1} parent=5 // pred_check
        _
      $region162: #{transformer_forward.1} parent=5 // pred_check_branch
        %1161 = sbr.rel (%p1158) target = $region164
      $region163: #{transformer_forward.1} parent=5 // pred_region
        %s1162 = ssub.s32 %s90, 1
        // Predicated region
        $region165: #{transformer_forward.1} parent=163 // pred_check
          %p1163 = pneg %p436
        $region166: #{transformer_forward.1} parent=163 // pred_check_branch
          %1165 = sbr.rel (%p1163) target = $region168
        $region167: #{transformer_forward.1} parent=163 // pred_region
          %1167 = dma.done [#allocation3], 16
        $region168: #{transformer_forward.1} parent=163 // pred_fallthru
          _
        // Predicated region
        $region169: #{transformer_forward.1} parent=163 // pred_check
          %p1168 = pneg %p478
        $region170: #{transformer_forward.1} parent=163 // pred_check_branch
          %1170 = sbr.rel (%p1168) target = $region172
        $region171: #{transformer_forward.1} parent=163 // pred_region
          %1172 = dma.done [#allocation6], 16
        $region172: #{transformer_forward.1} parent=163 // pred_fallthru
          _
        // Predicated region
        $region173: #{transformer_forward.1} parent=163 // pred_check
          %p1173 = pneg %p499
        $region174: #{transformer_forward.1} parent=163 // pred_check_branch
          %1175 = sbr.rel (%p1173) target = $region176
        $region175: #{transformer_forward.1} parent=163 // pred_region
          %1177 = dma.done [#allocation6], 16
        $region176: #{transformer_forward.1} parent=163 // pred_fallthru
          _
        // Predicated region
        $region177: #{transformer_forward.1} parent=163 // pred_check
          %p1178 = pneg %p520
        $region178: #{transformer_forward.1} parent=163 // pred_check_branch
          %1180 = sbr.rel (%p1178) target = $region180
        $region179: #{transformer_forward.1} parent=163 // pred_region
          %1182 = dma.done [#allocation9], 16
        $region180: #{transformer_forward.1} parent=163 // pred_fallthru
          _
        // Predicated region
        $region181: #{transformer_forward.1} parent=163 // pred_check
          %p1183 = pneg %p562
        $region182: #{transformer_forward.1} parent=163 // pred_check_branch
          %1185 = sbr.rel (%p1183) target = $region184
        $region183: #{transformer_forward.1} parent=163 // pred_region
          %1187 = dma.done [#allocation9], 16
        $region184: #{transformer_forward.1} parent=163 // pred_fallthru
          _
        // Predicated region
        $region185: #{transformer_forward.1} parent=163 // pred_check
          %p1188 = pneg %p604
        $region186: #{transformer_forward.1} parent=163 // pred_check_branch
          %1190 = sbr.rel (%p1188) target = $region188
        $region187: #{transformer_forward.1} parent=163 // pred_region
          %1192 = dma.done [#allocation12], 16
        $region188: #{transformer_forward.1} parent=163 // pred_fallthru
          _
        // Predicated region
        $region189: #{transformer_forward.1} parent=163 // pred_check
          %p1193 = pneg %p625
        $region190: #{transformer_forward.1} parent=163 // pred_check_branch
          %1195 = sbr.rel (%p1193) target = $region192
        $region191: #{transformer_forward.1} parent=163 // pred_region
          %1197 = dma.done [#allocation12], 256
        $region192: #{transformer_forward.1} parent=163 // pred_fallthru
          _
        // Predicated region
        $region193: #{transformer_forward.1} parent=163 // pred_check
          %p1198 = pneg %p646
        $region194: #{transformer_forward.1} parent=163 // pred_check_branch
          %1200 = sbr.rel (%p1198) target = $region196
        $region195: #{transformer_forward.1} parent=163 // pred_region
          %1202 = dma.done [#allocation15], 16
        $region196: #{transformer_forward.1} parent=163 // pred_fallthru
          _
        // Predicated region
        $region197: #{transformer_forward.1} parent=163 // pred_check
          %p1203 = pneg %p667
        $region198: #{transformer_forward.1} parent=163 // pred_check_branch
          %1205 = sbr.rel (%p1203) target = $region200
        $region199: #{transformer_forward.1} parent=163 // pred_region
          %1207 = dma.done [#allocation15], 16
        $region200: #{transformer_forward.1} parent=163 // pred_fallthru
          _
        // Predicated region
        $region201: #{transformer_forward.1} parent=163 // pred_check
          %p1208 = pneg %p688
        $region202: #{transformer_forward.1} parent=163 // pred_check_branch
          %1210 = sbr.rel (%p1208) target = $region204
        $region203: #{transformer_forward.1} parent=163 // pred_region
          %1212 = dma.done [#allocation18], 16
        $region204: #{transformer_forward.1} parent=163 // pred_fallthru
          _
        // Predicated region
        $region205: #{transformer_forward.1} parent=163 // pred_check
          %p1213 = pneg %p709
        $region206: #{transformer_forward.1} parent=163 // pred_check_branch
          %1215 = sbr.rel (%p1213) target = $region208
        $region207: #{transformer_forward.1} parent=163 // pred_region
          %1217 = dma.done [#allocation18], 256
        $region208: #{transformer_forward.1} parent=163 // pred_fallthru
          _
        // Predicated region
        $region209: #{transformer_forward.1} parent=163 // pred_check
          %p1218 = pneg %p730
        $region210: #{transformer_forward.1} parent=163 // pred_check_branch
          %1220 = sbr.rel (%p1218) target = $region212
        $region211: #{transformer_forward.1} parent=163 // pred_region
          %1222 = dma.done [#allocation21], 16
        $region212: #{transformer_forward.1} parent=163 // pred_fallthru
          _
        // Predicated region
        $region213: #{transformer_forward.1} parent=163 // pred_check
          %p1223 = pneg %p772
        $region214: #{transformer_forward.1} parent=163 // pred_check_branch
          %1225 = sbr.rel (%p1223) target = $region216
        $region215: #{transformer_forward.1} parent=163 // pred_region
          %1227 = dma.done [#allocation21], 16
        $region216: #{transformer_forward.1} parent=163 // pred_fallthru
          _
        // Predicated region
        $region217: #{transformer_forward.1} parent=163 // pred_check
          %p1228 = pneg %p793
        $region218: #{transformer_forward.1} parent=163 // pred_check_branch
          %1230 = sbr.rel (%p1228) target = $region220
        $region219: #{transformer_forward.1} parent=163 // pred_region
          %1232 = dma.done [#allocation24], 16
        $region220: #{transformer_forward.1} parent=163 // pred_fallthru
          _
        // Predicated region
        $region221: #{transformer_forward.1} parent=163 // pred_check
          %p1233 = pneg %p814
        $region222: #{transformer_forward.1} parent=163 // pred_check_branch
          %1235 = sbr.rel (%p1233) target = $region224
        $region223: #{transformer_forward.1} parent=163 // pred_region
          %1237 = dma.done [#allocation24], 16
        $region224: #{transformer_forward.1} parent=163 // pred_fallthru
          _
        %p1238 = scmp.lt.s32.totalorder %s95, 1
        %s1239 = scalar_select %p1238, %s95, 1
        %s1240 = smul.addr %s1239, 8
        %s1241 = scalar_lea.vmem %s1, %s1240
        %p1242 = pneg %p116
        %p1243 = pneg %p113
        %p1244 = scmp.lt.s32.totalorder %s95, 1
        %s1245 = scalar_select %p1244, %s95, 1
        %s1246 = smul.addr %s1245, 8
        %s1247 = scalar_lea.vmem %s3, %s1246
        %p1248 = pneg %p142
        %p1249 = pneg %p139
        %p1250 = pneg %p163
        %p1251 = pneg %p160
        %p1252 = pneg %p184
        %p1253 = pneg %p181
        %p1254 = pneg %p205
        %p1255 = pneg %p202
        %p1256 = pneg %p226
        %p1257 = pneg %p223
        %p1258 = pneg %p247
        %p1259 = pneg %p244
        %p1260 = pneg %p268
        %p1261 = pneg %p265
        %p1262 = pneg %p289
        %p1263 = pneg %p286
        %p1264 = pneg %p310
        %p1265 = pneg %p307
        %p1266 = pneg %p331
        %p1267 = pneg %p328
        %p1268 = pneg %p352
        %p1269 = pneg %p349
        %p1270 = pneg %p373
        %p1271 = pneg %p370
        %p1272 = pneg %p394
        %p1273 = pneg %p391
        %p1274 = pneg %p415
        %p1275 = pneg %p412
        %p1276 = pneg %p436
        %p1277 = pneg %p433
        %p1278 = pneg %p457
        %p1279 = pneg %p454
        %p1280 = pneg %p478
        %p1281 = pneg %p475
        %p1282 = pneg %p499
        %p1283 = pneg %p496
        %p1284 = pneg %p520
        %p1285 = pneg %p517
        %p1286 = pneg %p541
        %p1287 = pneg %p538
        %p1288 = pneg %p562
        %p1289 = pneg %p559
        %p1290 = pneg %p583
        %p1291 = pneg %p580
        %p1292 = pneg %p604
        %p1293 = pneg %p601
        %p1294 = pneg %p625
        %p1295 = pneg %p622
        %p1296 = pneg %p646
        %p1297 = pneg %p643
        %p1298 = pneg %p667
        %p1299 = pneg %p664
        %p1300 = pneg %p688
        %p1301 = pneg %p685
        %p1302 = pneg %p709
        %p1303 = pneg %p706
        %p1304 = pneg %p730
        %p1305 = pneg %p727
        %p1306 = pneg %p751
        %p1307 = pneg %p748
        %p1308 = pneg %p772
        %p1309 = pneg %p769
        %p1310 = pneg %p793
        %p1311 = pneg %p790
        %p1312 = pneg %p814
        %p1313 = pneg %p811
        %p1314 = pneg %p835
        %p1315 = pneg %p832
        %p1316 = pneg %p856
        %p1317 = pneg %p853
        %p1318 = pneg %p882
        %p1319 = pneg %p879
        %s1320 = sand.u32 %s869, 1
        %s1321 = scalar_lea.sflag [#allocation4], %s1320
        %s1322 = sand.u32 %s869, 1
        %s1323 = smul.addr %s1322, 8
        %s1324 = scalar_lea.vmem [#allocation26], %s1323
        %p1325 = scmp.lt.s32.totalorder %s95, 1
        %s1326 = scalar_select %p1325, %s95, 1
        %s1327 = smul.addr %s1326, 8
        %s1328 = scalar_lea.vmem %s1, %s1327
        %p1329 = scmp.lt.s32.totalorder %s95, 1
        %s1330 = scalar_select %p1329, %s95, 1
        %s1331 = smul.addr %s1330, 8
        %s1332 = scalar_lea.vmem %s3, %s1331
        %v1334 = vld [vmem:[%s1328] sm:$0xff]
        %v1335 = vld [vmem:[%s1332] sm:$0xff]
        %v1336 = vpack.c.bf16 %v1334, %v1334
        %v1337 = vld [vmem:[%s5] sm:$0xf]
        %v1338 = vld [vmem:[%s5 + $0x4] sm:$0xf]
        %v1339 = vld [vmem:[%s5 + $0x8] sm:$0xf]
        %v1340 = vld [vmem:[%s5 + $0xc] sm:$0xf]
        %v1341 = vld [vmem:[%s7] sm:$0x1]
        %v1343 = vperm.slane %v1341, 0
        %v1349 = vunpack.c.l.b16 %v1337
        %v1350 = vunpack.c.l.b16 %v1338
        %v1351 = vunpack.c.l.b16 %v1339
        %v1352 = vunpack.c.l.b16 %v1340
        %v1353 = vpack.c.b16 %v1350, %v1349
        %v1354 = vpack.c.b16 %v1352, %v1351
        %vm1357 = vcmask 261120
        %v1359 = vsel %vm1357, %v1336, 0
        %1361 = vmatpush.bf16.msra.mxu0 0
        %1362 = vmatpush.bf16.msra.mxu0 0
        %1363 = vmatpush.bf16.msra.mxu0 0
        %1364 = vmatpush.bf16.msra.mxu0 0
        %1365 = vmatpush.bf16.msra.mxu0 0
        %1366 = vmatpush.bf16.msra.mxu0 0
        %1367 = vmatpush.bf16.msra.mxu0 %v1354
        %1368 = vmatpush.bf16.msra.mxu0 %v1353
        %1369 = vmatmul.bf16.gmra.mxu0 %v1359
        %v1370 = vpop.f32.mrf.mxu0
        %v1371 = vadd.f32 %v1343, %v1370
        %v1372 = vpop.f32.mrf.mxu0
        %1373 = vdwg.mxu0
        %v1374 = vld [vmem:[%s9] sm:$0xf]
        %v1375 = vld [vmem:[%s9 + $0x4] sm:$0xf]
        %v1376 = vld [vmem:[%s9 + $0x8] sm:$0xf]
        %v1377 = vld [vmem:[%s9 + $0xc] sm:$0xf]
        %v1378 = vld [vmem:[%s11] sm:$0x1]
        %v1379 = vld [vmem:[%s13] sm:$0x1]
        %v1380 = vld [vmem:[%s15] sm:$0x1]
        %v1381 = vpack.c.bf16 %v1371, %v1371
        %1383 = vrot.lane.b32.xlu0 %v1381, 96
        %v1384 = vpop.permute.xlu0 %1383
        %vm1385 = vcmask 64512
        %v1387 = vsel %vm1385, %v1381, 0
        %v1390 = vsel %vm1385, %v1384, 0
        %1392 = vmatpush.bf16.xpose.msra.mxu0 0
        %1393 = vmatpush.bf16.xpose.msra.mxu0 0
        %1394 = vmatpush.bf16.xpose.msra.mxu0 0
        %1395 = vmatpush.bf16.xpose.msra.mxu0 0
        %1396 = vmatpush.bf16.xpose.msra.mxu0 0
        %1397 = vmatpush.bf16.xpose.msra.mxu0 0
        %1398 = vmatpush.bf16.xpose.msra.mxu0 0
        %1399 = vmatpush.bf16.xpose.msra.mxu0 %v1390
        %1400 = vmatmul.bf16.gmra.mxu0 %v1387
        %v1401 = vpop.f32.mrf.mxu0
        %v1402 = vadd.f32 0.0, %v1401
        %v1403 = vpop.f32.mrf.mxu0
        %1404 = vdwg.mxu0
        %v1405 = vmul.f32 %v1402, 0.35355338
        %v1406 = vsel %vm1385, %v1405, -inf
        %1407 = vmax.xlane.f32.xlu0 %v1406
        %v1408 = vpop.xlane.xlu0 %1407
        %v1409 = vsub.f32 %v1405, %v1408
        %v1410 = vmul.f32 %v1409, 1.442695
        %v1411 = vpow.pop %v1410
        %v1412 = vsel %vm1385, %v1411, 0.0
        %1413 = vadd.xlane.f32.xlu0 %v1412
        %v1414 = vpop.xlane.xlu0 %1413
        %v1415 = vrcp.pop %v1414
        %v1416 = vmul.f32 %v1414, %v1415
        %v1417 = vsub.f32 1.0, %v1416
        %v1418 = vmul.f32 %v1415, %v1417
        %v1419 = vadd.f32 %v1415, %v1418
        %vm1420 = vweird.f32 %v1414
        %vm1421 = vweird.f32 %v1415
        %vm1422 = vmor %vm1420, %vm1421
        %v1423 = vsel %vm1422, %v1415, %v1419
        %v1424 = vand.u32 2147483647, %v1414
        %vm1425 = vcmp.eq.f32.partialorder %v1424, 8.507059e+37
        %v1426 = vand.u32 %v1414, 2147483648
        %v1427 = vor.u32 1.1754944e-38, %v1426
        %v1428 = vsel %vm1425, %v1427, %v1423
        %v1429 = vmul.f32 %v1411, %v1428
        %v1430 = vpack.c.bf16 %v1429, %v1429
        %1431 = vrot.lane.b32.xlu0 %v1381, 64
        %v1432 = vpop.permute.xlu0 %1431
        %v1434 = vsel %vm1385, %v1430, 0
        %vm1436 = vcmask 1043456
        %v1438 = vsel %vm1436, %v1432, 0
        %1440 = vmatpush.bf16.msra.mxu0 0
        %1441 = vmatpush.bf16.msra.mxu0 0
        %1442 = vmatpush.bf16.msra.mxu0 0
        %1443 = vmatpush.bf16.msra.mxu0 0
        %1444 = vmatpush.bf16.msra.mxu0 0
        %1445 = vmatpush.bf16.msra.mxu0 0
        %1446 = vmatpush.bf16.msra.mxu0 0
        %1447 = vmatpush.bf16.msra.mxu0 %v1438
        %1448 = vmatmul.bf16.gmra.mxu0 %v1434
        %v1449 = vpop.f32.mrf.mxu0
        %v1450 = vadd.f32 0.0, %v1449
        %v1451 = vpop.f32.mrf.mxu0
        %1452 = vdwg.mxu0
        %1453 = vrot.lane.b32.xlu0 %v1381, 120
        %v1454 = vpop.permute.xlu0 %1453
        %1455 = vrot.lane.b32.xlu0 %v1381, 88
        %v1456 = vpop.permute.xlu0 %1455
        %v1458 = vsel %vm1385, %v1454, 0
        %v1461 = vsel %vm1385, %v1456, 0
        %1463 = vmatpush.bf16.xpose.msra.mxu0 0
        %1464 = vmatpush.bf16.xpose.msra.mxu0 0
        %1465 = vmatpush.bf16.xpose.msra.mxu0 0
        %1466 = vmatpush.bf16.xpose.msra.mxu0 0
        %1467 = vmatpush.bf16.xpose.msra.mxu0 0
        %1468 = vmatpush.bf16.xpose.msra.mxu0 0
        %1469 = vmatpush.bf16.xpose.msra.mxu0 0
        %1470 = vmatpush.bf16.xpose.msra.mxu0 %v1461
        %1471 = vmatmul.bf16.gmra.mxu0 %v1458
        %v1472 = vpop.f32.mrf.mxu0
        %v1473 = vadd.f32 0.0, %v1472
        %v1474 = vpop.f32.mrf.mxu0
        %1475 = vdwg.mxu0
        %v1476 = vmul.f32 %v1473, 0.35355338
        %v1477 = vsel %vm1385, %v1476, -inf
        %1478 = vmax.xlane.f32.xlu0 %v1477
        %v1479 = vpop.xlane.xlu0 %1478
        %v1480 = vsub.f32 %v1476, %v1479
        %v1481 = vmul.f32 %v1480, 1.442695
        %v1482 = vpow.pop %v1481
        %v1483 = vsel %vm1385, %v1482, 0.0
        %1484 = vadd.xlane.f32.xlu0 %v1483
        %v1485 = vpop.xlane.xlu0 %1484
        %v1486 = vrcp.pop %v1485
        %v1487 = vmul.f32 %v1485, %v1486
        %v1488 = vsub.f32 1.0, %v1487
        %v1489 = vmul.f32 %v1486, %v1488
        %v1490 = vadd.f32 %v1486, %v1489
        %vm1491 = vweird.f32 %v1485
        %vm1492 = vweird.f32 %v1486
        %vm1493 = vmor %vm1491, %vm1492
        %v1494 = vsel %vm1493, %v1486, %v1490
        %v1495 = vand.u32 2147483647, %v1485
        %vm1496 = vcmp.eq.f32.partialorder %v1495, 8.507059e+37
        %v1497 = vand.u32 %v1485, 2147483648
        %v1498 = vor.u32 1.1754944e-38, %v1497
        %v1499 = vsel %vm1496, %v1498, %v1494
        %v1500 = vmul.f32 %v1482, %v1499
        %v1501 = vpack.c.bf16 %v1500, %v1500
        %1502 = vrot.lane.b32.xlu0 %v1381, 56
        %v1503 = vpop.permute.xlu0 %1502
        %v1505 = vsel %vm1385, %v1501, 0
        %v1508 = vsel %vm1436, %v1503, 0
        %1510 = vmatpush.bf16.msra.mxu0 0
        %1511 = vmatpush.bf16.msra.mxu0 0
        %1512 = vmatpush.bf16.msra.mxu0 0
        %1513 = vmatpush.bf16.msra.mxu0 0
        %1514 = vmatpush.bf16.msra.mxu0 0
        %1515 = vmatpush.bf16.msra.mxu0 0
        %1516 = vmatpush.bf16.msra.mxu0 0
        %1517 = vmatpush.bf16.msra.mxu0 %v1508
        %1518 = vmatmul.bf16.gmra.mxu0 %v1505
        %v1519 = vpop.f32.mrf.mxu0
        %v1520 = vadd.f32 0.0, %v1519
        %v1521 = vpop.f32.mrf.mxu0
        %1522 = vdwg.mxu0
        %1523 = vrot.lane.b32.xlu0 %v1381, 112
        %v1524 = vpop.permute.xlu0 %1523
        %1525 = vrot.lane.b32.xlu0 %v1381, 80
        %v1526 = vpop.permute.xlu0 %1525
        %v1528 = vsel %vm1385, %v1524, 0
        %v1531 = vsel %vm1385, %v1526, 0
        %1533 = vmatpush.bf16.xpose.msra.mxu0 0
        %1534 = vmatpush.bf16.xpose.msra.mxu0 0
        %1535 = vmatpush.bf16.xpose.msra.mxu0 0
        %1536 = vmatpush.bf16.xpose.msra.mxu0 0
        %1537 = vmatpush.bf16.xpose.msra.mxu0 0
        %1538 = vmatpush.bf16.xpose.msra.mxu0 0
        %1539 = vmatpush.bf16.xpose.msra.mxu0 0
        %1540 = vmatpush.bf16.xpose.msra.mxu0 %v1531
        %1541 = vmatmul.bf16.gmra.mxu0 %v1528
        %v1542 = vpop.f32.mrf.mxu0
        %v1543 = vadd.f32 0.0, %v1542
        %v1544 = vpop.f32.mrf.mxu0
        %1545 = vdwg.mxu0
        %v1546 = vmul.f32 %v1543, 0.35355338
        %v1547 = vsel %vm1385, %v1546, -inf
        %1548 = vmax.xlane.f32.xlu0 %v1547
        %v1549 = vpop.xlane.xlu0 %1548
        %v1550 = vsub.f32 %v1546, %v1549
        %v1551 = vmul.f32 %v1550, 1.442695
        %v1552 = vpow.pop %v1551
        %v1553 = vsel %vm1385, %v1552, 0.0
        %1554 = vadd.xlane.f32.xlu0 %v1553
        %v1555 = vpop.xlane.xlu0 %1554
        %v1556 = vrcp.pop %v1555
        %v1557 = vmul.f32 %v1555, %v1556
        %v1558 = vsub.f32 1.0, %v1557
        %v1559 = vmul.f32 %v1556, %v1558
        %v1560 = vadd.f32 %v1556, %v1559
        %vm1561 = vweird.f32 %v1555
        %vm1562 = vweird.f32 %v1556
        %vm1563 = vmor %vm1561, %vm1562
        %v1564 = vsel %vm1563, %v1556, %v1560
        %v1565 = vand.u32 2147483647, %v1555
        %vm1566 = vcmp.eq.f32.partialorder %v1565, 8.507059e+37
        %v1567 = vand.u32 %v1555, 2147483648
        %v1568 = vor.u32 1.1754944e-38, %v1567
        %v1569 = vsel %vm1566, %v1568, %v1564
        %v1570 = vmul.f32 %v1552, %v1569
        %v1571 = vpack.c.bf16 %v1570, %v1570
        %1572 = vrot.lane.b32.xlu0 %v1381, 48
        %v1573 = vpop.permute.xlu0 %1572
        %v1575 = vsel %vm1385, %v1571, 0
        %v1578 = vsel %vm1436, %v1573, 0
        %1580 = vmatpush.bf16.msra.mxu0 0
        %1581 = vmatpush.bf16.msra.mxu0 0
        %1582 = vmatpush.bf16.msra.mxu0 0
        %1583 = vmatpush.bf16.msra.mxu0 0
        %1584 = vmatpush.bf16.msra.mxu0 0
        %1585 = vmatpush.bf16.msra.mxu0 0
        %1586 = vmatpush.bf16.msra.mxu0 0
        %1587 = vmatpush.bf16.msra.mxu0 %v1578
        %1588 = vmatmul.bf16.gmra.mxu0 %v1575
        %v1589 = vpop.f32.mrf.mxu0
        %v1590 = vadd.f32 0.0, %v1589
        %v1591 = vpop.f32.mrf.mxu0
        %1592 = vdwg.mxu0
        %1593 = vrot.lane.b32.xlu0 %v1381, 104
        %v1594 = vpop.permute.xlu0 %1593
        %1595 = vrot.lane.b32.xlu0 %v1381, 72
        %v1596 = vpop.permute.xlu0 %1595
        %v1598 = vsel %vm1385, %v1594, 0
        %v1601 = vsel %vm1385, %v1596, 0
        %1603 = vmatpush.bf16.xpose.msra.mxu0 0
        %1604 = vmatpush.bf16.xpose.msra.mxu0 0
        %1605 = vmatpush.bf16.xpose.msra.mxu0 0
        %1606 = vmatpush.bf16.xpose.msra.mxu0 0
        %1607 = vmatpush.bf16.xpose.msra.mxu0 0
        %1608 = vmatpush.bf16.xpose.msra.mxu0 0
        %1609 = vmatpush.bf16.xpose.msra.mxu0 0
        %1610 = vmatpush.bf16.xpose.msra.mxu0 %v1601
        %1611 = vmatmul.bf16.gmra.mxu0 %v1598
        %v1612 = vpop.f32.mrf.mxu0
        %v1613 = vadd.f32 0.0, %v1612
        %v1614 = vpop.f32.mrf.mxu0
        %1615 = vdwg.mxu0
        %v1616 = vmul.f32 %v1613, 0.35355338
        %v1617 = vsel %vm1385, %v1616, -inf
        %1618 = vmax.xlane.f32.xlu0 %v1617
        %v1619 = vpop.xlane.xlu0 %1618
        %v1620 = vsub.f32 %v1616, %v1619
        %v1621 = vmul.f32 %v1620, 1.442695
        %v1622 = vpow.pop %v1621
        %v1623 = vsel %vm1385, %v1622, 0.0
        %1624 = vadd.xlane.f32.xlu0 %v1623
        %v1625 = vpop.xlane.xlu0 %1624
        %v1626 = vrcp.pop %v1625
        %v1627 = vmul.f32 %v1625, %v1626
        %v1628 = vsub.f32 1.0, %v1627
        %v1629 = vmul.f32 %v1626, %v1628
        %v1630 = vadd.f32 %v1626, %v1629
        %vm1631 = vweird.f32 %v1625
        %vm1632 = vweird.f32 %v1626
        %vm1633 = vmor %vm1631, %vm1632
        %v1634 = vsel %vm1633, %v1626, %v1630
        %v1635 = vand.u32 2147483647, %v1625
        %vm1636 = vcmp.eq.f32.partialorder %v1635, 8.507059e+37
        %v1637 = vand.u32 %v1625, 2147483648
        %v1638 = vor.u32 1.1754944e-38, %v1637
        %v1639 = vsel %vm1636, %v1638, %v1634
        %v1640 = vmul.f32 %v1622, %v1639
        %v1641 = vpack.c.bf16 %v1640, %v1640
        %1642 = vrot.lane.b32.xlu0 %v1381, 40
        %v1643 = vpop.permute.xlu0 %1642
        %v1645 = vsel %vm1385, %v1641, 0
        %v1648 = vsel %vm1436, %v1643, 0
        %1650 = vmatpush.bf16.msra.mxu0 0
        %1651 = vmatpush.bf16.msra.mxu0 0
        %1652 = vmatpush.bf16.msra.mxu0 0
        %1653 = vmatpush.bf16.msra.mxu0 0
        %1654 = vmatpush.bf16.msra.mxu0 0
        %1655 = vmatpush.bf16.msra.mxu0 0
        %1656 = vmatpush.bf16.msra.mxu0 0
        %1657 = vmatpush.bf16.msra.mxu0 %v1648
        %1658 = vmatmul.bf16.gmra.mxu0 %v1645
        %v1659 = vpop.f32.mrf.mxu0
        %v1660 = vadd.f32 0.0, %v1659
        %v1661 = vpop.f32.mrf.mxu0
        %1662 = vdwg.mxu0
        %1664 = vrot.lane.b32.xlu0 %v1520, 8
        %v1665 = vpop.permute.xlu0 %1664
        %1668 = vrot.lane.b32.xlu0 %v1590, 16
        %v1669 = vpop.permute.xlu0 %1668
        %1672 = vrot.lane.b32.xlu0 %v1660, 24
        %v1673 = vpop.permute.xlu0 %1672
        %v1675 = vsel %vm1385, %v1450, %v1665
        %vm1676 = vcmask 130048
        %v1677 = vsel %vm1676, %v1675, %v1669
        %vm1678 = vcmask 195584
        %v1679 = vsel %vm1678, %v1677, %v1673
        %v1680 = vpack.c.bf16 %v1679, %v1679
        %v1682 = vperm.slane %v1378, 0
        %v1688 = vunpack.c.l.b16 %v1374
        %v1689 = vunpack.c.l.b16 %v1375
        %v1690 = vunpack.c.l.b16 %v1376
        %v1691 = vunpack.c.l.b16 %v1377
        %v1692 = vpack.c.b16 %v1689, %v1688
        %v1693 = vpack.c.b16 %v1691, %v1690
        %v1697 = vsel %vm1357, %v1680, 0
        %1699 = vmatpush.bf16.msra.mxu0 0
        %1700 = vmatpush.bf16.msra.mxu0 0
        %1701 = vmatpush.bf16.msra.mxu0 0
        %1702 = vmatpush.bf16.msra.mxu0 0
        %1703 = vmatpush.bf16.msra.mxu0 0
        %1704 = vmatpush.bf16.msra.mxu0 0
        %1705 = vmatpush.bf16.msra.mxu0 %v1693
        %1706 = vmatpush.bf16.msra.mxu0 %v1692
        %1707 = vmatmul.bf16.gmra.mxu0 %v1697
        %v1708 = vpop.f32.mrf.mxu0
        %v1709 = vadd.f32 %v1682, %v1708
        %v1710 = vpop.f32.mrf.mxu0
        %1711 = vdwg.mxu0
        %v1712 = vadd.f32 %v1709, %v1334
        %v1713 = vsel %vm1357, %v1712, 0.0
        %1714 = vadd.xlane.f32.xlu0 %v1713
        %v1715 = vpop.xlane.xlu0 %1714
        %v1716 = vrcp.pop 32.0
        %v1717 = vmul.f32 32.0, %v1716
        %v1718 = vsub.f32 1.0, %v1717
        %v1719 = vmul.f32 %v1716, %v1718
        %v1720 = vadd.f32 %v1716, %v1719
        %vm1721 = vweird.f32 %v1716
        %v1722 = vsel %vm1721, %v1716, %v1720
        %v1723 = vmul.f32 %v1715, %v1722
        %v1724 = vsub.f32 %v1712, %v1723
        %v1725 = vmul.f32 %v1724, %v1724
        %v1726 = vsel %vm1357, %v1725, 0.0
        %1727 = vadd.xlane.f32.xlu0 %v1726
        %v1728 = vpop.xlane.xlu0 %1727
        %v1729 = vmul.f32 %v1728, %v1722
        %v1730 = vadd.f32 %v1729, 1e-05
        %v1731 = vrsqrt.pop %v1730
        %v1732 = vmul.f32 %v1731, %v1730
        %v1733 = vmul.f32 %v1732, %v1731
        %v1734 = vmul.f32 0.5, %v1733
        %v1735 = vsub.f32 1.5, %v1734
        %v1736 = vmul.f32 %v1731, %v1735
        %vm1737 = vweird.f32 %v1730
        %vm1738 = vweird.f32 %v1731
        %vm1739 = vmor %vm1737, %vm1738
        %v1740 = vsel %vm1739, %v1731, %v1736
        %v1741 = vmul.f32 %v1724, %v1740
        %v1743 = vperm.slane %v1379, 0
        %v1745 = vmul.f32 %v1741, %v1743
        %v1747 = vperm.slane %v1380, 0
        %v1749 = vadd.f32 %v1745, %v1747
        %v1750 = vld [vmem:[%s17] sm:$0xf]
        %v1751 = vld [vmem:[%s17 + $0x4] sm:$0xf]
        %v1752 = vld [vmem:[%s17 + $0x8] sm:$0xf]
        %v1753 = vld [vmem:[%s17 + $0xc] sm:$0xf]
        %v1754 = vld [vmem:[%s19] sm:$0x1]
        %v1755 = vld [vmem:[%s21] sm:$0xf]
        %v1756 = vld [vmem:[%s21 + $0x4] sm:$0xf]
        %v1757 = vld [vmem:[%s21 + $0x8] sm:$0xf]
        %v1758 = vld [vmem:[%s21 + $0xc] sm:$0xf]
        %v1759 = vld [vmem:[%s21 + $0x10] sm:$0xf]
        %v1760 = vld [vmem:[%s21 + $0x14] sm:$0xf]
        %v1761 = vld [vmem:[%s21 + $0x18] sm:$0xf]
        %v1762 = vld [vmem:[%s21 + $0x1c] sm:$0xf]
        %v1763 = vld [vmem:[%s21 + $0x20] sm:$0xf]
        %v1764 = vld [vmem:[%s21 + $0x24] sm:$0xf]
        %v1765 = vld [vmem:[%s21 + $0x28] sm:$0xf]
        %v1766 = vld [vmem:[%s21 + $0x2c] sm:$0xf]
        %v1767 = vld [vmem:[%s21 + $0x30] sm:$0xf]
        %v1768 = vld [vmem:[%s21 + $0x34] sm:$0xf]
        %v1769 = vld [vmem:[%s21 + $0x38] sm:$0xf]
        %v1770 = vld [vmem:[%s21 + $0x3c] sm:$0xf]
        %v1771 = vld [vmem:[%s23] sm:$0x1]
        %v1772 = vld [vmem:[%s25] sm:$0x1]
        %v1773 = vld [vmem:[%s27] sm:$0x1]
        %v1774 = vpack.c.bf16 %v1749, %v1749
        %v1776 = vperm.slane %v1754, 0
        %v1782 = vunpack.c.l.b16 %v1750
        %v1783 = vunpack.c.l.b16 %v1751
        %v1784 = vunpack.c.l.b16 %v1752
        %v1785 = vunpack.c.l.b16 %v1753
        %v1786 = vpack.c.b16 %v1783, %v1782
        %v1787 = vpack.c.b16 %v1785, %v1784
        %v1791 = vsel %vm1357, %v1774, 0
        %1793 = vmatpush.bf16.msra.mxu0 0
        %1794 = vmatpush.bf16.msra.mxu0 0
        %1795 = vmatpush.bf16.msra.mxu0 0
        %1796 = vmatpush.bf16.msra.mxu0 0
        %1797 = vmatpush.bf16.msra.mxu0 0
        %1798 = vmatpush.bf16.msra.mxu0 0
        %1799 = vmatpush.bf16.msra.mxu0 %v1787
        %1800 = vmatpush.bf16.msra.mxu0 %v1786
        %1801 = vmatmul.bf16.gmra.mxu0 %v1791
        %v1802 = vpop.f32.mrf.mxu0
        %v1803 = vadd.f32 %v1776, %v1802
        %v1804 = vpop.f32.mrf.mxu0
        %1805 = vdwg.mxu0
        %v1806 = vmax.f32 %v1803, 0.0
        %v1807 = vpack.c.bf16 %v1806, %v1806
        %v1809 = vperm.slane %v1771, 0
        %v1827 = vunpack.c.l.b16 %v1755
        %v1828 = vunpack.c.l.b16 %v1756
        %v1829 = vunpack.c.l.b16 %v1757
        %v1830 = vunpack.c.l.b16 %v1758
        %v1831 = vunpack.c.l.b16 %v1759
        %v1832 = vunpack.c.l.b16 %v1760
        %v1833 = vunpack.c.l.b16 %v1761
        %v1834 = vunpack.c.l.b16 %v1762
        %v1835 = vunpack.c.l.b16 %v1763
        %v1836 = vunpack.c.l.b16 %v1764
        %v1837 = vunpack.c.l.b16 %v1765
        %v1838 = vunpack.c.l.b16 %v1766
        %v1839 = vunpack.c.l.b16 %v1767
        %v1840 = vunpack.c.l.b16 %v1768
        %v1841 = vunpack.c.l.b16 %v1769
        %v1842 = vunpack.c.l.b16 %v1770
        %v1843 = vpack.c.b16 %v1828, %v1827
        %v1844 = vpack.c.b16 %v1830, %v1829
        %v1845 = vpack.c.b16 %v1832, %v1831
        %v1846 = vpack.c.b16 %v1834, %v1833
        %v1847 = vpack.c.b16 %v1836, %v1835
        %v1848 = vpack.c.b16 %v1838, %v1837
        %v1849 = vpack.c.b16 %v1840, %v1839
        %v1850 = vpack.c.b16 %v1842, %v1841
        %1859 = vmatpush.bf16.msra.mxu0 %v1850
        %1860 = vmatpush.bf16.msra.mxu0 %v1849
        %1861 = vmatpush.bf16.msra.mxu0 %v1848
        %1862 = vmatpush.bf16.msra.mxu0 %v1847
        %1863 = vmatpush.bf16.msra.mxu0 %v1846
        %1864 = vmatpush.bf16.msra.mxu0 %v1845
        %1865 = vmatpush.bf16.msra.mxu0 %v1844
        %1866 = vmatpush.bf16.msra.mxu0 %v1843
        %1867 = vmatmul.bf16.gmra.mxu0 %v1807
        %v1868 = vpop.f32.mrf.mxu0
        %v1869 = vadd.f32 %v1809, %v1868
        %v1870 = vpop.f32.mrf.mxu0
        %1871 = vdwg.mxu0
        %v1872 = vadd.f32 %v1869, %v1749
        %v1873 = vsel %vm1357, %v1872, 0.0
        %1874 = vadd.xlane.f32.xlu0 %v1873
        %v1875 = vpop.xlane.xlu0 %1874
        %v1876 = vmul.f32 %v1875, %v1722
        %v1877 = vsub.f32 %v1872, %v1876
        %v1878 = vmul.f32 %v1877, %v1877
        %v1879 = vsel %vm1357, %v1878, 0.0
        %1880 = vadd.xlane.f32.xlu0 %v1879
        %v1881 = vpop.xlane.xlu0 %1880
        %v1882 = vmul.f32 %v1881, %v1722
        %v1883 = vadd.f32 %v1882, 1e-05
        %v1884 = vrsqrt.pop %v1883
        %v1885 = vmul.f32 %v1884, %v1883
        %v1886 = vmul.f32 %v1885, %v1884
        %v1887 = vmul.f32 0.5, %v1886
        %v1888 = vsub.f32 1.5, %v1887
        %v1889 = vmul.f32 %v1884, %v1888
        %vm1890 = vweird.f32 %v1883
        %vm1891 = vweird.f32 %v1884
        %vm1892 = vmor %vm1890, %vm1891
        %v1893 = vsel %vm1892, %v1884, %v1889
        %v1894 = vmul.f32 %v1877, %v1893
        %v1896 = vperm.slane %v1772, 0
        %v1898 = vmul.f32 %v1894, %v1896
        %v1900 = vperm.slane %v1773, 0
        %v1902 = vadd.f32 %v1898, %v1900
        %v1903 = vpack.c.bf16 %v1335, %v1335
        %v1904 = vld [vmem:[%s29] sm:$0xf]
        %v1905 = vld [vmem:[%s29 + $0x4] sm:$0xf]
        %v1906 = vld [vmem:[%s29 + $0x8] sm:$0xf]
        %v1907 = vld [vmem:[%s29 + $0xc] sm:$0xf]
        %v1908 = vld [vmem:[#allocation2] sm:$0x1]
        %v1910 = vperm.slane %v1908, 0
        %v1916 = vunpack.c.l.b16 %v1904
        %v1917 = vunpack.c.l.b16 %v1905
        %v1918 = vunpack.c.l.b16 %v1906
        %v1919 = vunpack.c.l.b16 %v1907
        %v1920 = vpack.c.b16 %v1917, %v1916
        %v1921 = vpack.c.b16 %v1919, %v1918
        %v1925 = vsel %vm1357, %v1903, 0
        %1927 = vmatpush.bf16.msra.mxu0 0
        %1928 = vmatpush.bf16.msra.mxu0 0
        %1929 = vmatpush.bf16.msra.mxu0 0
        %1930 = vmatpush.bf16.msra.mxu0 0
        %1931 = vmatpush.bf16.msra.mxu0 0
        %1932 = vmatpush.bf16.msra.mxu0 0
        %1933 = vmatpush.bf16.msra.mxu0 %v1921
        %1934 = vmatpush.bf16.msra.mxu0 %v1920
        %1935 = vmatmul.bf16.gmra.mxu0 %v1925
        %v1936 = vpop.f32.mrf.mxu0
        %v1937 = vadd.f32 %v1910, %v1936
        %v1938 = vpop.f32.mrf.mxu0
        %1939 = vdwg.mxu0
        %v1940 = vld [vmem:[%s33] sm:$0xf]
        %v1941 = vld [vmem:[%s33 + $0x4] sm:$0xf]
        %v1942 = vld [vmem:[%s33 + $0x8] sm:$0xf]
        %v1943 = vld [vmem:[%s33 + $0xc] sm:$0xf]
        %v1944 = vld [vmem:[#allocation5] sm:$0x1]
        %v1945 = vld [vmem:[#allocation7] sm:$0x1]
        %v1946 = vld [vmem:[#allocation8] sm:$0x1]
        %v1947 = vlaneseq
        %v1948 = vshrl.u32 %v1947, 7
        %v1949 = vlaneseq
        %v1950 = vand.u32 %v1949, 127
        %vm1951 = vcmp.le.s32.totalorder %v1950, %v1948
        %v1952 = vpack.c.bf16 %v1937, %v1937
        %1954 = vrot.lane.b32.xlu0 %v1952, 96
        %v1955 = vpop.permute.xlu0 %1954
        %v1957 = vsel %vm1385, %v1952, 0
        %v1960 = vsel %vm1385, %v1955, 0
        %1962 = vmatpush.bf16.xpose.msra.mxu0 0
        %1963 = vmatpush.bf16.xpose.msra.mxu0 0
        %1964 = vmatpush.bf16.xpose.msra.mxu0 0
        %1965 = vmatpush.bf16.xpose.msra.mxu0 0
        %1966 = vmatpush.bf16.xpose.msra.mxu0 0
        %1967 = vmatpush.bf16.xpose.msra.mxu0 0
        %1968 = vmatpush.bf16.xpose.msra.mxu0 0
        %1969 = vmatpush.bf16.xpose.msra.mxu0 %v1960
        %1970 = vmatmul.bf16.gmra.mxu0 %v1957
        %v1971 = vpop.f32.mrf.mxu0
        %v1972 = vadd.f32 0.0, %v1971
        %v1973 = vpop.f32.mrf.mxu0
        %1974 = vdwg.mxu0
        %v1975 = vmul.f32 %v1972, 0.35355338
        %v1976 = vsel %vm1951, %v1975, -1e+30
        %v1977 = vsel %vm1385, %v1976, -inf
        %1978 = vmax.xlane.f32.xlu0 %v1977
        %v1979 = vpop.xlane.xlu0 %1978
        %v1980 = vsub.f32 %v1976, %v1979
        %v1981 = vmul.f32 %v1980, 1.442695
        %v1982 = vpow.pop %v1981
        %v1983 = vsel %vm1385, %v1982, 0.0
        %1984 = vadd.xlane.f32.xlu0 %v1983
        %v1985 = vpop.xlane.xlu0 %1984
        %v1986 = vrcp.pop %v1985
        %v1987 = vmul.f32 %v1985, %v1986
        %v1988 = vsub.f32 1.0, %v1987
        %v1989 = vmul.f32 %v1986, %v1988
        %v1990 = vadd.f32 %v1986, %v1989
        %vm1991 = vweird.f32 %v1985
        %vm1992 = vweird.f32 %v1986
        %vm1993 = vmor %vm1991, %vm1992
        %v1994 = vsel %vm1993, %v1986, %v1990
        %v1995 = vand.u32 2147483647, %v1985
        %vm1996 = vcmp.eq.f32.partialorder %v1995, 8.507059e+37
        %v1997 = vand.u32 %v1985, 2147483648
        %v1998 = vor.u32 1.1754944e-38, %v1997
        %v1999 = vsel %vm1996, %v1998, %v1994
        %v2000 = vmul.f32 %v1982, %v1999
        %v2001 = vpack.c.bf16 %v2000, %v2000
        %2002 = vrot.lane.b32.xlu0 %v1952, 64
        %v2003 = vpop.permute.xlu0 %2002
        %v2005 = vsel %vm1385, %v2001, 0
        %v2008 = vsel %vm1436, %v2003, 0
        %2010 = vmatpush.bf16.msra.mxu0 0
        %2011 = vmatpush.bf16.msra.mxu0 0
        %2012 = vmatpush.bf16.msra.mxu0 0
        %2013 = vmatpush.bf16.msra.mxu0 0
        %2014 = vmatpush.bf16.msra.mxu0 0
        %2015 = vmatpush.bf16.msra.mxu0 0
        %2016 = vmatpush.bf16.msra.mxu0 0
        %2017 = vmatpush.bf16.msra.mxu0 %v2008
        %2018 = vmatmul.bf16.gmra.mxu0 %v2005
        %v2019 = vpop.f32.mrf.mxu0
        %v2020 = vadd.f32 0.0, %v2019
        %v2021 = vpop.f32.mrf.mxu0
        %2022 = vdwg.mxu0
        %2023 = vrot.lane.b32.xlu0 %v1952, 120
        %v2024 = vpop.permute.xlu0 %2023
        %2025 = vrot.lane.b32.xlu0 %v1952, 88
        %v2026 = vpop.permute.xlu0 %2025
        %v2028 = vsel %vm1385, %v2024, 0
        %v2031 = vsel %vm1385, %v2026, 0
        %2033 = vmatpush.bf16.xpose.msra.mxu0 0
        %2034 = vmatpush.bf16.xpose.msra.mxu0 0
        %2035 = vmatpush.bf16.xpose.msra.mxu0 0
        %2036 = vmatpush.bf16.xpose.msra.mxu0 0
        %2037 = vmatpush.bf16.xpose.msra.mxu0 0
        %2038 = vmatpush.bf16.xpose.msra.mxu0 0
        %2039 = vmatpush.bf16.xpose.msra.mxu0 0
        %2040 = vmatpush.bf16.xpose.msra.mxu0 %v2031
        %2041 = vmatmul.bf16.gmra.mxu0 %v2028
        %v2042 = vpop.f32.mrf.mxu0
        %v2043 = vadd.f32 0.0, %v2042
        %v2044 = vpop.f32.mrf.mxu0
        %2045 = vdwg.mxu0
        %v2046 = vmul.f32 %v2043, 0.35355338
        %v2047 = vsel %vm1951, %v2046, -1e+30
        %v2048 = vsel %vm1385, %v2047, -inf
        %2049 = vmax.xlane.f32.xlu0 %v2048
        %v2050 = vpop.xlane.xlu0 %2049
        %v2051 = vsub.f32 %v2047, %v2050
        %v2052 = vmul.f32 %v2051, 1.442695
        %v2053 = vpow.pop %v2052
        %v2054 = vsel %vm1385, %v2053, 0.0
        %2055 = vadd.xlane.f32.xlu0 %v2054
        %v2056 = vpop.xlane.xlu0 %2055
        %v2057 = vrcp.pop %v2056
        %v2058 = vmul.f32 %v2056, %v2057
        %v2059 = vsub.f32 1.0, %v2058
        %v2060 = vmul.f32 %v2057, %v2059
        %v2061 = vadd.f32 %v2057, %v2060
        %vm2062 = vweird.f32 %v2056
        %vm2063 = vweird.f32 %v2057
        %vm2064 = vmor %vm2062, %vm2063
        %v2065 = vsel %vm2064, %v2057, %v2061
        %v2066 = vand.u32 2147483647, %v2056
        %vm2067 = vcmp.eq.f32.partialorder %v2066, 8.507059e+37
        %v2068 = vand.u32 %v2056, 2147483648
        %v2069 = vor.u32 1.1754944e-38, %v2068
        %v2070 = vsel %vm2067, %v2069, %v2065
        %v2071 = vmul.f32 %v2053, %v2070
        %v2072 = vpack.c.bf16 %v2071, %v2071
        %2073 = vrot.lane.b32.xlu0 %v1952, 56
        %v2074 = vpop.permute.xlu0 %2073
        %v2076 = vsel %vm1385, %v2072, 0
        %v2079 = vsel %vm1436, %v2074, 0
        %2081 = vmatpush.bf16.msra.mxu0 0
        %2082 = vmatpush.bf16.msra.mxu0 0
        %2083 = vmatpush.bf16.msra.mxu0 0
        %2084 = vmatpush.bf16.msra.mxu0 0
        %2085 = vmatpush.bf16.msra.mxu0 0
        %2086 = vmatpush.bf16.msra.mxu0 0
        %2087 = vmatpush.bf16.msra.mxu0 0
        %2088 = vmatpush.bf16.msra.mxu0 %v2079
        %2089 = vmatmul.bf16.gmra.mxu0 %v2076
        %v2090 = vpop.f32.mrf.mxu0
        %v2091 = vadd.f32 0.0, %v2090
        %v2092 = vpop.f32.mrf.mxu0
        %2093 = vdwg.mxu0
        %2094 = vrot.lane.b32.xlu0 %v1952, 112
        %v2095 = vpop.permute.xlu0 %2094
        %2096 = vrot.lane.b32.xlu0 %v1952, 80
        %v2097 = vpop.permute.xlu0 %2096
        %v2099 = vsel %vm1385, %v2095, 0
        %v2102 = vsel %vm1385, %v2097, 0
        %2104 = vmatpush.bf16.xpose.msra.mxu0 0
        %2105 = vmatpush.bf16.xpose.msra.mxu0 0
        %2106 = vmatpush.bf16.xpose.msra.mxu0 0
        %2107 = vmatpush.bf16.xpose.msra.mxu0 0
        %2108 = vmatpush.bf16.xpose.msra.mxu0 0
        %2109 = vmatpush.bf16.xpose.msra.mxu0 0
        %2110 = vmatpush.bf16.xpose.msra.mxu0 0
        %2111 = vmatpush.bf16.xpose.msra.mxu0 %v2102
        %2112 = vmatmul.bf16.gmra.mxu0 %v2099
        %v2113 = vpop.f32.mrf.mxu0
        %v2114 = vadd.f32 0.0, %v2113
        %v2115 = vpop.f32.mrf.mxu0
        %2116 = vdwg.mxu0
        %v2117 = vmul.f32 %v2114, 0.35355338
        %v2118 = vsel %vm1951, %v2117, -1e+30
        %v2119 = vsel %vm1385, %v2118, -inf
        %2120 = vmax.xlane.f32.xlu0 %v2119
        %v2121 = vpop.xlane.xlu0 %2120
        %v2122 = vsub.f32 %v2118, %v2121
        %v2123 = vmul.f32 %v2122, 1.442695
        %v2124 = vpow.pop %v2123
        %v2125 = vsel %vm1385, %v2124, 0.0
        %2126 = vadd.xlane.f32.xlu0 %v2125
        %v2127 = vpop.xlane.xlu0 %2126
        %v2128 = vrcp.pop %v2127
        %v2129 = vmul.f32 %v2127, %v2128
        %v2130 = vsub.f32 1.0, %v2129
        %v2131 = vmul.f32 %v2128, %v2130
        %v2132 = vadd.f32 %v2128, %v2131
        %vm2133 = vweird.f32 %v2127
        %vm2134 = vweird.f32 %v2128
        %vm2135 = vmor %vm2133, %vm2134
        %v2136 = vsel %vm2135, %v2128, %v2132
        %v2137 = vand.u32 2147483647, %v2127
        %vm2138 = vcmp.eq.f32.partialorder %v2137, 8.507059e+37
        %v2139 = vand.u32 %v2127, 2147483648
        %v2140 = vor.u32 1.1754944e-38, %v2139
        %v2141 = vsel %vm2138, %v2140, %v2136
        %v2142 = vmul.f32 %v2124, %v2141
        %v2143 = vpack.c.bf16 %v2142, %v2142
        %2144 = vrot.lane.b32.xlu0 %v1952, 48
        %v2145 = vpop.permute.xlu0 %2144
        %v2147 = vsel %vm1385, %v2143, 0
        %v2150 = vsel %vm1436, %v2145, 0
        %2152 = vmatpush.bf16.msra.mxu0 0
        %2153 = vmatpush.bf16.msra.mxu0 0
        %2154 = vmatpush.bf16.msra.mxu0 0
        %2155 = vmatpush.bf16.msra.mxu0 0
        %2156 = vmatpush.bf16.msra.mxu0 0
        %2157 = vmatpush.bf16.msra.mxu0 0
        %2158 = vmatpush.bf16.msra.mxu0 0
        %2159 = vmatpush.bf16.msra.mxu0 %v2150
        %2160 = vmatmul.bf16.gmra.mxu0 %v2147
        %v2161 = vpop.f32.mrf.mxu0
        %v2162 = vadd.f32 0.0, %v2161
        %v2163 = vpop.f32.mrf.mxu0
        %2164 = vdwg.mxu0
        %2165 = vrot.lane.b32.xlu0 %v1952, 104
        %v2166 = vpop.permute.xlu0 %2165
        %2167 = vrot.lane.b32.xlu0 %v1952, 72
        %v2168 = vpop.permute.xlu0 %2167
        %v2170 = vsel %vm1385, %v2166, 0
        %v2173 = vsel %vm1385, %v2168, 0
        %2175 = vmatpush.bf16.xpose.msra.mxu0 0
        %2176 = vmatpush.bf16.xpose.msra.mxu0 0
        %2177 = vmatpush.bf16.xpose.msra.mxu0 0
        %2178 = vmatpush.bf16.xpose.msra.mxu0 0
        %2179 = vmatpush.bf16.xpose.msra.mxu0 0
        %2180 = vmatpush.bf16.xpose.msra.mxu0 0
        %2181 = vmatpush.bf16.xpose.msra.mxu0 0
        %2182 = vmatpush.bf16.xpose.msra.mxu0 %v2173
        %2183 = vmatmul.bf16.gmra.mxu0 %v2170
        %v2184 = vpop.f32.mrf.mxu0
        %v2185 = vadd.f32 0.0, %v2184
        %v2186 = vpop.f32.mrf.mxu0
        %2187 = vdwg.mxu0
        %v2188 = vmul.f32 %v2185, 0.35355338
        %v2189 = vsel %vm1951, %v2188, -1e+30
        %v2190 = vsel %vm1385, %v2189, -inf
        %2191 = vmax.xlane.f32.xlu0 %v2190
        %v2192 = vpop.xlane.xlu0 %2191
        %v2193 = vsub.f32 %v2189, %v2192
        %v2194 = vmul.f32 %v2193, 1.442695
        %v2195 = vpow.pop %v2194
        %v2196 = vsel %vm1385, %v2195, 0.0
        %2197 = vadd.xlane.f32.xlu0 %v2196
        %v2198 = vpop.xlane.xlu0 %2197
        %v2199 = vrcp.pop %v2198
        %v2200 = vmul.f32 %v2198, %v2199
        %v2201 = vsub.f32 1.0, %v2200
        %v2202 = vmul.f32 %v2199, %v2201
        %v2203 = vadd.f32 %v2199, %v2202
        %vm2204 = vweird.f32 %v2198
        %vm2205 = vweird.f32 %v2199
        %vm2206 = vmor %vm2204, %vm2205
        %v2207 = vsel %vm2206, %v2199, %v2203
        %v2208 = vand.u32 2147483647, %v2198
        %vm2209 = vcmp.eq.f32.partialorder %v2208, 8.507059e+37
        %v2210 = vand.u32 %v2198, 2147483648
        %v2211 = vor.u32 1.1754944e-38, %v2210
        %v2212 = vsel %vm2209, %v2211, %v2207
        %v2213 = vmul.f32 %v2195, %v2212
        %v2214 = vpack.c.bf16 %v2213, %v2213
        %2215 = vrot.lane.b32.xlu0 %v1952, 40
        %v2216 = vpop.permute.xlu0 %2215
        %v2218 = vsel %vm1385, %v2214, 0
        %v2221 = vsel %vm1436, %v2216, 0
        %2223 = vmatpush.bf16.msra.mxu0 0
        %2224 = vmatpush.bf16.msra.mxu0 0
        %2225 = vmatpush.bf16.msra.mxu0 0
        %2226 = vmatpush.bf16.msra.mxu0 0
        %2227 = vmatpush.bf16.msra.mxu0 0
        %2228 = vmatpush.bf16.msra.mxu0 0
        %2229 = vmatpush.bf16.msra.mxu0 0
        %2230 = vmatpush.bf16.msra.mxu0 %v2221
        %2231 = vmatmul.bf16.gmra.mxu0 %v2218
        %v2232 = vpop.f32.mrf.mxu0
        %v2233 = vadd.f32 0.0, %v2232
        %v2234 = vpop.f32.mrf.mxu0
        %2235 = vdwg.mxu0
        %2237 = vrot.lane.b32.xlu0 %v2091, 8
        %v2238 = vpop.permute.xlu0 %2237
        %2241 = vrot.lane.b32.xlu0 %v2162, 16
        %v2242 = vpop.permute.xlu0 %2241
        %2245 = vrot.lane.b32.xlu0 %v2233, 24
        %v2246 = vpop.permute.xlu0 %2245
        %v2248 = vsel %vm1385, %v2020, %v2238
        %v2249 = vsel %vm1676, %v2248, %v2242
        %v2250 = vsel %vm1678, %v2249, %v2246
        %v2251 = vpack.c.bf16 %v2250, %v2250
        %v2253 = vperm.slane %v1944, 0
        %v2259 = vunpack.c.l.b16 %v1940
        %v2260 = vunpack.c.l.b16 %v1941
        %v2261 = vunpack.c.l.b16 %v1942
        %v2262 = vunpack.c.l.b16 %v1943
        %v2263 = vpack.c.b16 %v2260, %v2259
        %v2264 = vpack.c.b16 %v2262, %v2261
        %v2268 = vsel %vm1357, %v2251, 0
        %2270 = vmatpush.bf16.msra.mxu0 0
        %2271 = vmatpush.bf16.msra.mxu0 0
        %2272 = vmatpush.bf16.msra.mxu0 0
        %2273 = vmatpush.bf16.msra.mxu0 0
        %2274 = vmatpush.bf16.msra.mxu0 0
        %2275 = vmatpush.bf16.msra.mxu0 0
        %2276 = vmatpush.bf16.msra.mxu0 %v2264
        %2277 = vmatpush.bf16.msra.mxu0 %v2263
        %2278 = vmatmul.bf16.gmra.mxu0 %v2268
        %v2279 = vpop.f32.mrf.mxu0
        %v2280 = vadd.f32 %v2253, %v2279
        %v2281 = vpop.f32.mrf.mxu0
        %2282 = vdwg.mxu0
        %v2283 = vadd.f32 %v2280, %v1335
        %v2284 = vsel %vm1357, %v2283, 0.0
        %2285 = vadd.xlane.f32.xlu0 %v2284
        %v2286 = vpop.xlane.xlu0 %2285
        %v2287 = vmul.f32 %v2286, %v1722
        %v2288 = vsub.f32 %v2283, %v2287
        %v2289 = vmul.f32 %v2288, %v2288
        %v2290 = vsel %vm1357, %v2289, 0.0
        %2291 = vadd.xlane.f32.xlu0 %v2290
        %v2292 = vpop.xlane.xlu0 %2291
        %v2293 = vmul.f32 %v2292, %v1722
        %v2294 = vadd.f32 %v2293, 1e-05
        %v2295 = vrsqrt.pop %v2294
        %v2296 = vmul.f32 %v2295, %v2294
        %v2297 = vmul.f32 %v2296, %v2295
        %v2298 = vmul.f32 0.5, %v2297
        %v2299 = vsub.f32 1.5, %v2298
        %v2300 = vmul.f32 %v2295, %v2299
        %vm2301 = vweird.f32 %v2294
        %vm2302 = vweird.f32 %v2295
        %vm2303 = vmor %vm2301, %vm2302
        %v2304 = vsel %vm2303, %v2295, %v2300
        %v2305 = vmul.f32 %v2288, %v2304
        %v2307 = vperm.slane %v1945, 0
        %v2309 = vmul.f32 %v2305, %v2307
        %v2311 = vperm.slane %v1946, 0
        %v2313 = vadd.f32 %v2309, %v2311
        %v2314 = vpack.c.bf16 %v2313, %v2313
        %v2315 = vld [vmem:[%s41] sm:$0xf]
        %v2316 = vld [vmem:[%s41 + $0x4] sm:$0xf]
        %v2317 = vld [vmem:[%s41 + $0x8] sm:$0xf]
        %v2318 = vld [vmem:[%s41 + $0xc] sm:$0xf]
        %v2319 = vld [vmem:[#allocation10] sm:$0x1]
        %v2321 = vperm.slane %v2319, 0
        %v2327 = vunpack.c.l.b16 %v2315
        %v2328 = vunpack.c.l.b16 %v2316
        %v2329 = vunpack.c.l.b16 %v2317
        %v2330 = vunpack.c.l.b16 %v2318
        %v2331 = vpack.c.b16 %v2328, %v2327
        %v2332 = vpack.c.b16 %v2330, %v2329
        %v2336 = vsel %vm1357, %v2314, 0
        %2338 = vmatpush.bf16.msra.mxu0 0
        %2339 = vmatpush.bf16.msra.mxu0 0
        %2340 = vmatpush.bf16.msra.mxu0 0
        %2341 = vmatpush.bf16.msra.mxu0 0
        %2342 = vmatpush.bf16.msra.mxu0 0
        %2343 = vmatpush.bf16.msra.mxu0 0
        %2344 = vmatpush.bf16.msra.mxu0 %v2332
        %2345 = vmatpush.bf16.msra.mxu0 %v2331
        %2346 = vmatmul.bf16.gmra.mxu0 %v2336
        %v2347 = vpop.f32.mrf.mxu0
        %v2348 = vadd.f32 %v2321, %v2347
        %v2349 = vpop.f32.mrf.mxu0
        %2350 = vdwg.mxu0
        %v2351 = vpack.c.bf16 %v1902, %v1902
        %v2352 = vld [vmem:[%s45] sm:$0xf]
        %v2353 = vld [vmem:[%s45 + $0x4] sm:$0xf]
        %v2354 = vld [vmem:[%s45 + $0x8] sm:$0xf]
        %v2355 = vld [vmem:[%s45 + $0xc] sm:$0xf]
        %v2356 = vld [vmem:[#allocation11] sm:$0x1]
        %v2358 = vperm.slane %v2356, 0
        %v2364 = vunpack.c.l.b16 %v2352
        %v2365 = vunpack.c.l.b16 %v2353
        %v2366 = vunpack.c.l.b16 %v2354
        %v2367 = vunpack.c.l.b16 %v2355
        %v2368 = vpack.c.b16 %v2365, %v2364
        %v2369 = vpack.c.b16 %v2367, %v2366
        %v2373 = vsel %vm1357, %v2351, 0
        %2375 = vmatpush.bf16.msra.mxu0 0
        %2376 = vmatpush.bf16.msra.mxu0 0
        %2377 = vmatpush.bf16.msra.mxu0 0
        %2378 = vmatpush.bf16.msra.mxu0 0
        %2379 = vmatpush.bf16.msra.mxu0 0
        %2380 = vmatpush.bf16.msra.mxu0 0
        %2381 = vmatpush.bf16.msra.mxu0 %v2369
        %2382 = vmatpush.bf16.msra.mxu0 %v2368
        %2383 = vmatmul.bf16.gmra.mxu0 %v2373
        %v2384 = vpop.f32.mrf.mxu0
        %v2385 = vadd.f32 %v2358, %v2384
        %v2386 = vpop.f32.mrf.mxu0
        %2387 = vdwg.mxu0
        %v2388 = vld [vmem:[#allocation13] sm:$0xf]
        %v2389 = vld [vmem:[#allocation13 + $0x4] sm:$0xf]
        %v2390 = vld [vmem:[#allocation13 + $0x8] sm:$0xf]
        %v2391 = vld [vmem:[#allocation13 + $0xc] sm:$0xf]
        %v2392 = vld [vmem:[#allocation14] sm:$0x1]
        %v2393 = vld [vmem:[#allocation16] sm:$0x1]
        %v2394 = vld [vmem:[#allocation17] sm:$0x1]
        %v2395 = vpack.c.bf16 %v2348, %v2348
        %v2396 = vpack.c.bf16 %v2385, %v2385
        %v2398 = vsel %vm1385, %v2395, 0
        %v2401 = vsel %vm1385, %v2396, 0
        %2403 = vmatpush.bf16.xpose.msra.mxu0 0
        %2404 = vmatpush.bf16.xpose.msra.mxu0 0
        %2405 = vmatpush.bf16.xpose.msra.mxu0 0
        %2406 = vmatpush.bf16.xpose.msra.mxu0 0
        %2407 = vmatpush.bf16.xpose.msra.mxu0 0
        %2408 = vmatpush.bf16.xpose.msra.mxu0 0
        %2409 = vmatpush.bf16.xpose.msra.mxu0 0
        %2410 = vmatpush.bf16.xpose.msra.mxu0 %v2401
        %2411 = vmatmul.bf16.gmra.mxu0 %v2398
        %v2412 = vpop.f32.mrf.mxu0
        %v2413 = vadd.f32 0.0, %v2412
        %v2414 = vpop.f32.mrf.mxu0
        %2415 = vdwg.mxu0
        %v2416 = vmul.f32 %v2413, 0.35355338
        %v2417 = vsel %vm1385, %v2416, -inf
        %2418 = vmax.xlane.f32.xlu0 %v2417
        %v2419 = vpop.xlane.xlu0 %2418
        %v2420 = vsub.f32 %v2416, %v2419
        %v2421 = vmul.f32 %v2420, 1.442695
        %v2422 = vpow.pop %v2421
        %v2423 = vsel %vm1385, %v2422, 0.0
        %2424 = vadd.xlane.f32.xlu0 %v2423
        %v2425 = vpop.xlane.xlu0 %2424
        %v2426 = vrcp.pop %v2425
        %v2427 = vmul.f32 %v2425, %v2426
        %v2428 = vsub.f32 1.0, %v2427
        %v2429 = vmul.f32 %v2426, %v2428
        %v2430 = vadd.f32 %v2426, %v2429
        %vm2431 = vweird.f32 %v2425
        %vm2432 = vweird.f32 %v2426
        %vm2433 = vmor %vm2431, %vm2432
        %v2434 = vsel %vm2433, %v2426, %v2430
        %v2435 = vand.u32 2147483647, %v2425
        %vm2436 = vcmp.eq.f32.partialorder %v2435, 8.507059e+37
        %v2437 = vand.u32 %v2425, 2147483648
        %v2438 = vor.u32 1.1754944e-38, %v2437
        %v2439 = vsel %vm2436, %v2438, %v2434
        %v2440 = vmul.f32 %v2422, %v2439
        %v2441 = vpack.c.bf16 %v2440, %v2440
        %2443 = vrot.lane.b32.xlu0 %v2396, 96
        %v2444 = vpop.permute.xlu0 %2443
        %v2446 = vsel %vm1385, %v2441, 0
        %v2449 = vsel %vm1436, %v2444, 0
        %2451 = vmatpush.bf16.msra.mxu0 0
        %2452 = vmatpush.bf16.msra.mxu0 0
        %2453 = vmatpush.bf16.msra.mxu0 0
        %2454 = vmatpush.bf16.msra.mxu0 0
        %2455 = vmatpush.bf16.msra.mxu0 0
        %2456 = vmatpush.bf16.msra.mxu0 0
        %2457 = vmatpush.bf16.msra.mxu0 0
        %2458 = vmatpush.bf16.msra.mxu0 %v2449
        %2459 = vmatmul.bf16.gmra.mxu0 %v2446
        %v2460 = vpop.f32.mrf.mxu0
        %v2461 = vadd.f32 0.0, %v2460
        %v2462 = vpop.f32.mrf.mxu0
        %2463 = vdwg.mxu0
        %2465 = vrot.lane.b32.xlu0 %v2395, 120
        %v2466 = vpop.permute.xlu0 %2465
        %2467 = vrot.lane.b32.xlu0 %v2396, 120
        %v2468 = vpop.permute.xlu0 %2467
        %v2470 = vsel %vm1385, %v2466, 0
        %v2473 = vsel %vm1385, %v2468, 0
        %2475 = vmatpush.bf16.xpose.msra.mxu0 0
        %2476 = vmatpush.bf16.xpose.msra.mxu0 0
        %2477 = vmatpush.bf16.xpose.msra.mxu0 0
        %2478 = vmatpush.bf16.xpose.msra.mxu0 0
        %2479 = vmatpush.bf16.xpose.msra.mxu0 0
        %2480 = vmatpush.bf16.xpose.msra.mxu0 0
        %2481 = vmatpush.bf16.xpose.msra.mxu0 0
        %2482 = vmatpush.bf16.xpose.msra.mxu0 %v2473
        %2483 = vmatmul.bf16.gmra.mxu0 %v2470
        %v2484 = vpop.f32.mrf.mxu0
        %v2485 = vadd.f32 0.0, %v2484
        %v2486 = vpop.f32.mrf.mxu0
        %2487 = vdwg.mxu0
        %v2488 = vmul.f32 %v2485, 0.35355338
        %v2489 = vsel %vm1385, %v2488, -inf
        %2490 = vmax.xlane.f32.xlu0 %v2489
        %v2491 = vpop.xlane.xlu0 %2490
        %v2492 = vsub.f32 %v2488, %v2491
        %v2493 = vmul.f32 %v2492, 1.442695
        %v2494 = vpow.pop %v2493
        %v2495 = vsel %vm1385, %v2494, 0.0
        %2496 = vadd.xlane.f32.xlu0 %v2495
        %v2497 = vpop.xlane.xlu0 %2496
        %v2498 = vrcp.pop %v2497
        %v2499 = vmul.f32 %v2497, %v2498
        %v2500 = vsub.f32 1.0, %v2499
        %v2501 = vmul.f32 %v2498, %v2500
        %v2502 = vadd.f32 %v2498, %v2501
        %vm2503 = vweird.f32 %v2497
        %vm2504 = vweird.f32 %v2498
        %vm2505 = vmor %vm2503, %vm2504
        %v2506 = vsel %vm2505, %v2498, %v2502
        %v2507 = vand.u32 2147483647, %v2497
        %vm2508 = vcmp.eq.f32.partialorder %v2507, 8.507059e+37
        %v2509 = vand.u32 %v2497, 2147483648
        %v2510 = vor.u32 1.1754944e-38, %v2509
        %v2511 = vsel %vm2508, %v2510, %v2506
        %v2512 = vmul.f32 %v2494, %v2511
        %v2513 = vpack.c.bf16 %v2512, %v2512
        %2514 = vrot.lane.b32.xlu0 %v2396, 88
        %v2515 = vpop.permute.xlu0 %2514
        %v2517 = vsel %vm1385, %v2513, 0
        %v2520 = vsel %vm1436, %v2515, 0
        %2522 = vmatpush.bf16.msra.mxu0 0
        %2523 = vmatpush.bf16.msra.mxu0 0
        %2524 = vmatpush.bf16.msra.mxu0 0
        %2525 = vmatpush.bf16.msra.mxu0 0
        %2526 = vmatpush.bf16.msra.mxu0 0
        %2527 = vmatpush.bf16.msra.mxu0 0
        %2528 = vmatpush.bf16.msra.mxu0 0
        %2529 = vmatpush.bf16.msra.mxu0 %v2520
        %2530 = vmatmul.bf16.gmra.mxu0 %v2517
        %v2531 = vpop.f32.mrf.mxu0
        %v2532 = vadd.f32 0.0, %v2531
        %v2533 = vpop.f32.mrf.mxu0
        %2534 = vdwg.mxu0
        %2535 = vrot.lane.b32.xlu0 %v2395, 112
        %v2536 = vpop.permute.xlu0 %2535
        %2537 = vrot.lane.b32.xlu0 %v2396, 112
        %v2538 = vpop.permute.xlu0 %2537
        %v2540 = vsel %vm1385, %v2536, 0
        %v2543 = vsel %vm1385, %v2538, 0
        %2545 = vmatpush.bf16.xpose.msra.mxu0 0
        %2546 = vmatpush.bf16.xpose.msra.mxu0 0
        %2547 = vmatpush.bf16.xpose.msra.mxu0 0
        %2548 = vmatpush.bf16.xpose.msra.mxu0 0
        %2549 = vmatpush.bf16.xpose.msra.mxu0 0
        %2550 = vmatpush.bf16.xpose.msra.mxu0 0
        %2551 = vmatpush.bf16.xpose.msra.mxu0 0
        %2552 = vmatpush.bf16.xpose.msra.mxu0 %v2543
        %2553 = vmatmul.bf16.gmra.mxu0 %v2540
        %v2554 = vpop.f32.mrf.mxu0
        %v2555 = vadd.f32 0.0, %v2554
        %v2556 = vpop.f32.mrf.mxu0
        %2557 = vdwg.mxu0
        %v2558 = vmul.f32 %v2555, 0.35355338
        %v2559 = vsel %vm1385, %v2558, -inf
        %2560 = vmax.xlane.f32.xlu0 %v2559
        %v2561 = vpop.xlane.xlu0 %2560
        %v2562 = vsub.f32 %v2558, %v2561
        %v2563 = vmul.f32 %v2562, 1.442695
        %v2564 = vpow.pop %v2563
        %v2565 = vsel %vm1385, %v2564, 0.0
        %2566 = vadd.xlane.f32.xlu0 %v2565
        %v2567 = vpop.xlane.xlu0 %2566
        %v2568 = vrcp.pop %v2567
        %v2569 = vmul.f32 %v2567, %v2568
        %v2570 = vsub.f32 1.0, %v2569
        %v2571 = vmul.f32 %v2568, %v2570
        %v2572 = vadd.f32 %v2568, %v2571
        %vm2573 = vweird.f32 %v2567
        %vm2574 = vweird.f32 %v2568
        %vm2575 = vmor %vm2573, %vm2574
        %v2576 = vsel %vm2575, %v2568, %v2572
        %v2577 = vand.u32 2147483647, %v2567
        %vm2578 = vcmp.eq.f32.partialorder %v2577, 8.507059e+37
        %v2579 = vand.u32 %v2567, 2147483648
        %v2580 = vor.u32 1.1754944e-38, %v2579
        %v2581 = vsel %vm2578, %v2580, %v2576
        %v2582 = vmul.f32 %v2564, %v2581
        %v2583 = vpack.c.bf16 %v2582, %v2582
        %2584 = vrot.lane.b32.xlu0 %v2396, 80
        %v2585 = vpop.permute.xlu0 %2584
        %v2587 = vsel %vm1385, %v2583, 0
        %v2590 = vsel %vm1436, %v2585, 0
        %2592 = vmatpush.bf16.msra.mxu0 0
        %2593 = vmatpush.bf16.msra.mxu0 0
        %2594 = vmatpush.bf16.msra.mxu0 0
        %2595 = vmatpush.bf16.msra.mxu0 0
        %2596 = vmatpush.bf16.msra.mxu0 0
        %2597 = vmatpush.bf16.msra.mxu0 0
        %2598 = vmatpush.bf16.msra.mxu0 0
        %2599 = vmatpush.bf16.msra.mxu0 %v2590
        %2600 = vmatmul.bf16.gmra.mxu0 %v2587
        %v2601 = vpop.f32.mrf.mxu0
        %v2602 = vadd.f32 0.0, %v2601
        %v2603 = vpop.f32.mrf.mxu0
        %2604 = vdwg.mxu0
        %2605 = vrot.lane.b32.xlu0 %v2395, 104
        %v2606 = vpop.permute.xlu0 %2605
        %2607 = vrot.lane.b32.xlu0 %v2396, 104
        %v2608 = vpop.permute.xlu0 %2607
        %v2610 = vsel %vm1385, %v2606, 0
        %v2613 = vsel %vm1385, %v2608, 0
        %2615 = vmatpush.bf16.xpose.msra.mxu0 0
        %2616 = vmatpush.bf16.xpose.msra.mxu0 0
        %2617 = vmatpush.bf16.xpose.msra.mxu0 0
        %2618 = vmatpush.bf16.xpose.msra.mxu0 0
        %2619 = vmatpush.bf16.xpose.msra.mxu0 0
        %2620 = vmatpush.bf16.xpose.msra.mxu0 0
        %2621 = vmatpush.bf16.xpose.msra.mxu0 0
        %2622 = vmatpush.bf16.xpose.msra.mxu0 %v2613
        %2623 = vmatmul.bf16.gmra.mxu0 %v2610
        %v2624 = vpop.f32.mrf.mxu0
        %v2625 = vadd.f32 0.0, %v2624
        %v2626 = vpop.f32.mrf.mxu0
        %2627 = vdwg.mxu0
        %v2628 = vmul.f32 %v2625, 0.35355338
        %v2629 = vsel %vm1385, %v2628, -inf
        %2630 = vmax.xlane.f32.xlu0 %v2629
        %v2631 = vpop.xlane.xlu0 %2630
        %v2632 = vsub.f32 %v2628, %v2631
        %v2633 = vmul.f32 %v2632, 1.442695
        %v2634 = vpow.pop %v2633
        %v2635 = vsel %vm1385, %v2634, 0.0
        %2636 = vadd.xlane.f32.xlu0 %v2635
        %v2637 = vpop.xlane.xlu0 %2636
        %v2638 = vrcp.pop %v2637
        %v2639 = vmul.f32 %v2637, %v2638
        %v2640 = vsub.f32 1.0, %v2639
        %v2641 = vmul.f32 %v2638, %v2640
        %v2642 = vadd.f32 %v2638, %v2641
        %vm2643 = vweird.f32 %v2637
        %vm2644 = vweird.f32 %v2638
        %vm2645 = vmor %vm2643, %vm2644
        %v2646 = vsel %vm2645, %v2638, %v2642
        %v2647 = vand.u32 2147483647, %v2637
        %vm2648 = vcmp.eq.f32.partialorder %v2647, 8.507059e+37
        %v2649 = vand.u32 %v2637, 2147483648
        %v2650 = vor.u32 1.1754944e-38, %v2649
        %v2651 = vsel %vm2648, %v2650, %v2646
        %v2652 = vmul.f32 %v2634, %v2651
        %v2653 = vpack.c.bf16 %v2652, %v2652
        %2654 = vrot.lane.b32.xlu0 %v2396, 72
        %v2655 = vpop.permute.xlu0 %2654
        %v2657 = vsel %vm1385, %v2653, 0
        %v2660 = vsel %vm1436, %v2655, 0
        %2662 = vmatpush.bf16.msra.mxu0 0
        %2663 = vmatpush.bf16.msra.mxu0 0
        %2664 = vmatpush.bf16.msra.mxu0 0
        %2665 = vmatpush.bf16.msra.mxu0 0
        %2666 = vmatpush.bf16.msra.mxu0 0
        %2667 = vmatpush.bf16.msra.mxu0 0
        %2668 = vmatpush.bf16.msra.mxu0 0
        %2669 = vmatpush.bf16.msra.mxu0 %v2660
        %2670 = vmatmul.bf16.gmra.mxu0 %v2657
        %v2671 = vpop.f32.mrf.mxu0
        %v2672 = vadd.f32 0.0, %v2671
        %v2673 = vpop.f32.mrf.mxu0
        %2674 = vdwg.mxu0
        %2676 = vrot.lane.b32.xlu0 %v2532, 8
        %v2677 = vpop.permute.xlu0 %2676
        %2680 = vrot.lane.b32.xlu0 %v2602, 16
        %v2681 = vpop.permute.xlu0 %2680
        %2684 = vrot.lane.b32.xlu0 %v2672, 24
        %v2685 = vpop.permute.xlu0 %2684
        %v2687 = vsel %vm1385, %v2461, %v2677
        %v2688 = vsel %vm1676, %v2687, %v2681
        %v2689 = vsel %vm1678, %v2688, %v2685
        %v2690 = vpack.c.bf16 %v2689, %v2689
        %v2692 = vperm.slane %v2392, 0
        %v2698 = vunpack.c.l.b16 %v2388
        %v2699 = vunpack.c.l.b16 %v2389
        %v2700 = vunpack.c.l.b16 %v2390
        %v2701 = vunpack.c.l.b16 %v2391
        %v2702 = vpack.c.b16 %v2699, %v2698
        %v2703 = vpack.c.b16 %v2701, %v2700
        %v2707 = vsel %vm1357, %v2690, 0
        %2709 = vmatpush.bf16.msra.mxu0 0
        %2710 = vmatpush.bf16.msra.mxu0 0
        %2711 = vmatpush.bf16.msra.mxu0 0
        %2712 = vmatpush.bf16.msra.mxu0 0
        %2713 = vmatpush.bf16.msra.mxu0 0
        %2714 = vmatpush.bf16.msra.mxu0 0
        %2715 = vmatpush.bf16.msra.mxu0 %v2703
        %2716 = vmatpush.bf16.msra.mxu0 %v2702
        %2717 = vmatmul.bf16.gmra.mxu0 %v2707
        %v2718 = vpop.f32.mrf.mxu0
        %v2719 = vadd.f32 %v2692, %v2718
        %v2720 = vpop.f32.mrf.mxu0
        %2721 = vdwg.mxu0
        %v2722 = vadd.f32 %v2719, %v2313
        %v2723 = vsel %vm1357, %v2722, 0.0
        %2724 = vadd.xlane.f32.xlu0 %v2723
        %v2725 = vpop.xlane.xlu0 %2724
        %v2726 = vmul.f32 %v2725, %v1722
        %v2727 = vsub.f32 %v2722, %v2726
        %v2728 = vmul.f32 %v2727, %v2727
        %v2729 = vsel %vm1357, %v2728, 0.0
        %2730 = vadd.xlane.f32.xlu0 %v2729
        %v2731 = vpop.xlane.xlu0 %2730
        %v2732 = vmul.f32 %v2731, %v1722
        %v2733 = vadd.f32 %v2732, 1e-05
        %v2734 = vrsqrt.pop %v2733
        %v2735 = vmul.f32 %v2734, %v2733
        %v2736 = vmul.f32 %v2735, %v2734
        %v2737 = vmul.f32 0.5, %v2736
        %v2738 = vsub.f32 1.5, %v2737
        %v2739 = vmul.f32 %v2734, %v2738
        %vm2740 = vweird.f32 %v2733
        %vm2741 = vweird.f32 %v2734
        %vm2742 = vmor %vm2740, %vm2741
        %v2743 = vsel %vm2742, %v2734, %v2739
        %v2744 = vmul.f32 %v2727, %v2743
        %v2746 = vperm.slane %v2393, 0
        %v2748 = vmul.f32 %v2744, %v2746
        %v2750 = vperm.slane %v2394, 0
        %v2752 = vadd.f32 %v2748, %v2750
        %v2753 = vld [vmem:[#allocation19] sm:$0xf]
        %v2754 = vld [vmem:[#allocation19 + $0x4] sm:$0xf]
        %v2755 = vld [vmem:[#allocation19 + $0x8] sm:$0xf]
        %v2756 = vld [vmem:[#allocation19 + $0xc] sm:$0xf]
        %v2757 = vld [vmem:[#allocation20] sm:$0x1]
        %v2758 = vld [vmem:[%s61] sm:$0xf]
        %v2759 = vld [vmem:[%s61 + $0x4] sm:$0xf]
        %v2760 = vld [vmem:[%s61 + $0x8] sm:$0xf]
        %v2761 = vld [vmem:[%s61 + $0xc] sm:$0xf]
        %v2762 = vld [vmem:[%s61 + $0x10] sm:$0xf]
        %v2763 = vld [vmem:[%s61 + $0x14] sm:$0xf]
        %v2764 = vld [vmem:[%s61 + $0x18] sm:$0xf]
        %v2765 = vld [vmem:[%s61 + $0x1c] sm:$0xf]
        %v2766 = vld [vmem:[%s61 + $0x20] sm:$0xf]
        %v2767 = vld [vmem:[%s61 + $0x24] sm:$0xf]
        %v2768 = vld [vmem:[%s61 + $0x28] sm:$0xf]
        %v2769 = vld [vmem:[%s61 + $0x2c] sm:$0xf]
        %v2770 = vld [vmem:[%s61 + $0x30] sm:$0xf]
        %v2771 = vld [vmem:[%s61 + $0x34] sm:$0xf]
        %v2772 = vld [vmem:[%s61 + $0x38] sm:$0xf]
        %v2773 = vld [vmem:[%s61 + $0x3c] sm:$0xf]
        %v2774 = vld [vmem:[#allocation22] sm:$0x1]
        %v2775 = vld [vmem:[#allocation23] sm:$0x1]
        %v2776 = vld [vmem:[#allocation25] sm:$0x1]
        %v2777 = vpack.c.bf16 %v2752, %v2752
        %v2779 = vperm.slane %v2757, 0
        %v2785 = vunpack.c.l.b16 %v2753
        %v2786 = vunpack.c.l.b16 %v2754
        %v2787 = vunpack.c.l.b16 %v2755
        %v2788 = vunpack.c.l.b16 %v2756
        %v2789 = vpack.c.b16 %v2786, %v2785
        %v2790 = vpack.c.b16 %v2788, %v2787
        %v2794 = vsel %vm1357, %v2777, 0
        %2796 = vmatpush.bf16.msra.mxu0 0
        %2797 = vmatpush.bf16.msra.mxu0 0
        %2798 = vmatpush.bf16.msra.mxu0 0
        %2799 = vmatpush.bf16.msra.mxu0 0
        %2800 = vmatpush.bf16.msra.mxu0 0
        %2801 = vmatpush.bf16.msra.mxu0 0
        %2802 = vmatpush.bf16.msra.mxu0 %v2790
        %2803 = vmatpush.bf16.msra.mxu0 %v2789
        %2804 = vmatmul.bf16.gmra.mxu0 %v2794
        %v2805 = vpop.f32.mrf.mxu0
        %v2806 = vadd.f32 %v2779, %v2805
        %v2807 = vpop.f32.mrf.mxu0
        %2808 = vdwg.mxu0
        %v2809 = vmax.f32 %v2806, 0.0
        %v2810 = vpack.c.bf16 %v2809, %v2809
        %v2812 = vperm.slane %v2774, 0
        %v2830 = vunpack.c.l.b16 %v2758
        %v2831 = vunpack.c.l.b16 %v2759
        %v2832 = vunpack.c.l.b16 %v2760
        %v2833 = vunpack.c.l.b16 %v2761
        %v2834 = vunpack.c.l.b16 %v2762
        %v2835 = vunpack.c.l.b16 %v2763
        %v2836 = vunpack.c.l.b16 %v2764
        %v2837 = vunpack.c.l.b16 %v2765
        %v2838 = vunpack.c.l.b16 %v2766
        %v2839 = vunpack.c.l.b16 %v2767
        %v2840 = vunpack.c.l.b16 %v2768
        %v2841 = vunpack.c.l.b16 %v2769
        %v2842 = vunpack.c.l.b16 %v2770
        %v2843 = vunpack.c.l.b16 %v2771
        %v2844 = vunpack.c.l.b16 %v2772
        %v2845 = vunpack.c.l.b16 %v2773
        %v2846 = vpack.c.b16 %v2831, %v2830
        %v2847 = vpack.c.b16 %v2833, %v2832
        %v2848 = vpack.c.b16 %v2835, %v2834
        %v2849 = vpack.c.b16 %v2837, %v2836
        %v2850 = vpack.c.b16 %v2839, %v2838
        %v2851 = vpack.c.b16 %v2841, %v2840
        %v2852 = vpack.c.b16 %v2843, %v2842
        %v2853 = vpack.c.b16 %v2845, %v2844
        %2862 = vmatpush.bf16.msra.mxu0 %v2853
        %2863 = vmatpush.bf16.msra.mxu0 %v2852
        %2864 = vmatpush.bf16.msra.mxu0 %v2851
        %2865 = vmatpush.bf16.msra.mxu0 %v2850
        %2866 = vmatpush.bf16.msra.mxu0 %v2849
        %2867 = vmatpush.bf16.msra.mxu0 %v2848
        %2868 = vmatpush.bf16.msra.mxu0 %v2847
        %2869 = vmatpush.bf16.msra.mxu0 %v2846
        %2870 = vmatmul.bf16.gmra.mxu0 %v2810
        %v2871 = vpop.f32.mrf.mxu0
        %v2872 = vadd.f32 %v2812, %v2871
        %v2873 = vpop.f32.mrf.mxu0
        %2874 = vdwg.mxu0
        %v2875 = vadd.f32 %v2872, %v2752
        %v2876 = vsel %vm1357, %v2875, 0.0
        %2877 = vadd.xlane.f32.xlu0 %v2876
        %v2878 = vpop.xlane.xlu0 %2877
        %v2879 = vmul.f32 %v2878, %v1722
        %v2880 = vsub.f32 %v2875, %v2879
        %v2881 = vmul.f32 %v2880, %v2880
        %v2882 = vsel %vm1357, %v2881, 0.0
        %2883 = vadd.xlane.f32.xlu0 %v2882
        %v2884 = vpop.xlane.xlu0 %2883
        %v2885 = vmul.f32 %v2884, %v1722
        %v2886 = vadd.f32 %v2885, 1e-05
        %v2887 = vrsqrt.pop %v2886
        %v2888 = vmul.f32 %v2887, %v2886
        %v2889 = vmul.f32 %v2888, %v2887
        %v2890 = vmul.f32 0.5, %v2889
        %v2891 = vsub.f32 1.5, %v2890
        %v2892 = vmul.f32 %v2887, %v2891
        %vm2893 = vweird.f32 %v2886
        %vm2894 = vweird.f32 %v2887
        %vm2895 = vmor %vm2893, %vm2894
        %v2896 = vsel %vm2895, %v2887, %v2892
        %v2897 = vmul.f32 %v2880, %v2896
        %v2899 = vperm.slane %v2775, 0
        %v2901 = vmul.f32 %v2897, %v2899
        %v2903 = vperm.slane %v2776, 0
        %v2905 = vadd.f32 %v2901, %v2903
        %v2906 = vpack.c.bf16 %v2905, %v2905
        %v2907 = vld [vmem:[%s69] sm:$0xf]
        %v2908 = vld [vmem:[%s69 + $0x4] sm:$0xf]
        %v2909 = vld [vmem:[%s69 + $0x8] sm:$0xf]
        %v2910 = vld [vmem:[%s69 + $0xc] sm:$0xf]
        %v2911 = vld [vmem:[%s71] sm:$0x1]
        %v2913 = vperm.slane %v2911, 0
        %v2919 = vunpack.c.l.b16 %v2907
        %v2920 = vunpack.c.l.b16 %v2908
        %v2921 = vunpack.c.l.b16 %v2909
        %v2922 = vunpack.c.l.b16 %v2910
        %v2923 = vpack.c.b16 %v2920, %v2919
        %v2924 = vpack.c.b16 %v2922, %v2921
        %v2928 = vsel %vm1357, %v2906, 0
        %2930 = vmatpush.bf16.msra.mxu0 0
        %2931 = vmatpush.bf16.msra.mxu0 0
        %2932 = vmatpush.bf16.msra.mxu0 0
        %2933 = vmatpush.bf16.msra.mxu0 0
        %2934 = vmatpush.bf16.msra.mxu0 0
        %2935 = vmatpush.bf16.msra.mxu0 0
        %2936 = vmatpush.bf16.msra.mxu0 %v2924
        %2937 = vmatpush.bf16.msra.mxu0 %v2923
        %2938 = vmatmul.bf16.gmra.mxu0 %v2928
        %v2939 = vpop.f32.mrf.mxu0
        %v2940 = vadd.f32 %v2913, %v2939
        %v2941 = vpop.f32.mrf.mxu0
        %2942 = vdwg.mxu0
        %v2943 = vmax.f32 %v2940, 0.0
        %vm2944 = vcmask 523264
        %v2945 = vsel %vm2944, %v2943, -inf
        %2946 = vmax.xlane.f32.xlu0 %v2945
        %v2947 = vpop.xlane.xlu0 %2946
        %v2948 = vsub.f32 %v2943, %v2947
        %v2949 = vmul.f32 %v2948, 1.442695
        %v2950 = vpow.pop %v2949
        %v2951 = vsel %vm2944, %v2950, 0.0
        %2952 = vadd.xlane.f32.xlu0 %v2951
        %v2953 = vpop.xlane.xlu0 %2952
        %v2954 = vrcp.pop %v2953
        %v2955 = vmul.f32 %v2953, %v2954
        %v2956 = vsub.f32 1.0, %v2955
        %v2957 = vmul.f32 %v2954, %v2956
        %v2958 = vadd.f32 %v2954, %v2957
        %vm2959 = vweird.f32 %v2953
        %vm2960 = vweird.f32 %v2954
        %vm2961 = vmor %vm2959, %vm2960
        %v2962 = vsel %vm2961, %v2954, %v2958
        %v2963 = vand.u32 2147483647, %v2953
        %vm2964 = vcmp.eq.f32.partialorder %v2963, 8.507059e+37
        %v2965 = vand.u32 %v2953, 2147483648
        %v2966 = vor.u32 1.1754944e-38, %v2965
        %v2967 = vsel %vm2964, %v2966, %v2962
        %v2968 = vmul.f32 %v2950, %v2967
        %2969 = vst.msk [vmem:[%s1324] sm:$0xff] %vm2944, %v2968
        %s2970 = sand.u32 %s869, 1
        %s2971 = scalar_lea.sflag [#allocation4], %s2970
        %s2972 = sand.u32 %s869, 1
        %s2973 = smul.addr %s2972, 8
        %s2974 = scalar_lea.vmem [#allocation26], %s2973
        // Predicated region
        $region225: #{transformer_forward.1} parent=163 // pred_check
          %p2975 = pneg %p879
        $region226: #{transformer_forward.1} parent=163 // pred_check_branch
          %2977 = sbr.rel (%p2975) target = $region228
        $region227: #{transformer_forward.1} parent=163 // pred_region
          %2979 = vsyncadd %s2971, 0
          %s2980 = smul.addr %s95, 8
          %s2981 = scalar_lea.hbm %s73, %s2980
          %s2983 = sshll.u32 %s2974, 4
          %s2984 = int_to_ptr.vmem [resolvable:$true] %s2983
          %s2985 = sshll.u32 %s2981, 4
          %s2986 = int_to_ptr.hbm [resolvable:$true] %s2985
          %2988 = dma.vmem_to_hbm [thread:$0]  %s2984, 128, %s2986, %s2971
        $region228: #{transformer_forward.1} parent=163 // pred_fallthru
          _
      $region164: #{transformer_forward.1} parent=5 // pred_fallthru
        _
      %p2989 = scmp.le.s32.totalorder 2, %s90
      // Predicated region
      $region229: #{transformer_forward.1} parent=5 // pred_check
        %p2990 = pneg %p2989
      $region230: #{transformer_forward.1} parent=5 // pred_check_branch
        %2992 = sbr.rel (%p2990) target = $region232
      $region231: #{transformer_forward.1} parent=5 // pred_region
        %s2993 = ssub.s32 %s90, 2
        // Predicated region
        $region233: #{transformer_forward.1} parent=231 // pred_check
          %p2994 = pneg %p885
        $region234: #{transformer_forward.1} parent=231 // pred_check_branch
          %2996 = sbr.rel (%p2994) target = $region236
        $region235: #{transformer_forward.1} parent=231 // pred_region
          %s2997 = sand.u32 %s870, 1
          %s2998 = scalar_lea.sflag [#allocation4], %s2997
          %s2999 = sand.u32 %s870, 1
          %s3000 = smul.addr %s2999, 8
          %s3001 = scalar_lea.vmem [#allocation26], %s3000
          %3003 = dma.done %s2998, 128
        $region236: #{transformer_forward.1} parent=231 // pred_fallthru
          _
      $region232: #{transformer_forward.1} parent=5 // pred_fallthru
        _
    $region6: #{transformer_forward.1} parent=1 // loop_footer
      %s94 = sadd.s32 1, %s90
    $region7: #{transformer_forward.1} parent=1 // loop_footer_branch
      %89 = sbr.rel target = $region3
    $region8: #{transformer_forward.1} parent=1 // loop_exit
      _
    %3004 = vsyncpa [#allocation3], 1
    %s3005 = scalar_lea.sflag [#allocation3], 1
    %3006 = vsyncpa %s3005, 1
    %3007 = vsyncpa [#allocation6], 1
    %3008 = vsyncpa [#allocation9], 1
    %3009 = vsyncpa [#allocation12], 1
    %3010 = vsyncpa [#allocation15], 1
    %3011 = vsyncpa [#allocation18], 1
    %3012 = vsyncpa [#allocation21], 1
    %3013 = vsyncpa [#allocation24], 1
    %3014 = vsyncpa [#allocation4], 1
    %s3015 = scalar_lea.sflag [#allocation4], 1
    %3016 = vsyncpa %s3015, 1

</llo_original>
